<compile_context>
chip_gen: v7x
topology: tpu7x:2x2x1
jax: 0.10.0
libtpu: 0.0.40
codegen_flags: <defaults>
</compile_context>

<pallas_src>
import jax
import jax.numpy as jnp
from jax import lax
from jax.experimental import pallas as pl
from jax.experimental.pallas import tpu as pltpu


# ----------------------------------------------------------------------------
# Fused kernel: one grid step == one decoder step t (grid axis is sequential).
#   flags_ref     : (T+1,) int32 SMEM (scalar prefetch); flags[t]>0 => teacher
#                   forcing at step t; flags[T] is a sentinel 1 (skip tail).
#   tgt_gates_ref : (B, 4H) f32  precomputed teacher-forced gate pre-acts
#   ctxproj_ref   : (B, 4H) f32  ctx @ Wih_ctx + b (resident)
#   emb_ref       : (Vp, E) bf16 padded embedding table (resident)
#   wih_emb_ref   : (E, 4H) bf16 input weights, embedding rows (resident)
#   whh_ref       : (H, 4H) bf16 recurrent weights (resident)
#   wout_ref      : (H, Vp) bf16 output Linear weight, vocab-padded (resident)
#   bout_ref      : (1, Vp) f32  output bias, padded cols = -1e30 (resident)
#   logits_ref    : (B, Vp) f32  output block for step t
#   scratch       : h (1,H) f32, c (1,H) f32, pred_emb (B,E) bf16,
#                   gproj (B,4H) f32, hseq (B,H) f32
# ----------------------------------------------------------------------------
def _decoder_kernel(flags_ref,
                    tgt_gates_ref, ctxproj_ref, emb_ref, wih_emb_ref,
                    whh_ref, wout_ref, bout_ref,
                    logits_ref,
                    h_ref, c_ref, pred_emb_ref, gproj_ref, hseq_ref):
    t = pl.program_id(0)
    seq, g4 = gproj_ref.shape            # 128 recurrence positions, 4H
    hdim = whh_ref.shape[0]
    edim = emb_ref.shape[1]
    vpad = wout_ref.shape[1]

    # ---- one-time init at decoder step 0 -----------------------------------
    @pl.when(t == 0)
    def _init():
        h_ref[...] = jnp.zeros_like(h_ref)
        c_ref[...] = jnp.zeros_like(c_ref)
        # initial input token is index 0 at every position -> embedding row 0
        pred_emb_ref[...] = jnp.broadcast_to(emb_ref[0:1, :], (seq, edim))

    use_tgt = flags_ref[t] > 0

    # ---- gate pre-activations for all 128 positions -------------------------
    @pl.when(use_tgt)
    def _teacher():
        # fully precomputed outside the kernel (one big batched matmul)
        gproj_ref[...] = tgt_gates_ref[...]

    @pl.when(jnp.logical_not(use_tgt))
    def _greedy_input():
        gproj_ref[...] = ctxproj_ref[...] + jnp.dot(
            pred_emb_ref[...], wih_emb_ref[...],
            preferred_element_type=jnp.float32)

    # ---- 128-step serial recurrence (batch 1) --------------------------------
    # i/f/o columns of gproj and whh are pre-scaled by 0.5 in the wrapper, so
    # sigmoid(x) == 0.5*(tanh(x_scaled)+1) with a single tanh per gate row.
    def block_step(blk, carry):
        h, c = carry                                            # (1, H) f32
        base = pl.multiple_of(blk * 8, 8)
        g_tile = gproj_ref[pl.ds(base, 8), :]                   # (8, 4H) f32
        rows = []
        for j in range(8):                                      # unroll = 8
            gates = g_tile[j:j + 1, :] + jnp.dot(
                h.astype(jnp.bfloat16), whh_ref[...],
                preferred_element_type=jnp.float32)             # (1, 4H) f32
            tt = jnp.tanh(gates)
            i_g = 0.5 * (tt[:, 0 * hdim:1 * hdim] + 1.0)
            f_g = 0.5 * (tt[:, 1 * hdim:2 * hdim] + 1.0)
            g_g = tt[:, 2 * hdim:3 * hdim]
            o_g = 0.5 * (tt[:, 3 * hdim:4 * hdim] + 1.0)
            c = f_g * c + i_g * g_g
            h = o_g * jnp.tanh(c)
            rows.append(h)
        # one aligned (8, H) unmasked tile store instead of 8 masked row stores
        hseq_ref[pl.ds(base, 8), :] = jnp.concatenate(rows, axis=0)
        return h, c

    hT, cT = lax.fori_loop(0, seq // 8, block_step, (h_ref[...], c_ref[...]))
    h_ref[...] = hT
    c_ref[...] = cT

    # ---- output projection (lane-dense, vocab padded to multiple of 128) ----
    # padded bout columns are -1e30, so padded logits never win the argmax.
    logits = jnp.dot(hseq_ref[...].astype(jnp.bfloat16), wout_ref[...],
                     preferred_element_type=jnp.float32) + bout_ref[...]
    logits_ref[...] = logits

    # ---- greedy argmax feedback: only when the NEXT step consumes it --------
    @pl.when(flags_ref[t + 1] == 0)
    def _feedback():
        lane = lax.broadcasted_iota(jnp.int32, (1, vpad), 1)
        mx = jnp.max(logits, axis=-1, keepdims=True)             # (B, 1)
        # first index attaining the max (int32 iota: exact for any real vocab)
        idx = jnp.min(jnp.where(logits >= mx, lane, vpad),
                      axis=-1, keepdims=True)                    # (B, 1)
        onehot = (lane == idx).astype(jnp.bfloat16)              # (B, Vp)
        pred_emb_ref[...] = jnp.dot(
            onehot, emb_ref[...],
            preferred_element_type=jnp.float32).astype(jnp.bfloat16)


def _run_decoder(flags, tgt_gates, ctxproj_b, emb_pad, wih_emb, whh,
                 wout_pad, bout_pad):
    T, seq, g4 = tgt_gates.shape
    hdim = whh.shape[0]
    edim = emb_pad.shape[1]
    vpad = wout_pad.shape[1]

    grid_spec = pltpu.PrefetchScalarGridSpec(
        num_scalar_prefetch=1,
        grid=(T,),
        in_specs=[
            pl.BlockSpec((None, seq, g4), lambda t, f: (t, 0, 0)),  # tgt gates
            pl.BlockSpec((seq, g4), lambda t, f: (0, 0)),           # ctxproj+b
            pl.BlockSpec((vpad, edim), lambda t, f: (0, 0)),        # emb table
            pl.BlockSpec((edim, g4), lambda t, f: (0, 0)),          # wih (emb)
            pl.BlockSpec((hdim, g4), lambda t, f: (0, 0)),          # whh
            pl.BlockSpec((hdim, vpad), lambda t, f: (0, 0)),        # wout
            pl.BlockSpec((1, vpad), lambda t, f: (0, 0)),           # bout
        ],
        # direct (B, T*Vpad) layout: no post-kernel transpose needed
        out_specs=pl.BlockSpec((seq, vpad), lambda t, f: (0, t)),
        scratch_shapes=[
            pltpu.VMEM((1, hdim), jnp.float32),        # h carry
            pltpu.VMEM((1, hdim), jnp.float32),        # c carry
            pltpu.VMEM((seq, edim), jnp.bfloat16),     # feedback embedding
            pltpu.VMEM((seq, g4), jnp.float32),        # gate pre-activations
            pltpu.VMEM((seq, hdim), jnp.float32),      # per-position hidden
        ],
    )

    return pl.pallas_call(
        _decoder_kernel,
        grid_spec=grid_spec,
        out_shape=jax.ShapeDtypeStruct((seq, T * vpad), jnp.float32),
        compiler_params=pltpu.CompilerParams(
            dimension_semantics=("arbitrary",),        # serial (h, c) carry
            vmem_limit_bytes=48 * 1024 * 1024),        # headroom, < v7x 64 MiB
    )(flags, tgt_gates, ctxproj_b, emb_pad, wih_emb, whh, wout_pad, bout_pad)


# ----------------------------------------------------------------------------
# Python wrapper reproducing DecoderLSTM.forward (jittable, no host syncs).
# ----------------------------------------------------------------------------
@jax.jit
def decoder_lstm_forward(params, context_vector, target_sequence, key,
                         teacher_forcing_ratio=0.5):
    emb = params["embedding"]            # (V, E)
    wih_t = params["wih_t"]              # (H+E, 4H), gate order i, f, g, o
    whh_t = params["whh_t"]              # (H, 4H)
    b = params["b"]                      # (1, 4H) = b_ih + b_hh
    wout_t = params["wout_t"]            # (H, V)
    bout = params["bout"]                # (1, V)

    V, E = emb.shape
    H = whh_t.shape[0]
    B = context_vector.shape[0]          # hard-coded 128 in the module
    T = target_sequence.shape[1]
    Vpad = ((V + 127) // 128) * 128

    # all T teacher-forcing coin flips at once (mirrors per-step torch.rand);
    # sentinel flag at index T so the last step skips the feedback tail.
    coin = jax.random.uniform(key, (T,)) < teacher_forcing_ratio
    use_tgt = (coin & (jnp.arange(T) > 0)).astype(jnp.int32)           # (T,)
    flags = jnp.concatenate([use_tgt, jnp.ones((1,), jnp.int32)])      # (T+1,)

    # fold the sigmoid(x)=0.5*(tanh(x/2)+1) trick into the weights: scale the
    # i, f, o gate columns by 0.5 everywhere (inputs, recurrence, bias).
    gsc = jnp.concatenate([jnp.full((2 * H,), 0.5, jnp.float32),
                           jnp.ones((H,), jnp.float32),
                           jnp.full((H,), 0.5, jnp.float32)])           # (4H,)
    wih_s = wih_t.astype(jnp.float32) * gsc
    whh_s = whh_t.astype(jnp.float32) * gsc
    b_s = b.astype(jnp.float32) * gsc

    wih_ctx_s = wih_s[:H]                # rows multiplying the context vector
    wih_emb_s = wih_s[H:]                # rows multiplying the embedding

    # context contribution (+ bias): constant across decoder steps
    ctxproj_b = jnp.dot(context_vector.astype(jnp.float32), wih_ctx_s) + b_s

    # teacher-forced gate pre-activations for every step, one batched matmul
    tgt_emb = jnp.take(emb, target_sequence.T, axis=0).astype(jnp.float32)
    tgt_gates = jnp.einsum("tbe,eg->tbg", tgt_emb, wih_emb_s) + ctxproj_b[None]

    # lane-dense vocab padding; bf16 weights for the MXU, padded bias = -1e30
    # so the in-kernel argmax never selects a padded column.
    emb_pad = jnp.zeros((Vpad, E), jnp.bfloat16).at[:V].set(
        emb.astype(jnp.bfloat16))
    wout_pad = jnp.zeros((H, Vpad), jnp.bfloat16).at[:, :V].set(
        wout_t.astype(jnp.bfloat16))
    bout_pad = jnp.full((1, Vpad), -1e30, jnp.float32).at[:, :V].set(
        bout.astype(jnp.float32))

    logits_flat = _run_decoder(flags, tgt_gates, ctxproj_b, emb_pad,
                               wih_emb_s.astype(jnp.bfloat16),
                               whh_s.astype(jnp.bfloat16),
                               wout_pad, bout_pad)                 # (B, T*Vp)

    # free reshape (contiguous) to (B, T, Vpad), then drop the padded vocab
    return logits_flat.reshape(B, T, Vpad)[:, :, :V]


# ----------------------------------------------------------------------------
def init_params(key, vocab_size, embedding_dim, hidden_dim, pad_idx):
    ks = jax.random.split(key, 8)
    V, E, H = vocab_size, embedding_dim, hidden_dim
    scale = 1.0 / jnp.sqrt(jnp.float32(H))

    embedding = 0.1 * jax.random.normal(ks[0], (V, E), jnp.float32)
    embedding = embedding.at[pad_idx].set(0.0)          # padding_idx row = 0

    wih_t = jax.random.uniform(ks[1], (H + E, 4 * H), jnp.float32, -scale, scale)
    whh_t = jax.random.uniform(ks[2], (H, 4 * H), jnp.float32, -scale, scale)
    b_ih = jax.random.uniform(ks[3], (4 * H,), jnp.float32, -scale, scale)
    b_hh = jax.random.uniform(ks[4], (4 * H,), jnp.float32, -scale, scale)
    wout_t = jax.random.uniform(ks[5], (H, V), jnp.float32, -scale, scale)
    bout = jax.random.uniform(ks[6], (V,), jnp.float32, -scale, scale)

    return {
        "embedding": embedding,
        "wih_t": wih_t,
        "whh_t": whh_t,
        "b": (b_ih + b_hh).reshape(1, 4 * H),
        "wout_t": wout_t,
        "bout": bout.reshape(1, V),
    }


if __name__ == "__main__":
    # small-but-aligned sizes (the "128" axis is hard-coded in the module)
    VOCAB, EMB, HID = 100, 64, 128
    B, T = 128, 6
    PAD_IDX = 2

    root = jax.random.PRNGKey(0)
    k_par, k_ctx, k_tgt, k_tf = jax.random.split(root, 4)

    params = init_params(k_par, VOCAB, EMB, HID, PAD_IDX)
    context_vector = jax.random.normal(k_ctx, (B, HID), jnp.float32)
    target_sequence = jax.random.randint(k_tgt, (B, T), 0, VOCAB, jnp.int32)

    out = decoder_lstm_forward(params, context_vector, target_sequence, k_tf,
                               teacher_forcing_ratio=0.5)
    out = jax.block_until_ready(out)

    assert out.shape == (B, T, VOCAB), out.shape
    assert out.dtype == jnp.float32
    assert bool(jnp.all(jnp.isfinite(out)))
    print("KERNEL_OK")
</pallas_src>

<mosaic_0001>
module attributes {stable_mosaic.version = 11 : i64} {
  func.func @_decoder_kernel(%arg0: i32, %arg1: memref<7xi32, #tpu.memory_space<smem>>, %arg2: memref<1x128x512xf32, #tpu.memory_space<vmem>>, %arg3: memref<128x512xf32, #tpu.memory_space<vmem>>, %arg4: memref<128x64xbf16, #tpu.memory_space<vmem>>, %arg5: memref<64x512xbf16, #tpu.memory_space<vmem>>, %arg6: memref<128x512xbf16, #tpu.memory_space<vmem>>, %arg7: memref<128x128xbf16, #tpu.memory_space<vmem>>, %arg8: memref<1x128xf32, #tpu.memory_space<vmem>>, %arg9: memref<128x128xf32, #tpu.memory_space<vmem>>, %arg10: memref<1x128xf32, #tpu.memory_space<vmem>>, %arg11: memref<1x128xf32, #tpu.memory_space<vmem>>, %arg12: memref<128x64xbf16, #tpu.memory_space<vmem>>, %arg13: memref<128x512xf32, #tpu.memory_space<vmem>>, %arg14: memref<128x128xf32, #tpu.memory_space<vmem>>) attributes {dimension_semantics = [#tpu.dimension_semantics<arbitrary>], iteration_bounds = array<i64: 6>, scalar_prefetch = 1 : i64, scratch_operands = 5 : i64, tpu.core_type = #tpu.core_type<tc>, window_params = [{transform_indices = @transform_0, window_bounds = array<i64: 1, 128, 512>}, {pipeline_mode = #tpu.pipeline_mode<synchronous>, transform_indices = @transform_1, window_bounds = array<i64: 128, 512>}, {pipeline_mode = #tpu.pipeline_mode<synchronous>, transform_indices = @transform_2, window_bounds = array<i64: 128, 64>}, {pipeline_mode = #tpu.pipeline_mode<synchronous>, transform_indices = @transform_3, window_bounds = array<i64: 64, 512>}, {pipeline_mode = #tpu.pipeline_mode<synchronous>, transform_indices = @transform_4, window_bounds = array<i64: 128, 512>}, {pipeline_mode = #tpu.pipeline_mode<synchronous>, transform_indices = @transform_5, window_bounds = array<i64: 128, 128>}, {pipeline_mode = #tpu.pipeline_mode<synchronous>, transform_indices = @transform_6, window_bounds = array<i64: 1, 128>}, {transform_indices = @transform_7, window_bounds = array<i64: 128, 128>}]} {
    %c0_i32 = arith.constant 0 : i32
    %0 = arith.cmpi eq, %arg0, %c0_i32 : i32
    %1 = arith.extui %0 : i1 to i32
    %c0_i32_0 = arith.constant 0 : i32
    %2 = arith.cmpi ne, %1, %c0_i32_0 : i32
    scf.if %2 {
      %cst_24 = arith.constant 0.000000e+00 : f32
      %31 = vector.broadcast %cst_24 : f32 to vector<1x128xf32>
      %c0_25 = arith.constant 0 : index
      %c0_26 = arith.constant 0 : index
      %32 = vector.load %arg10[%c0_25, %c0_26] : memref<1x128xf32, #tpu.memory_space<vmem>>, vector<1x128xf32>
      tpu.vector_store %arg10[%c0_25, %c0_26], %31 {strides = array<i32>} : memref<1x128xf32, #tpu.memory_space<vmem>>, vector<1x128xf32>,
      %cst_27 = arith.constant 0.000000e+00 : f32
      %33 = vector.broadcast %cst_27 : f32 to vector<1x128xf32>
      %c0_28 = arith.constant 0 : index
      %c0_29 = arith.constant 0 : index
      %34 = vector.load %arg11[%c0_28, %c0_29] : memref<1x128xf32, #tpu.memory_space<vmem>>, vector<1x128xf32>
      tpu.vector_store %arg11[%c0_28, %c0_29], %33 {strides = array<i32>} : memref<1x128xf32, #tpu.memory_space<vmem>>, vector<1x128xf32>,
      %c0_30 = arith.constant 0 : index
      %c0_31 = arith.constant 0 : index
      %35 = vector.load %arg4[%c0_30, %c0_31] : memref<128x64xbf16, #tpu.memory_space<vmem>>, vector<1x64xbf16>
      %36 = vector.shape_cast %35 : vector<1x64xbf16> to vector<1x64xbf16>
      %37 = vector.broadcast %36 : vector<1x64xbf16> to vector<128x64xbf16>
      %c0_32 = arith.constant 0 : index
      %c0_33 = arith.constant 0 : index
      %38 = vector.load %arg12[%c0_32, %c0_33] : memref<128x64xbf16, #tpu.memory_space<vmem>>, vector<128x64xbf16>
      tpu.vector_store %arg12[%c0_32, %c0_33], %37 {strides = array<i32>} : memref<128x64xbf16, #tpu.memory_space<vmem>>, vector<128x64xbf16>,
    } else {
    }
    %3 = arith.index_cast %arg0 : i32 to index
    %4 = memref.load %arg1[%3] : memref<7xi32, #tpu.memory_space<smem>>
    %c0_i32_1 = arith.constant 0 : i32
    %5 = arith.cmpi sgt, %4, %c0_i32_1 : i32
    %6 = arith.extui %5 : i1 to i32
    %c0_i32_2 = arith.constant 0 : i32
    %7 = arith.cmpi ne, %6, %c0_i32_2 : i32
    scf.if %7 {
      %c0_24 = arith.constant 0 : index
      %c0_25 = arith.constant 0 : index
      %c0_26 = arith.constant 0 : index
      %31 = vector.load %arg2[%c0_24, %c0_25, %c0_26] : memref<1x128x512xf32, #tpu.memory_space<vmem>>, vector<1x128x512xf32>
      %32 = vector.shape_cast %31 : vector<1x128x512xf32> to vector<128x512xf32>
      %c0_27 = arith.constant 0 : index
      %c0_28 = arith.constant 0 : index
      %33 = vector.load %arg13[%c0_27, %c0_28] : memref<128x512xf32, #tpu.memory_space<vmem>>, vector<128x512xf32>
      tpu.vector_store %arg13[%c0_27, %c0_28], %32 {strides = array<i32>} : memref<128x512xf32, #tpu.memory_space<vmem>>, vector<128x512xf32>,
    } else {
    }
    %true = arith.constant true
    %8 = arith.xori %5, %true : i1
    %9 = arith.extui %8 : i1 to i32
    %c0_i32_3 = arith.constant 0 : i32
    %10 = arith.cmpi ne, %9, %c0_i32_3 : i32
    scf.if %10 {
      %c0_24 = arith.constant 0 : index
      %c0_25 = arith.constant 0 : index
      %31 = vector.load %arg3[%c0_24, %c0_25] : memref<128x512xf32, #tpu.memory_space<vmem>>, vector<128x512xf32>
      %c0_26 = arith.constant 0 : index
      %c0_27 = arith.constant 0 : index
      %32 = vector.load %arg12[%c0_26, %c0_27] : memref<128x64xbf16, #tpu.memory_space<vmem>>, vector<128x64xbf16>
      %c0_28 = arith.constant 0 : index
      %c0_29 = arith.constant 0 : index
      %33 = vector.load %arg5[%c0_28, %c0_29] : memref<64x512xbf16, #tpu.memory_space<vmem>>, vector<64x512xbf16>
      %cst_30 = arith.constant dense<0.000000e+00> : vector<128x512xf32>
      %34 = tpu.matmul %32, %33, %cst_30 {dimension_numbers = #tpu.dot_dimension_numbers<[1], [0], [0], [1], [0, 0, 1, 1], [], []>} : vector<128x64xbf16>, vector<64x512xbf16>, vector<128x512xf32> -> vector<128x512xf32>
      %35 = arith.addf %31, %34 : vector<128x512xf32>
      %c0_31 = arith.constant 0 : index
      %c0_32 = arith.constant 0 : index
      %36 = vector.load %arg13[%c0_31, %c0_32] : memref<128x512xf32, #tpu.memory_space<vmem>>, vector<128x512xf32>
      tpu.vector_store %arg13[%c0_31, %c0_32], %35 {strides = array<i32>} : memref<128x512xf32, #tpu.memory_space<vmem>>, vector<128x512xf32>,
    } else {
    }
    %c0 = arith.constant 0 : index
    %c0_4 = arith.constant 0 : index
    %11 = vector.load %arg10[%c0, %c0_4] : memref<1x128xf32, #tpu.memory_space<vmem>>, vector<1x128xf32>
    %c0_5 = arith.constant 0 : index
    %c0_6 = arith.constant 0 : index
    %12 = vector.load %arg11[%c0_5, %c0_6] : memref<1x128xf32, #tpu.memory_space<vmem>>, vector<1x128xf32>
    %c0_i32_7 = arith.constant 0 : i32
    %c16_i32 = arith.constant 16 : i32
    %13 = arith.addi %c0_i32_7, %c16_i32 : i32
    %c1_i32 = arith.constant 1 : i32
    %14:2 = scf.for %arg15 = %c0_i32_7 to %13 step %c1_i32 iter_args(%arg16 = %11, %arg17 = %12) -> (vector<1x128xf32>, vector<1x128xf32>)  : i32 {
      %c8_i32 = arith.constant 8 : i32
      %31 = arith.muli %arg15, %c8_i32 : i32
      %32 = tpu.assume_multiple %31, 8 : i32
      %33 = arith.index_cast %32 : i32 to index
      %c0_24 = arith.constant 0 : index
      %34 = vector.load %arg13[%33, %c0_24] : memref<128x512xf32, #tpu.memory_space<vmem>>, vector<8x512xf32>
      %35 = vector.extract_strided_slice %34 {offsets = [0, 0], sizes = [1, 512], strides = [1, 1]} : vector<8x512xf32> to vector<1x512xf32>
      %36 = arith.truncf %arg16 : vector<1x128xf32> to vector<1x128xbf16>
      %c0_25 = arith.constant 0 : index
      %c0_26 = arith.constant 0 : index
      %37 = vector.load %arg6[%c0_25, %c0_26] : memref<128x512xbf16, #tpu.memory_space<vmem>>, vector<128x512xbf16>
      %cst_27 = arith.constant dense<0.000000e+00> : vector<1x512xf32>
      %38 = tpu.matmul %36, %37, %cst_27 {dimension_numbers = #tpu.dot_dimension_numbers<[1], [0], [0], [1], [0, 0, 1, 1], [], []>} : vector<1x128xbf16>, vector<128x512xbf16>, vector<1x512xf32> -> vector<1x512xf32>
      %39 = arith.addf %35, %38 : vector<1x512xf32>
      %40 = math.tanh %39 : vector<1x512xf32>
      %41 = vector.extract_strided_slice %40 {offsets = [0, 0], sizes = [1, 128], strides = [1, 1]} : vector<1x512xf32> to vector<1x128xf32>
      %cst_28 = arith.constant 1.000000e+00 : f32
      %42 = vector.broadcast %cst_28 : f32 to vector<1x128xf32>
      %43 = arith.addf %41, %42 : vector<1x128xf32>
      %cst_29 = arith.constant 5.000000e-01 : f32
      %44 = vector.broadcast %cst_29 : f32 to vector<1x128xf32>
      %45 = arith.mulf %44, %43 : vector<1x128xf32>
      %46 = vector.extract_strided_slice %40 {offsets = [0, 128], sizes = [1, 128], strides = [1, 1]} : vector<1x512xf32> to vector<1x128xf32>
      %cst_30 = arith.constant 1.000000e+00 : f32
      %47 = vector.broadcast %cst_30 : f32 to vector<1x128xf32>
      %48 = arith.addf %46, %47 : vector<1x128xf32>
      %cst_31 = arith.constant 5.000000e-01 : f32
      %49 = vector.broadcast %cst_31 : f32 to vector<1x128xf32>
      %50 = arith.mulf %49, %48 : vector<1x128xf32>
      %51 = vector.extract_strided_slice %40 {offsets = [0, 256], sizes = [1, 128], strides = [1, 1]} : vector<1x512xf32> to vector<1x128xf32>
      %52 = vector.extract_strided_slice %40 {offsets = [0, 384], sizes = [1, 128], strides = [1, 1]} : vector<1x512xf32> to vector<1x128xf32>
      %cst_32 = arith.constant 1.000000e+00 : f32
      %53 = vector.broadcast %cst_32 : f32 to vector<1x128xf32>
      %54 = arith.addf %52, %53 : vector<1x128xf32>
      %cst_33 = arith.constant 5.000000e-01 : f32
      %55 = vector.broadcast %cst_33 : f32 to vector<1x128xf32>
      %56 = arith.mulf %55, %54 : vector<1x128xf32>
      %57 = arith.mulf %50, %arg17 : vector<1x128xf32>
      %58 = arith.mulf %45, %51 : vector<1x128xf32>
      %59 = arith.addf %57, %58 : vector<1x128xf32>
      %60 = math.tanh %59 : vector<1x128xf32>
      %61 = arith.mulf %56, %60 : vector<1x128xf32>
      %62 = vector.extract_strided_slice %34 {offsets = [1, 0], sizes = [1, 512], strides = [1, 1]} : vector<8x512xf32> to vector<1x512xf32>
      %63 = arith.truncf %61 : vector<1x128xf32> to vector<1x128xbf16>
      %c0_34 = arith.constant 0 : index
      %c0_35 = arith.constant 0 : index
      %64 = vector.load %arg6[%c0_34, %c0_35] : memref<128x512xbf16, #tpu.memory_space<vmem>>, vector<128x512xbf16>
      %cst_36 = arith.constant dense<0.000000e+00> : vector<1x512xf32>
      %65 = tpu.matmul %63, %64, %cst_36 {dimension_numbers = #tpu.dot_dimension_numbers<[1], [0], [0], [1], [0, 0, 1, 1], [], []>} : vector<1x128xbf16>, vector<128x512xbf16>, vector<1x512xf32> -> vector<1x512xf32>
      %66 = arith.addf %62, %65 : vector<1x512xf32>
      %67 = math.tanh %66 : vector<1x512xf32>
      %68 = vector.extract_strided_slice %67 {offsets = [0, 0], sizes = [1, 128], strides = [1, 1]} : vector<1x512xf32> to vector<1x128xf32>
      %cst_37 = arith.constant 1.000000e+00 : f32
      %69 = vector.broadcast %cst_37 : f32 to vector<1x128xf32>
      %70 = arith.addf %68, %69 : vector<1x128xf32>
      %cst_38 = arith.constant 5.000000e-01 : f32
      %71 = vector.broadcast %cst_38 : f32 to vector<1x128xf32>
      %72 = arith.mulf %71, %70 : vector<1x128xf32>
      %73 = vector.extract_strided_slice %67 {offsets = [0, 128], sizes = [1, 128], strides = [1, 1]} : vector<1x512xf32> to vector<1x128xf32>
      %cst_39 = arith.constant 1.000000e+00 : f32
      %74 = vector.broadcast %cst_39 : f32 to vector<1x128xf32>
      %75 = arith.addf %73, %74 : vector<1x128xf32>
      %cst_40 = arith.constant 5.000000e-01 : f32
      %76 = vector.broadcast %cst_40 : f32 to vector<1x128xf32>
      %77 = arith.mulf %76, %75 : vector<1x128xf32>
      %78 = vector.extract_strided_slice %67 {offsets = [0, 256], sizes = [1, 128], strides = [1, 1]} : vector<1x512xf32> to vector<1x128xf32>
      %79 = vector.extract_strided_slice %67 {offsets = [0, 384], sizes = [1, 128], strides = [1, 1]} : vector<1x512xf32> to vector<1x128xf32>
      %cst_41 = arith.constant 1.000000e+00 : f32
      %80 = vector.broadcast %cst_41 : f32 to vector<1x128xf32>
      %81 = arith.addf %79, %80 : vector<1x128xf32>
      %cst_42 = arith.constant 5.000000e-01 : f32
      %82 = vector.broadcast %cst_42 : f32 to vector<1x128xf32>
      %83 = arith.mulf %82, %81 : vector<1x128xf32>
      %84 = arith.mulf %77, %59 : vector<1x128xf32>
      %85 = arith.mulf %72, %78 : vector<1x128xf32>
      %86 = arith.addf %84, %85 : vector<1x128xf32>
      %87 = math.tanh %86 : vector<1x128xf32>
      %88 = arith.mulf %83, %87 : vector<1x128xf32>
      %89 = vector.extract_strided_slice %34 {offsets = [2, 0], sizes = [1, 512], strides = [1, 1]} : vector<8x512xf32> to vector<1x512xf32>
      %90 = arith.truncf %88 : vector<1x128xf32> to vector<1x128xbf16>
      %c0_43 = arith.constant 0 : index
      %c0_44 = arith.constant 0 : index
      %91 = vector.load %arg6[%c0_43, %c0_44] : memref<128x512xbf16, #tpu.memory_space<vmem>>, vector<128x512xbf16>
      %cst_45 = arith.constant dense<0.000000e+00> : vector<1x512xf32>
      %92 = tpu.matmul %90, %91, %cst_45 {dimension_numbers = #tpu.dot_dimension_numbers<[1], [0], [0], [1], [0, 0, 1, 1], [], []>} : vector<1x128xbf16>, vector<128x512xbf16>, vector<1x512xf32> -> vector<1x512xf32>
      %93 = arith.addf %89, %92 : vector<1x512xf32>
      %94 = math.tanh %93 : vector<1x512xf32>
      %95 = vector.extract_strided_slice %94 {offsets = [0, 0], sizes = [1, 128], strides = [1, 1]} : vector<1x512xf32> to vector<1x128xf32>
      %cst_46 = arith.constant 1.000000e+00 : f32
      %96 = vector.broadcast %cst_46 : f32 to vector<1x128xf32>
      %97 = arith.addf %95, %96 : vector<1x128xf32>
      %cst_47 = arith.constant 5.000000e-01 : f32
      %98 = vector.broadcast %cst_47 : f32 to vector<1x128xf32>
      %99 = arith.mulf %98, %97 : vector<1x128xf32>
      %100 = vector.extract_strided_slice %94 {offsets = [0, 128], sizes = [1, 128], strides = [1, 1]} : vector<1x512xf32> to vector<1x128xf32>
      %cst_48 = arith.constant 1.000000e+00 : f32
      %101 = vector.broadcast %cst_48 : f32 to vector<1x128xf32>
      %102 = arith.addf %100, %101 : vector<1x128xf32>
      %cst_49 = arith.constant 5.000000e-01 : f32
      %103 = vector.broadcast %cst_49 : f32 to vector<1x128xf32>
      %104 = arith.mulf %103, %102 : vector<1x128xf32>
      %105 = vector.extract_strided_slice %94 {offsets = [0, 256], sizes = [1, 128], strides = [1, 1]} : vector<1x512xf32> to vector<1x128xf32>
      %106 = vector.extract_strided_slice %94 {offsets = [0, 384], sizes = [1, 128], strides = [1, 1]} : vector<1x512xf32> to vector<1x128xf32>
      %cst_50 = arith.constant 1.000000e+00 : f32
      %107 = vector.broadcast %cst_50 : f32 to vector<1x128xf32>
      %108 = arith.addf %106, %107 : vector<1x128xf32>
      %cst_51 = arith.constant 5.000000e-01 : f32
      %109 = vector.broadcast %cst_51 : f32 to vector<1x128xf32>
      %110 = arith.mulf %109, %108 : vector<1x128xf32>
      %111 = arith.mulf %104, %86 : vector<1x128xf32>
      %112 = arith.mulf %99, %105 : vector<1x128xf32>
      %113 = arith.addf %111, %112 : vector<1x128xf32>
      %114 = math.tanh %113 : vector<1x128xf32>
      %115 = arith.mulf %110, %114 : vector<1x128xf32>
      %116 = vector.extract_strided_slice %34 {offsets = [3, 0], sizes = [1, 512], strides = [1, 1]} : vector<8x512xf32> to vector<1x512xf32>
      %117 = arith.truncf %115 : vector<1x128xf32> to vector<1x128xbf16>
      %c0_52 = arith.constant 0 : index
      %c0_53 = arith.constant 0 : index
      %118 = vector.load %arg6[%c0_52, %c0_53] : memref<128x512xbf16, #tpu.memory_space<vmem>>, vector<128x512xbf16>
      %cst_54 = arith.constant dense<0.000000e+00> : vector<1x512xf32>
      %119 = tpu.matmul %117, %118, %cst_54 {dimension_numbers = #tpu.dot_dimension_numbers<[1], [0], [0], [1], [0, 0, 1, 1], [], []>} : vector<1x128xbf16>, vector<128x512xbf16>, vector<1x512xf32> -> vector<1x512xf32>
      %120 = arith.addf %116, %119 : vector<1x512xf32>
      %121 = math.tanh %120 : vector<1x512xf32>
      %122 = vector.extract_strided_slice %121 {offsets = [0, 0], sizes = [1, 128], strides = [1, 1]} : vector<1x512xf32> to vector<1x128xf32>
      %cst_55 = arith.constant 1.000000e+00 : f32
      %123 = vector.broadcast %cst_55 : f32 to vector<1x128xf32>
      %124 = arith.addf %122, %123 : vector<1x128xf32>
      %cst_56 = arith.constant 5.000000e-01 : f32
      %125 = vector.broadcast %cst_56 : f32 to vector<1x128xf32>
      %126 = arith.mulf %125, %124 : vector<1x128xf32>
      %127 = vector.extract_strided_slice %121 {offsets = [0, 128], sizes = [1, 128], strides = [1, 1]} : vector<1x512xf32> to vector<1x128xf32>
      %cst_57 = arith.constant 1.000000e+00 : f32
      %128 = vector.broadcast %cst_57 : f32 to vector<1x128xf32>
      %129 = arith.addf %127, %128 : vector<1x128xf32>
      %cst_58 = arith.constant 5.000000e-01 : f32
      %130 = vector.broadcast %cst_58 : f32 to vector<1x128xf32>
      %131 = arith.mulf %130, %129 : vector<1x128xf32>
      %132 = vector.extract_strided_slice %121 {offsets = [0, 256], sizes = [1, 128], strides = [1, 1]} : vector<1x512xf32> to vector<1x128xf32>
      %133 = vector.extract_strided_slice %121 {offsets = [0, 384], sizes = [1, 128], strides = [1, 1]} : vector<1x512xf32> to vector<1x128xf32>
      %cst_59 = arith.constant 1.000000e+00 : f32
      %134 = vector.broadcast %cst_59 : f32 to vector<1x128xf32>
      %135 = arith.addf %133, %134 : vector<1x128xf32>
      %cst_60 = arith.constant 5.000000e-01 : f32
      %136 = vector.broadcast %cst_60 : f32 to vector<1x128xf32>
      %137 = arith.mulf %136, %135 : vector<1x128xf32>
      %138 = arith.mulf %131, %113 : vector<1x128xf32>
      %139 = arith.mulf %126, %132 : vector<1x128xf32>
      %140 = arith.addf %138, %139 : vector<1x128xf32>
      %141 = math.tanh %140 : vector<1x128xf32>
      %142 = arith.mulf %137, %141 : vector<1x128xf32>
      %143 = vector.extract_strided_slice %34 {offsets = [4, 0], sizes = [1, 512], strides = [1, 1]} : vector<8x512xf32> to vector<1x512xf32>
      %144 = arith.truncf %142 : vector<1x128xf32> to vector<1x128xbf16>
      %c0_61 = arith.constant 0 : index
      %c0_62 = arith.constant 0 : index
      %145 = vector.load %arg6[%c0_61, %c0_62] : memref<128x512xbf16, #tpu.memory_space<vmem>>, vector<128x512xbf16>
      %cst_63 = arith.constant dense<0.000000e+00> : vector<1x512xf32>
      %146 = tpu.matmul %144, %145, %cst_63 {dimension_numbers = #tpu.dot_dimension_numbers<[1], [0], [0], [1], [0, 0, 1, 1], [], []>} : vector<1x128xbf16>, vector<128x512xbf16>, vector<1x512xf32> -> vector<1x512xf32>
      %147 = arith.addf %143, %146 : vector<1x512xf32>
      %148 = math.tanh %147 : vector<1x512xf32>
      %149 = vector.extract_strided_slice %148 {offsets = [0, 0], sizes = [1, 128], strides = [1, 1]} : vector<1x512xf32> to vector<1x128xf32>
      %cst_64 = arith.constant 1.000000e+00 : f32
      %150 = vector.broadcast %cst_64 : f32 to vector<1x128xf32>
      %151 = arith.addf %149, %150 : vector<1x128xf32>
      %cst_65 = arith.constant 5.000000e-01 : f32
      %152 = vector.broadcast %cst_65 : f32 to vector<1x128xf32>
      %153 = arith.mulf %152, %151 : vector<1x128xf32>
      %154 = vector.extract_strided_slice %148 {offsets = [0, 128], sizes = [1, 128], strides = [1, 1]} : vector<1x512xf32> to vector<1x128xf32>
      %cst_66 = arith.constant 1.000000e+00 : f32
      %155 = vector.broadcast %cst_66 : f32 to vector<1x128xf32>
      %156 = arith.addf %154, %155 : vector<1x128xf32>
      %cst_67 = arith.constant 5.000000e-01 : f32
      %157 = vector.broadcast %cst_67 : f32 to vector<1x128xf32>
      %158 = arith.mulf %157, %156 : vector<1x128xf32>
      %159 = vector.extract_strided_slice %148 {offsets = [0, 256], sizes = [1, 128], strides = [1, 1]} : vector<1x512xf32> to vector<1x128xf32>
      %160 = vector.extract_strided_slice %148 {offsets = [0, 384], sizes = [1, 128], strides = [1, 1]} : vector<1x512xf32> to vector<1x128xf32>
      %cst_68 = arith.constant 1.000000e+00 : f32
      %161 = vector.broadcast %cst_68 : f32 to vector<1x128xf32>
      %162 = arith.addf %160, %161 : vector<1x128xf32>
      %cst_69 = arith.constant 5.000000e-01 : f32
      %163 = vector.broadcast %cst_69 : f32 to vector<1x128xf32>
      %164 = arith.mulf %163, %162 : vector<1x128xf32>
      %165 = arith.mulf %158, %140 : vector<1x128xf32>
      %166 = arith.mulf %153, %159 : vector<1x128xf32>
      %167 = arith.addf %165, %166 : vector<1x128xf32>
      %168 = math.tanh %167 : vector<1x128xf32>
      %169 = arith.mulf %164, %168 : vector<1x128xf32>
      %170 = vector.extract_strided_slice %34 {offsets = [5, 0], sizes = [1, 512], strides = [1, 1]} : vector<8x512xf32> to vector<1x512xf32>
      %171 = arith.truncf %169 : vector<1x128xf32> to vector<1x128xbf16>
      %c0_70 = arith.constant 0 : index
      %c0_71 = arith.constant 0 : index
      %172 = vector.load %arg6[%c0_70, %c0_71] : memref<128x512xbf16, #tpu.memory_space<vmem>>, vector<128x512xbf16>
      %cst_72 = arith.constant dense<0.000000e+00> : vector<1x512xf32>
      %173 = tpu.matmul %171, %172, %cst_72 {dimension_numbers = #tpu.dot_dimension_numbers<[1], [0], [0], [1], [0, 0, 1, 1], [], []>} : vector<1x128xbf16>, vector<128x512xbf16>, vector<1x512xf32> -> vector<1x512xf32>
      %174 = arith.addf %170, %173 : vector<1x512xf32>
      %175 = math.tanh %174 : vector<1x512xf32>
      %176 = vector.extract_strided_slice %175 {offsets = [0, 0], sizes = [1, 128], strides = [1, 1]} : vector<1x512xf32> to vector<1x128xf32>
      %cst_73 = arith.constant 1.000000e+00 : f32
      %177 = vector.broadcast %cst_73 : f32 to vector<1x128xf32>
      %178 = arith.addf %176, %177 : vector<1x128xf32>
      %cst_74 = arith.constant 5.000000e-01 : f32
      %179 = vector.broadcast %cst_74 : f32 to vector<1x128xf32>
      %180 = arith.mulf %179, %178 : vector<1x128xf32>
      %181 = vector.extract_strided_slice %175 {offsets = [0, 128], sizes = [1, 128], strides = [1, 1]} : vector<1x512xf32> to vector<1x128xf32>
      %cst_75 = arith.constant 1.000000e+00 : f32
      %182 = vector.broadcast %cst_75 : f32 to vector<1x128xf32>
      %183 = arith.addf %181, %182 : vector<1x128xf32>
      %cst_76 = arith.constant 5.000000e-01 : f32
      %184 = vector.broadcast %cst_76 : f32 to vector<1x128xf32>
      %185 = arith.mulf %184, %183 : vector<1x128xf32>
      %186 = vector.extract_strided_slice %175 {offsets = [0, 256], sizes = [1, 128], strides = [1, 1]} : vector<1x512xf32> to vector<1x128xf32>
      %187 = vector.extract_strided_slice %175 {offsets = [0, 384], sizes = [1, 128], strides = [1, 1]} : vector<1x512xf32> to vector<1x128xf32>
      %cst_77 = arith.constant 1.000000e+00 : f32
      %188 = vector.broadcast %cst_77 : f32 to vector<1x128xf32>
      %189 = arith.addf %187, %188 : vector<1x128xf32>
      %cst_78 = arith.constant 5.000000e-01 : f32
      %190 = vector.broadcast %cst_78 : f32 to vector<1x128xf32>
      %191 = arith.mulf %190, %189 : vector<1x128xf32>
      %192 = arith.mulf %185, %167 : vector<1x128xf32>
      %193 = arith.mulf %180, %186 : vector<1x128xf32>
      %194 = arith.addf %192, %193 : vector<1x128xf32>
      %195 = math.tanh %194 : vector<1x128xf32>
      %196 = arith.mulf %191, %195 : vector<1x128xf32>
      %197 = vector.extract_strided_slice %34 {offsets = [6, 0], sizes = [1, 512], strides = [1, 1]} : vector<8x512xf32> to vector<1x512xf32>
      %198 = arith.truncf %196 : vector<1x128xf32> to vector<1x128xbf16>
      %c0_79 = arith.constant 0 : index
      %c0_80 = arith.constant 0 : index
      %199 = vector.load %arg6[%c0_79, %c0_80] : memref<128x512xbf16, #tpu.memory_space<vmem>>, vector<128x512xbf16>
      %cst_81 = arith.constant dense<0.000000e+00> : vector<1x512xf32>
      %200 = tpu.matmul %198, %199, %cst_81 {dimension_numbers = #tpu.dot_dimension_numbers<[1], [0], [0], [1], [0, 0, 1, 1], [], []>} : vector<1x128xbf16>, vector<128x512xbf16>, vector<1x512xf32> -> vector<1x512xf32>
      %201 = arith.addf %197, %200 : vector<1x512xf32>
      %202 = math.tanh %201 : vector<1x512xf32>
      %203 = vector.extract_strided_slice %202 {offsets = [0, 0], sizes = [1, 128], strides = [1, 1]} : vector<1x512xf32> to vector<1x128xf32>
      %cst_82 = arith.constant 1.000000e+00 : f32
      %204 = vector.broadcast %cst_82 : f32 to vector<1x128xf32>
      %205 = arith.addf %203, %204 : vector<1x128xf32>
      %cst_83 = arith.constant 5.000000e-01 : f32
      %206 = vector.broadcast %cst_83 : f32 to vector<1x128xf32>
      %207 = arith.mulf %206, %205 : vector<1x128xf32>
      %208 = vector.extract_strided_slice %202 {offsets = [0, 128], sizes = [1, 128], strides = [1, 1]} : vector<1x512xf32> to vector<1x128xf32>
      %cst_84 = arith.constant 1.000000e+00 : f32
      %209 = vector.broadcast %cst_84 : f32 to vector<1x128xf32>
      %210 = arith.addf %208, %209 : vector<1x128xf32>
      %cst_85 = arith.constant 5.000000e-01 : f32
      %211 = vector.broadcast %cst_85 : f32 to vector<1x128xf32>
      %212 = arith.mulf %211, %210 : vector<1x128xf32>
      %213 = vector.extract_strided_slice %202 {offsets = [0, 256], sizes = [1, 128], strides = [1, 1]} : vector<1x512xf32> to vector<1x128xf32>
      %214 = vector.extract_strided_slice %202 {offsets = [0, 384], sizes = [1, 128], strides = [1, 1]} : vector<1x512xf32> to vector<1x128xf32>
      %cst_86 = arith.constant 1.000000e+00 : f32
      %215 = vector.broadcast %cst_86 : f32 to vector<1x128xf32>
      %216 = arith.addf %214, %215 : vector<1x128xf32>
      %cst_87 = arith.constant 5.000000e-01 : f32
      %217 = vector.broadcast %cst_87 : f32 to vector<1x128xf32>
      %218 = arith.mulf %217, %216 : vector<1x128xf32>
      %219 = arith.mulf %212, %194 : vector<1x128xf32>
      %220 = arith.mulf %207, %213 : vector<1x128xf32>
      %221 = arith.addf %219, %220 : vector<1x128xf32>
      %222 = math.tanh %221 : vector<1x128xf32>
      %223 = arith.mulf %218, %222 : vector<1x128xf32>
      %224 = vector.extract_strided_slice %34 {offsets = [7, 0], sizes = [1, 512], strides = [1, 1]} : vector<8x512xf32> to vector<1x512xf32>
      %225 = arith.truncf %223 : vector<1x128xf32> to vector<1x128xbf16>
      %c0_88 = arith.constant 0 : index
      %c0_89 = arith.constant 0 : index
      %226 = vector.load %arg6[%c0_88, %c0_89] : memref<128x512xbf16, #tpu.memory_space<vmem>>, vector<128x512xbf16>
      %cst_90 = arith.constant dense<0.000000e+00> : vector<1x512xf32>
      %227 = tpu.matmul %225, %226, %cst_90 {dimension_numbers = #tpu.dot_dimension_numbers<[1], [0], [0], [1], [0, 0, 1, 1], [], []>} : vector<1x128xbf16>, vector<128x512xbf16>, vector<1x512xf32> -> vector<1x512xf32>
      %228 = arith.addf %224, %227 : vector<1x512xf32>
      %229 = math.tanh %228 : vector<1x512xf32>
      %230 = vector.extract_strided_slice %229 {offsets = [0, 0], sizes = [1, 128], strides = [1, 1]} : vector<1x512xf32> to vector<1x128xf32>
      %cst_91 = arith.constant 1.000000e+00 : f32
      %231 = vector.broadcast %cst_91 : f32 to vector<1x128xf32>
      %232 = arith.addf %230, %231 : vector<1x128xf32>
      %cst_92 = arith.constant 5.000000e-01 : f32
      %233 = vector.broadcast %cst_92 : f32 to vector<1x128xf32>
      %234 = arith.mulf %233, %232 : vector<1x128xf32>
      %235 = vector.extract_strided_slice %229 {offsets = [0, 128], sizes = [1, 128], strides = [1, 1]} : vector<1x512xf32> to vector<1x128xf32>
      %cst_93 = arith.constant 1.000000e+00 : f32
      %236 = vector.broadcast %cst_93 : f32 to vector<1x128xf32>
      %237 = arith.addf %235, %236 : vector<1x128xf32>
      %cst_94 = arith.constant 5.000000e-01 : f32
      %238 = vector.broadcast %cst_94 : f32 to vector<1x128xf32>
      %239 = arith.mulf %238, %237 : vector<1x128xf32>
      %240 = vector.extract_strided_slice %229 {offsets = [0, 256], sizes = [1, 128], strides = [1, 1]} : vector<1x512xf32> to vector<1x128xf32>
      %241 = vector.extract_strided_slice %229 {offsets = [0, 384], sizes = [1, 128], strides = [1, 1]} : vector<1x512xf32> to vector<1x128xf32>
      %cst_95 = arith.constant 1.000000e+00 : f32
      %242 = vector.broadcast %cst_95 : f32 to vector<1x128xf32>
      %243 = arith.addf %241, %242 : vector<1x128xf32>
      %cst_96 = arith.constant 5.000000e-01 : f32
      %244 = vector.broadcast %cst_96 : f32 to vector<1x128xf32>
      %245 = arith.mulf %244, %243 : vector<1x128xf32>
      %246 = arith.mulf %239, %221 : vector<1x128xf32>
      %247 = arith.mulf %234, %240 : vector<1x128xf32>
      %248 = arith.addf %246, %247 : vector<1x128xf32>
      %249 = math.tanh %248 : vector<1x128xf32>
      %250 = arith.mulf %245, %249 : vector<1x128xf32>
      %251 = tpu.concatenate %61, %88, %115, %142, %169, %196, %223, %250 in 0 : vector<1x128xf32>, vector<1x128xf32>, vector<1x128xf32>, vector<1x128xf32>, vector<1x128xf32>, vector<1x128xf32>, vector<1x128xf32>, vector<1x128xf32> -> vector<8x128xf32>
      %252 = arith.index_cast %32 : i32 to index
      %c0_97 = arith.constant 0 : index
      %253 = vector.load %arg14[%252, %c0_97] : memref<128x128xf32, #tpu.memory_space<vmem>>, vector<8x128xf32>
      tpu.vector_store %arg14[%252, %c0_97], %251 {strides = array<i32>} : memref<128x128xf32, #tpu.memory_space<vmem>>, vector<8x128xf32>,
      scf.yield %250, %248 : vector<1x128xf32>, vector<1x128xf32>
    }
    %c16_i32_8 = arith.constant 16 : i32
    %c0_9 = arith.constant 0 : index
    %c0_10 = arith.constant 0 : index
    %15 = vector.load %arg10[%c0_9, %c0_10] : memref<1x128xf32, #tpu.memory_space<vmem>>, vector<1x128xf32>
    tpu.vector_store %arg10[%c0_9, %c0_10], %14#0 {strides = array<i32>} : memref<1x128xf32, #tpu.memory_space<vmem>>, vector<1x128xf32>,
    %c0_11 = arith.constant 0 : index
    %c0_12 = arith.constant 0 : index
    %16 = vector.load %arg11[%c0_11, %c0_12] : memref<1x128xf32, #tpu.memory_space<vmem>>, vector<1x128xf32>
    tpu.vector_store %arg11[%c0_11, %c0_12], %14#1 {strides = array<i32>} : memref<1x128xf32, #tpu.memory_space<vmem>>, vector<1x128xf32>,
    %c0_13 = arith.constant 0 : index
    %c0_14 = arith.constant 0 : index
    %17 = vector.load %arg14[%c0_13, %c0_14] : memref<128x128xf32, #tpu.memory_space<vmem>>, vector<128x128xf32>
    %18 = arith.truncf %17 : vector<128x128xf32> to vector<128x128xbf16>
    %c0_15 = arith.constant 0 : index
    %c0_16 = arith.constant 0 : index
    %19 = vector.load %arg7[%c0_15, %c0_16] : memref<128x128xbf16, #tpu.memory_space<vmem>>, vector<128x128xbf16>
    %cst = arith.constant dense<0.000000e+00> : vector<128x128xf32>
    %20 = tpu.matmul %18, %19, %cst {dimension_numbers = #tpu.dot_dimension_numbers<[1], [0], [0], [1], [0, 0, 1, 1], [], []>} : vector<128x128xbf16>, vector<128x128xbf16>, vector<128x128xf32> -> vector<128x128xf32>
    %c0_17 = arith.constant 0 : index
    %c0_18 = arith.constant 0 : index
    %21 = vector.load %arg8[%c0_17, %c0_18] : memref<1x128xf32, #tpu.memory_space<vmem>>, vector<1x128xf32>
    %22 = vector.broadcast %21 : vector<1x128xf32> to vector<128x128xf32>
    %23 = arith.addf %20, %22 : vector<128x128xf32>
    %c0_19 = arith.constant 0 : index
    %c0_20 = arith.constant 0 : index
    %24 = vector.load %arg9[%c0_19, %c0_20] : memref<128x128xf32, #tpu.memory_space<vmem>>, vector<128x128xf32>
    tpu.vector_store %arg9[%c0_19, %c0_20], %23 {strides = array<i32>} : memref<128x128xf32, #tpu.memory_space<vmem>>, vector<128x128xf32>,
    %c1_i32_21 = arith.constant 1 : i32
    %25 = arith.addi %arg0, %c1_i32_21 : i32
    %26 = arith.index_cast %25 : i32 to index
    %27 = memref.load %arg1[%26] : memref<7xi32, #tpu.memory_space<smem>>
    %c0_i32_22 = arith.constant 0 : i32
    %28 = arith.cmpi eq, %27, %c0_i32_22 : i32
    %29 = arith.extui %28 : i1 to i32
    %c0_i32_23 = arith.constant 0 : i32
    %30 = arith.cmpi ne, %29, %c0_i32_23 : i32
    scf.if %30 {
      %31 = tpu.iota {dimensions = array<i32: 1>} : vector<1x128xi32>
      %cst_24 = arith.constant dense<0xFF800000> : vector<128xf32>
      %32 = vector.multi_reduction <maximumf>, %23, %cst_24 [1] : vector<128x128xf32> to vector<128xf32>
      %33 = vector.shape_cast %32 : vector<128xf32> to vector<128x1xf32>
      %34 = vector.broadcast %33 : vector<128x1xf32> to vector<128x128xf32>
      %35 = arith.cmpf oge, %23, %34 : vector<128x128xf32>
      %c128_i32 = arith.constant 128 : i32
      %36 = vector.shape_cast %31 : vector<1x128xi32> to vector<1x128xi32>
      %37 = vector.broadcast %36 : vector<1x128xi32> to vector<128x128xi32>
      %38 = vector.broadcast %c128_i32 : i32 to vector<128x128xi32>
      %39 = arith.select %35, %37, %38 : vector<128x128xi1>, vector<128x128xi32>
      %cst_25 = arith.constant dense<2147483647> : vector<128xi32>
      %40 = vector.multi_reduction <minsi>, %39, %cst_25 [1] : vector<128x128xi32> to vector<128xi32>
      %41 = vector.shape_cast %40 : vector<128xi32> to vector<128x1xi32>
      %42 = vector.broadcast %31 : vector<1x128xi32> to vector<128x128xi32>
      %43 = vector.broadcast %41 : vector<128x1xi32> to vector<128x128xi32>
      %44 = arith.cmpi eq, %42, %43 : vector<128x128xi32>
      %45 = arith.extui %44 : vector<128x128xi1> to vector<128x128xi32>
      %46 = arith.sitofp %45 : vector<128x128xi32> to vector<128x128xf32>
      %47 = arith.truncf %46 : vector<128x128xf32> to vector<128x128xbf16>
      %c0_26 = arith.constant 0 : index
      %c0_27 = arith.constant 0 : index
      %48 = vector.load %arg4[%c0_26, %c0_27] : memref<128x64xbf16, #tpu.memory_space<vmem>>, vector<128x64xbf16>
      %cst_28 = arith.constant dense<0.000000e+00> : vector<128x64xf32>
      %49 = tpu.matmul %47, %48, %cst_28 {dimension_numbers = #tpu.dot_dimension_numbers<[1], [0], [0], [1], [0, 0, 1, 1], [], []>} : vector<128x128xbf16>, vector<128x64xbf16>, vector<128x64xf32> -> vector<128x64xf32>
      %50 = arith.truncf %49 : vector<128x64xf32> to vector<128x64xbf16>
      %c0_29 = arith.constant 0 : index
      %c0_30 = arith.constant 0 : index
      %51 = vector.load %arg12[%c0_29, %c0_30] : memref<128x64xbf16, #tpu.memory_space<vmem>>, vector<128x64xbf16>
      tpu.vector_store %arg12[%c0_29, %c0_30], %50 {strides = array<i32>} : memref<128x64xbf16, #tpu.memory_space<vmem>>, vector<128x64xbf16>,
    } else {
    }
    return
  }
  func.func @transform_0(%arg0: i32, %arg1: memref<7xi32, #tpu.memory_space<smem>>) -> (i32, i32, i32) {
    %c0_i32 = arith.constant 0 : i32
    %c0_i32_0 = arith.constant 0 : i32
    %c0_i32_1 = arith.constant 0 : i32
    return %arg0, %c0_i32, %c0_i32_0 : i32, i32, i32
  }
  func.func @transform_1(%arg0: i32, %arg1: memref<7xi32, #tpu.memory_space<smem>>) -> (i32, i32) {
    %c0_i32 = arith.constant 0 : i32
    %c0_i32_0 = arith.constant 0 : i32
    %c0_i32_1 = arith.constant 0 : i32
    return %c0_i32, %c0_i32_0 : i32, i32
  }
  func.func @transform_2(%arg0: i32, %arg1: memref<7xi32, #tpu.memory_space<smem>>) -> (i32, i32) {
    %c0_i32 = arith.constant 0 : i32
    %c0_i32_0 = arith.constant 0 : i32
    %c0_i32_1 = arith.constant 0 : i32
    return %c0_i32, %c0_i32_0 : i32, i32
  }
  func.func @transform_3(%arg0: i32, %arg1: memref<7xi32, #tpu.memory_space<smem>>) -> (i32, i32) {
    %c0_i32 = arith.constant 0 : i32
    %c0_i32_0 = arith.constant 0 : i32
    %c0_i32_1 = arith.constant 0 : i32
    return %c0_i32, %c0_i32_0 : i32, i32
  }
  func.func @transform_4(%arg0: i32, %arg1: memref<7xi32, #tpu.memory_space<smem>>) -> (i32, i32) {
    %c0_i32 = arith.constant 0 : i32
    %c0_i32_0 = arith.constant 0 : i32
    %c0_i32_1 = arith.constant 0 : i32
    return %c0_i32, %c0_i32_0 : i32, i32
  }
  func.func @transform_5(%arg0: i32, %arg1: memref<7xi32, #tpu.memory_space<smem>>) -> (i32, i32) {
    %c0_i32 = arith.constant 0 : i32
    %c0_i32_0 = arith.constant 0 : i32
    %c0_i32_1 = arith.constant 0 : i32
    return %c0_i32, %c0_i32_0 : i32, i32
  }
  func.func @transform_6(%arg0: i32, %arg1: memref<7xi32, #tpu.memory_space<smem>>) -> (i32, i32) {
    %c0_i32 = arith.constant 0 : i32
    %c0_i32_0 = arith.constant 0 : i32
    %c0_i32_1 = arith.constant 0 : i32
    return %c0_i32, %c0_i32_0 : i32, i32
  }
  func.func @transform_7(%arg0: i32, %arg1: memref<7xi32, #tpu.memory_space<smem>>) -> (i32, i32) {
    %c0_i32 = arith.constant 0 : i32
    %c0_i32_0 = arith.constant 0 : i32
    return %c0_i32, %arg0 : i32, i32
  }
}

</mosaic_0001>

<llo_original>
// kernel: mul.25
$region0: #{mul.25}
  #allocation4 [shape = 's32[1]{0}', space=sflag, size = 0x4, scoped, tag = 'scoped memory for mul.25']
  %s0 = inlined_call_operand.hbm [shape: f32[1,512], index: 0, kind: input, shape index: {}]
  %s1 = inlined_call_operand.hbm [shape: f32[1,512], index: 1, kind: input, shape index: {}]
  %s2 = inlined_call_operand.vmem [shape: f32[1,512], index: 2, kind: output, shape index: {}]
  $region1: #{mul.25} parent=0
    #allocation0 [shape = 'u8[2048]{0}', space=vmem, size = 0x800, scoped, tag = 'operand span for operand 0']
    #allocation1 [shape = 's32[1]{0}', space=sflag, size = 0x4, scoped, tag = 'scoped memory for mul.25']
    #allocation2 [shape = 'u8[2048]{0}', space=vmem, size = 0x800, scoped, tag = 'operand span for operand 1']
    #allocation3 [shape = 's32[1]{0}', space=sflag, size = 0x4, scoped, tag = 'scoped memory for mul.25']
    %3 = vsyncpa [#allocation1], 0
    %4 = vsyncpa [#allocation3], 0
    %s6 = ssub.s32 64, 64
    %7 = vsyncadd [#allocation1], %s6
    %s9 = sshll.u32 [#allocation0], 4
    %s10 = int_to_ptr.vmem [resolvable:$true] %s9
    %12 = dma.hbm_to_vmem [thread:$0]  %s0, 64, %s10, [#allocation1]
    %s14 = ssub.s32 64, 64
    %15 = vsyncadd [#allocation3], %s14
    %s17 = sshll.u32 [#allocation2], 4
    %s18 = int_to_ptr.vmem [resolvable:$true] %s17
    %20 = dma.hbm_to_vmem [thread:$0]  %s1, 64, %s18, [#allocation3]
    %21 = dma.done [#allocation1], 64
    %22 = dma.done [#allocation3], 64
    %v23 = vld [vmem:[#allocation0] sm:$0x1]
    %v24 = vld [vmem:[#allocation2] sm:$0x1]
    %25 = xla_tuple %v23, %v24
    %26 = xla_tuple %25
    %v27 = vmul.f32 %v23, %v24
    %28 = xla_tuple %v27
    %29 = vst [vmem:[%s2] sm:$0x1] %v27
    %s30 = scalar_lea.vmem [#allocation0], 1
    %v31 = vld [vmem:[%s30] sm:$0x1]
    %s32 = scalar_lea.vmem [#allocation2], 1
    %v33 = vld [vmem:[%s32] sm:$0x1]
    %34 = xla_tuple %v31, %v33
    %35 = xla_tuple %34
    %v36 = vmul.f32 %v31, %v33
    %37 = xla_tuple %v36
    %s38 = scalar_lea.vmem %s2, 1
    %39 = vst [vmem:[%s38] sm:$0x1] %v36
    %s40 = scalar_lea.vmem [#allocation0], 2
    %v41 = vld [vmem:[%s40] sm:$0x1]
    %s42 = scalar_lea.vmem [#allocation2], 2
    %v43 = vld [vmem:[%s42] sm:$0x1]
    %44 = xla_tuple %v41, %v43
    %45 = xla_tuple %44
    %v46 = vmul.f32 %v41, %v43
    %47 = xla_tuple %v46
    %s48 = scalar_lea.vmem %s2, 2
    %49 = vst [vmem:[%s48] sm:$0x1] %v46
    %s50 = scalar_lea.vmem [#allocation0], 3
    %v51 = vld [vmem:[%s50] sm:$0x1]
    %s52 = scalar_lea.vmem [#allocation2], 3
    %v53 = vld [vmem:[%s52] sm:$0x1]
    %54 = xla_tuple %v51, %v53
    %55 = xla_tuple %54
    %v56 = vmul.f32 %v51, %v53
    %57 = xla_tuple %v56
    %s58 = scalar_lea.vmem %s2, 3
    %59 = vst [vmem:[%s58] sm:$0x1] %v56
    %60 = vsyncpa [#allocation1], 1
    %61 = vsyncpa [#allocation3], 1

// kernel: decoder_lstm_forward.1
$region0: #{decoder_lstm_forward.1}
  #allocation0 [shape = 'u32[]', space=smem, size = 0x4, offset = 0x4, fixed_abs, tag = 'smem constant byte address 0x4 - core index']
  #allocation1 [shape = 'u32[144,128]{1,0:T(1,128)}', space=vmem, size = 0x12000, scoped, tag = 'internal scratch']
  #allocation2 [shape = 'f32[1,128]{1,0:T(1,128)}', space=vmem, size = 0x200, scoped, tag = 'scratch operand']
  #allocation3 [shape = 'f32[1,128]{1,0:T(1,128)}', space=vmem, size = 0x200, scoped, tag = 'scratch operand']
  #allocation4 [shape = 'bf16[128,64]{1,0:T(16,128)(2,1)}', space=vmem, size = 0x8000, scoped, tag = 'scratch operand']
  #allocation5 [shape = 'f32[128,512]{1,0:T(8,128)}', space=vmem, size = 0x40000, scoped, tag = 'scratch operand']
  #allocation6 [shape = 'f32[128,128]{1,0:T(8,128)}', space=vmem, size = 0x10000, scoped, tag = 'scratch operand']
  #allocation7 [shape = 's32[1]{0}', space=sflag, size = 0x4, scoped, tag = 'scoped memory for decoder_lstm_forward.1']
  #allocation8 [shape = 'u8[512]{0}', space=smem, size = 0x200, scoped, tag = 'prefetched SMEM operand 0']
  %s0 = inlined_call_operand.vmem [shape: s32[7], index: 0, kind: input, shape index: {}]
  %s1 = inlined_call_operand.vmem [shape: f32[6,128,512], index: 1, kind: input, shape index: {}]
  %s2 = inlined_call_operand.vmem [shape: f32[128,512], index: 2, kind: input, shape index: {}]
  %s3 = inlined_call_operand.vmem [shape: bf16[128,64], index: 3, kind: input, shape index: {}]
  %s4 = inlined_call_operand.vmem [shape: bf16[64,512], index: 4, kind: input, shape index: {}]
  %s5 = inlined_call_operand.vmem [shape: bf16[128,512], index: 5, kind: input, shape index: {}]
  %s6 = inlined_call_operand.vmem [shape: bf16[128,128], index: 6, kind: input, shape index: {}]
  %s7 = inlined_call_operand.vmem [shape: f32[1,128], index: 7, kind: input, shape index: {}]
  %s8 = inlined_call_operand.vmem [shape: f32[128,768], index: 8, kind: output, shape index: {}]
  %s9 = sld [smem:[#allocation0]]
  $region118: #{decoder_lstm_forward.1} parent=0
    _
  %s11 = ssub.s32 1, %s9
  %s12 = scalar_select 0, %s11, %s9
  %s13 = sshll.u32 %s0, 4
  %s14 = int_to_ptr.vmem [resolvable:$true] %s13
  %16 = dma.vmem_to_smem %s14, 16, [#allocation8], [#allocation7]
  %17 = dma.done [#allocation7], 16
  %18 = sfence
  $region1: #{decoder_lstm_forward.1} parent=0
    #allocation9 [shape = 'u8[131072]{0}', space=vmem, size = 0x20000, scoped, tag = 'output window, operand 0']
    loop: start=0, step=1, limit=8
    $region2: #{decoder_lstm_forward.1} parent=1 // loop_pre_header
      _
    $region3: #{decoder_lstm_forward.1} parent=1 // loop_header
      %s20 = sphi 0, %s24
      %p21 = scmp.ge.s32.totalorder %s20, 8
      %s30 = sphi 0, %s32
      %s33 = sphi 0, %s30
      %s34 = sphi 0, %s33
      %s50 = sphi 0, %s34
      %s54 = sphi 0, %s54
      %s56 = sphi 0, %s54
      %s57 = sphi 0, %s56
      %s71 = sphi 0, %s57
      %s75 = sphi 0, %s75
      %s77 = sphi 0, %s75
      %s78 = sphi 0, %s77
      %s92 = sphi 0, %s78
      %s96 = sphi 0, %s96
      %s98 = sphi 0, %s96
      %s99 = sphi 0, %s98
      %s113 = sphi 0, %s99
      %s117 = sphi 0, %s117
      %s119 = sphi 0, %s117
      %s120 = sphi 0, %s119
      %s134 = sphi 0, %s120
      %s138 = sphi 0, %s138
      %s140 = sphi 0, %s138
      %s141 = sphi 0, %s140
      %s155 = sphi 0, %s141
      %s159 = sphi 0, %s159
      %s161 = sphi 0, %s159
      %s162 = sphi 0, %s161
      %s176 = sphi 0, %s162
      %s182 = sphi 0, %s184
      %s185 = sphi 0, %s182
      %s186 = sphi 0, %s185
      %s202 = sphi 0, %s186
    $region4: #{decoder_lstm_forward.1} parent=1 // loop_header_branch
      %23 = sbr.rel (%p21) target = $region8
    $region5: #{decoder_lstm_forward.1} parent=1 // loop_body
      %s25 = ssub.s32 %s20, 1
      %s26 = ssub.s32 %s20, 2
      %s27 = sadd.s32 %s20, 1
      %s28 = ssub.s32 %s20, %s27
      %p29 = scmp.eq.s32.totalorder %s28, 0
      %s31 = sadd.s32 %s30, 1
      %s32 = scalar_select %p29, %s30, %s31
      %p35 = pneg %p29
      %p36 = scmp.eq.s32.totalorder %s20, 5
      %p37 = por %p35, %p36
      %p38 = scmp.ne.s32.totalorder %s30, %s33
      %p39 = scmp.eq.s32.totalorder %s20, 0
      %p40 = por %p38, %p39
      %p41 = scmp.ne.s32.totalorder %s30, %s33
      %p42 = scmp.eq.s32.totalorder %s25, 5
      %p43 = por %p41, %p42
      %p44 = scmp.ne.s32.totalorder %s33, %s34
      %p45 = scmp.eq.s32.totalorder %s25, 0
      %p46 = por %p44, %p45
      %p47 = scmp.ne.s32.totalorder %s33, %s34
      %p48 = scmp.eq.s32.totalorder %s26, 5
      %p49 = por %p47, %p48
      %p51 = scmp.ne.s32.totalorder %s34, %s50
      %p52 = scmp.eq.s32.totalorder %s26, 0
      %p53 = por %p51, %p52
      %s55 = sadd.s32 %s54, 1
      %p58 = scmp.eq.s32.totalorder %s20, 5
      %p59 = scmp.ne.s32.totalorder %s54, %s56
      %p60 = scmp.eq.s32.totalorder %s20, 0
      %p61 = por %p59, %p60
      %p62 = scmp.ne.s32.totalorder %s54, %s56
      %p63 = scmp.eq.s32.totalorder %s25, 5
      %p64 = por %p62, %p63
      %p65 = scmp.ne.s32.totalorder %s56, %s57
      %p66 = scmp.eq.s32.totalorder %s25, 0
      %p67 = por %p65, %p66
      %p68 = scmp.ne.s32.totalorder %s56, %s57
      %p69 = scmp.eq.s32.totalorder %s26, 5
      %p70 = por %p68, %p69
      %p72 = scmp.ne.s32.totalorder %s57, %s71
      %p73 = scmp.eq.s32.totalorder %s26, 0
      %p74 = por %p72, %p73
      %s76 = sadd.s32 %s75, 1
      %p79 = scmp.eq.s32.totalorder %s20, 5
      %p80 = scmp.ne.s32.totalorder %s75, %s77
      %p81 = scmp.eq.s32.totalorder %s20, 0
      %p82 = por %p80, %p81
      %p83 = scmp.ne.s32.totalorder %s75, %s77
      %p84 = scmp.eq.s32.totalorder %s25, 5
      %p85 = por %p83, %p84
      %p86 = scmp.ne.s32.totalorder %s77, %s78
      %p87 = scmp.eq.s32.totalorder %s25, 0
      %p88 = por %p86, %p87
      %p89 = scmp.ne.s32.totalorder %s77, %s78
      %p90 = scmp.eq.s32.totalorder %s26, 5
      %p91 = por %p89, %p90
      %p93 = scmp.ne.s32.totalorder %s78, %s92
      %p94 = scmp.eq.s32.totalorder %s26, 0
      %p95 = por %p93, %p94
      %s97 = sadd.s32 %s96, 1
      %p100 = scmp.eq.s32.totalorder %s20, 5
      %p101 = scmp.ne.s32.totalorder %s96, %s98
      %p102 = scmp.eq.s32.totalorder %s20, 0
      %p103 = por %p101, %p102
      %p104 = scmp.ne.s32.totalorder %s96, %s98
      %p105 = scmp.eq.s32.totalorder %s25, 5
      %p106 = por %p104, %p105
      %p107 = scmp.ne.s32.totalorder %s98, %s99
      %p108 = scmp.eq.s32.totalorder %s25, 0
      %p109 = por %p107, %p108
      %p110 = scmp.ne.s32.totalorder %s98, %s99
      %p111 = scmp.eq.s32.totalorder %s26, 5
      %p112 = por %p110, %p111
      %p114 = scmp.ne.s32.totalorder %s99, %s113
      %p115 = scmp.eq.s32.totalorder %s26, 0
      %p116 = por %p114, %p115
      %s118 = sadd.s32 %s117, 1
      %p121 = scmp.eq.s32.totalorder %s20, 5
      %p122 = scmp.ne.s32.totalorder %s117, %s119
      %p123 = scmp.eq.s32.totalorder %s20, 0
      %p124 = por %p122, %p123
      %p125 = scmp.ne.s32.totalorder %s117, %s119
      %p126 = scmp.eq.s32.totalorder %s25, 5
      %p127 = por %p125, %p126
      %p128 = scmp.ne.s32.totalorder %s119, %s120
      %p129 = scmp.eq.s32.totalorder %s25, 0
      %p130 = por %p128, %p129
      %p131 = scmp.ne.s32.totalorder %s119, %s120
      %p132 = scmp.eq.s32.totalorder %s26, 5
      %p133 = por %p131, %p132
      %p135 = scmp.ne.s32.totalorder %s120, %s134
      %p136 = scmp.eq.s32.totalorder %s26, 0
      %p137 = por %p135, %p136
      %s139 = sadd.s32 %s138, 1
      %p142 = scmp.eq.s32.totalorder %s20, 5
      %p143 = scmp.ne.s32.totalorder %s138, %s140
      %p144 = scmp.eq.s32.totalorder %s20, 0
      %p145 = por %p143, %p144
      %p146 = scmp.ne.s32.totalorder %s138, %s140
      %p147 = scmp.eq.s32.totalorder %s25, 5
      %p148 = por %p146, %p147
      %p149 = scmp.ne.s32.totalorder %s140, %s141
      %p150 = scmp.eq.s32.totalorder %s25, 0
      %p151 = por %p149, %p150
      %p152 = scmp.ne.s32.totalorder %s140, %s141
      %p153 = scmp.eq.s32.totalorder %s26, 5
      %p154 = por %p152, %p153
      %p156 = scmp.ne.s32.totalorder %s141, %s155
      %p157 = scmp.eq.s32.totalorder %s26, 0
      %p158 = por %p156, %p157
      %s160 = sadd.s32 %s159, 1
      %p163 = scmp.eq.s32.totalorder %s20, 5
      %p164 = scmp.ne.s32.totalorder %s159, %s161
      %p165 = scmp.eq.s32.totalorder %s20, 0
      %p166 = por %p164, %p165
      %p167 = scmp.ne.s32.totalorder %s159, %s161
      %p168 = scmp.eq.s32.totalorder %s25, 5
      %p169 = por %p167, %p168
      %p170 = scmp.ne.s32.totalorder %s161, %s162
      %p171 = scmp.eq.s32.totalorder %s25, 0
      %p172 = por %p170, %p171
      %p173 = scmp.ne.s32.totalorder %s161, %s162
      %p174 = scmp.eq.s32.totalorder %s26, 5
      %p175 = por %p173, %p174
      %p177 = scmp.ne.s32.totalorder %s162, %s176
      %p178 = scmp.eq.s32.totalorder %s26, 0
      %p179 = por %p177, %p178
      %s180 = ssub.s32 %s20, %s27
      %p181 = scmp.eq.s32.totalorder %s180, 0
      %s183 = sadd.s32 %s182, 1
      %s184 = scalar_select %p181, %s182, %s183
      %p187 = pneg %p181
      %p188 = scmp.eq.s32.totalorder %s20, 5
      %p189 = por %p187, %p188
      %p190 = scmp.ne.s32.totalorder %s182, %s185
      %p191 = scmp.eq.s32.totalorder %s20, 0
      %p192 = por %p190, %p191
      %p193 = scmp.ne.s32.totalorder %s182, %s185
      %p194 = scmp.eq.s32.totalorder %s25, 5
      %p195 = por %p193, %p194
      %p196 = scmp.ne.s32.totalorder %s185, %s186
      %p197 = scmp.eq.s32.totalorder %s25, 0
      %p198 = por %p196, %p197
      %p199 = scmp.ne.s32.totalorder %s185, %s186
      %p200 = scmp.eq.s32.totalorder %s26, 5
      %p201 = por %p199, %p200
      %p203 = scmp.ne.s32.totalorder %s186, %s202
      %p204 = scmp.eq.s32.totalorder %s26, 0
      %p205 = por %p203, %p204
      %p206 = scmp.le.s32.totalorder 1, %s20
      %p207 = scmp.lt.s32.totalorder %s20, 7
      %p208 = pnand %p206, %p207
      %p209 = pneg %p208
      // Predicated region
      $region9: #{decoder_lstm_forward.1} parent=5 // pred_check
        _
      $region10: #{decoder_lstm_forward.1} parent=5 // pred_check_branch
        %211 = sbr.rel (%p208) target = $region12
      $region11: #{decoder_lstm_forward.1} parent=5 // pred_region
        %s212 = ssub.s32 %s20, 1
        // Predicated region
        $region13: #{decoder_lstm_forward.1} parent=11 // pred_check
          %p213 = pneg %p67
        $region14: #{decoder_lstm_forward.1} parent=11 // pred_check_branch
          %215 = sbr.rel (%p213) target = $region16
        $region15: #{decoder_lstm_forward.1} parent=11 // pred_region
          _
        $region16: #{decoder_lstm_forward.1} parent=11 // pred_fallthru
          _
        // Predicated region
        $region17: #{decoder_lstm_forward.1} parent=11 // pred_check
          %p216 = pneg %p88
        $region18: #{decoder_lstm_forward.1} parent=11 // pred_check_branch
          %218 = sbr.rel (%p216) target = $region20
        $region19: #{decoder_lstm_forward.1} parent=11 // pred_region
          _
        $region20: #{decoder_lstm_forward.1} parent=11 // pred_fallthru
          _
        // Predicated region
        $region21: #{decoder_lstm_forward.1} parent=11 // pred_check
          %p219 = pneg %p109
        $region22: #{decoder_lstm_forward.1} parent=11 // pred_check_branch
          %221 = sbr.rel (%p219) target = $region24
        $region23: #{decoder_lstm_forward.1} parent=11 // pred_region
          _
        $region24: #{decoder_lstm_forward.1} parent=11 // pred_fallthru
          _
        // Predicated region
        $region25: #{decoder_lstm_forward.1} parent=11 // pred_check
          %p222 = pneg %p130
        $region26: #{decoder_lstm_forward.1} parent=11 // pred_check_branch
          %224 = sbr.rel (%p222) target = $region28
        $region27: #{decoder_lstm_forward.1} parent=11 // pred_region
          _
        $region28: #{decoder_lstm_forward.1} parent=11 // pred_fallthru
          _
        // Predicated region
        $region29: #{decoder_lstm_forward.1} parent=11 // pred_check
          %p225 = pneg %p151
        $region30: #{decoder_lstm_forward.1} parent=11 // pred_check_branch
          %227 = sbr.rel (%p225) target = $region32
        $region31: #{decoder_lstm_forward.1} parent=11 // pred_region
          _
        $region32: #{decoder_lstm_forward.1} parent=11 // pred_fallthru
          _
        // Predicated region
        $region33: #{decoder_lstm_forward.1} parent=11 // pred_check
          %p228 = pneg %p172
        $region34: #{decoder_lstm_forward.1} parent=11 // pred_check_branch
          %230 = sbr.rel (%p228) target = $region36
        $region35: #{decoder_lstm_forward.1} parent=11 // pred_region
          _
        $region36: #{decoder_lstm_forward.1} parent=11 // pred_fallthru
          _
      $region12: #{decoder_lstm_forward.1} parent=5 // pred_fallthru
        _
      %p231 = scmp.lt.s32.totalorder %s20, 6
      // Predicated region
      $region37: #{decoder_lstm_forward.1} parent=5 // pred_check
        %p232 = pneg %p231
      $region38: #{decoder_lstm_forward.1} parent=5 // pred_check_branch
        %234 = sbr.rel (%p232) target = $region40
      $region39: #{decoder_lstm_forward.1} parent=5 // pred_region
        // Predicated region
        $region41: #{decoder_lstm_forward.1} parent=39 // pred_check
          %p235 = pneg %p40
        $region42: #{decoder_lstm_forward.1} parent=39 // pred_check_branch
          %237 = sbr.rel (%p235) target = $region44
        $region43: #{decoder_lstm_forward.1} parent=39 // pred_region
          %p238 = scmp.lt.s32.totalorder %s20, 5
          %s239 = scalar_select %p238, %s20, 5
          %s240 = smul.addr %s239, 64
          %s241 = smul.addr %s240, 8
          %s242 = scalar_lea.vmem %s1, %s241
        $region44: #{decoder_lstm_forward.1} parent=39 // pred_fallthru
          _
      $region40: #{decoder_lstm_forward.1} parent=5 // pred_fallthru
        _
      %p243 = scmp.le.s32.totalorder 1, %s20
      %p244 = scmp.lt.s32.totalorder %s20, 7
      %p245 = pnand %p243, %p244
      %p246 = pneg %p245
      // Predicated region
      $region45: #{decoder_lstm_forward.1} parent=5 // pred_check
        _
      $region46: #{decoder_lstm_forward.1} parent=5 // pred_check_branch
        %248 = sbr.rel (%p245) target = $region48
      $region47: #{decoder_lstm_forward.1} parent=5 // pred_region
        %s249 = ssub.s32 %s20, 1
        %p250 = scmp.lt.s32.totalorder %s25, 5
        %s251 = scalar_select %p250, %s25, 5
        %s252 = smul.addr %s251, 64
        %s253 = smul.addr %s252, 8
        %s254 = scalar_lea.vmem %s1, %s253
        %p255 = pneg %p46
        %p256 = pneg %p43
        %p257 = pneg %p67
        %p258 = pneg %p64
        %p259 = pneg %p88
        %p260 = pneg %p85
        %p261 = pneg %p109
        %p262 = pneg %p106
        %p263 = pneg %p130
        %p264 = pneg %p127
        %p265 = pneg %p151
        %p266 = pneg %p148
        %p267 = pneg %p172
        %p268 = pneg %p169
        %p269 = pneg %p198
        %p270 = pneg %p195
        %s271 = sand.u32 %s185, 1
        %s272 = sand.u32 %s185, 1
        %s273 = smul.addr %s272, 128
        %s274 = scalar_lea.vmem [#allocation9], %s273
        %p275 = scmp.lt.s32.totalorder %s25, 5
        %s276 = scalar_select %p275, %s25, 5
        %s277 = smul.addr %s276, 64
        %s278 = smul.addr %s277, 8
        %s279 = scalar_lea.vmem %s1, %s278
        %p281 = scmp.eq.s32.totalorder %s25, 0
        // Predicated region
        $region49: #{decoder_lstm_forward.1} parent=47 // pred_check
          %p282 = pneg %p281
        $region50: #{decoder_lstm_forward.1} parent=47 // pred_check_branch
          %284 = sbr.rel (%p282) target = $region52
        $region51: #{decoder_lstm_forward.1} parent=47 // pred_region
          %285 = vst [vmem:[#allocation2] sm:$0x1] 0.0
          %286 = vst [vmem:[#allocation3] sm:$0x1] 0.0
          %v287 = vld [vmem:[%s3] sm:$0x1]
          %v289 = vpack.i.b16 %v287, %v287
          %v291 = vlaneseq
          %v292 = vshrl.u32 %v291, 7
          %v293 = vsub.s32 0, %v292
          %v294 = vrot.slane %v289, %v293
          %vm295 = vcmask 523264
          %296 = vst.msk [vmem:[#allocation4] sm:$0xff] %vm295, %v294
          %297 = vst.msk [vmem:[#allocation4 + $0x8] sm:$0xff] %vm295, %v294
          %298 = vst.msk [vmem:[#allocation4 + $0x10] sm:$0xff] %vm295, %v294
          %299 = vst.msk [vmem:[#allocation4 + $0x18] sm:$0xff] %vm295, %v294
          %300 = vst.msk [vmem:[#allocation4 + $0x20] sm:$0xff] %vm295, %v294
          %301 = vst.msk [vmem:[#allocation4 + $0x28] sm:$0xff] %vm295, %v294
          %302 = vst.msk [vmem:[#allocation4 + $0x30] sm:$0xff] %vm295, %v294
          %303 = vst.msk [vmem:[#allocation4 + $0x38] sm:$0xff] %vm295, %v294
        $region52: #{decoder_lstm_forward.1} parent=47 // pred_fallthru
          _
        %s304 = sld [smem:[#allocation8 + %s25]]
        %p305 = scmp.gt.s32.totalorder %s304, 0
        // Predicated region
        $region53: #{decoder_lstm_forward.1} parent=47 // pred_check
          %p306 = pneg %p305
        $region54: #{decoder_lstm_forward.1} parent=47 // pred_check_branch
          %308 = sbr.rel (%p306) target = $region56
        $region55: #{decoder_lstm_forward.1} parent=47 // pred_region
          %v309 = vld [vmem:[%s279] sm:$0xff]
          %v310 = vld [vmem:[%s279 + $0x8] sm:$0xff]
          %v311 = vld [vmem:[%s279 + $0x10] sm:$0xff]
          %v312 = vld [vmem:[%s279 + $0x18] sm:$0xff]
          %v313 = vld [vmem:[%s279 + $0x20] sm:$0xff]
          %v314 = vld [vmem:[%s279 + $0x28] sm:$0xff]
          %v315 = vld [vmem:[%s279 + $0x30] sm:$0xff]
          %v316 = vld [vmem:[%s279 + $0x38] sm:$0xff]
          %v317 = vld [vmem:[%s279 + $0x40] sm:$0xff]
          %v318 = vld [vmem:[%s279 + $0x48] sm:$0xff]
          %v319 = vld [vmem:[%s279 + $0x50] sm:$0xff]
          %v320 = vld [vmem:[%s279 + $0x58] sm:$0xff]
          %v321 = vld [vmem:[%s279 + $0x60] sm:$0xff]
          %v322 = vld [vmem:[%s279 + $0x68] sm:$0xff]
          %v323 = vld [vmem:[%s279 + $0x70] sm:$0xff]
          %v324 = vld [vmem:[%s279 + $0x78] sm:$0xff]
          %v325 = vld [vmem:[%s279 + $0x80] sm:$0xff]
          %v326 = vld [vmem:[%s279 + $0x88] sm:$0xff]
          %v327 = vld [vmem:[%s279 + $0x90] sm:$0xff]
          %v328 = vld [vmem:[%s279 + $0x98] sm:$0xff]
          %v329 = vld [vmem:[%s279 + $0xa0] sm:$0xff]
          %v330 = vld [vmem:[%s279 + $0xa8] sm:$0xff]
          %v331 = vld [vmem:[%s279 + $0xb0] sm:$0xff]
          %v332 = vld [vmem:[%s279 + $0xb8] sm:$0xff]
          %v333 = vld [vmem:[%s279 + $0xc0] sm:$0xff]
          %v334 = vld [vmem:[%s279 + $0xc8] sm:$0xff]
          %v335 = vld [vmem:[%s279 + $0xd0] sm:$0xff]
          %v336 = vld [vmem:[%s279 + $0xd8] sm:$0xff]
          %v337 = vld [vmem:[%s279 + $0xe0] sm:$0xff]
          %v338 = vld [vmem:[%s279 + $0xe8] sm:$0xff]
          %v339 = vld [vmem:[%s279 + $0xf0] sm:$0xff]
          %v340 = vld [vmem:[%s279 + $0xf8] sm:$0xff]
          %v341 = vld [vmem:[%s279 + $0x100] sm:$0xff]
          %v342 = vld [vmem:[%s279 + $0x108] sm:$0xff]
          %v343 = vld [vmem:[%s279 + $0x110] sm:$0xff]
          %v344 = vld [vmem:[%s279 + $0x118] sm:$0xff]
          %v345 = vld [vmem:[%s279 + $0x120] sm:$0xff]
          %v346 = vld [vmem:[%s279 + $0x128] sm:$0xff]
          %v347 = vld [vmem:[%s279 + $0x130] sm:$0xff]
          %v348 = vld [vmem:[%s279 + $0x138] sm:$0xff]
          %v349 = vld [vmem:[%s279 + $0x140] sm:$0xff]
          %v350 = vld [vmem:[%s279 + $0x148] sm:$0xff]
          %v351 = vld [vmem:[%s279 + $0x150] sm:$0xff]
          %v352 = vld [vmem:[%s279 + $0x158] sm:$0xff]
          %v353 = vld [vmem:[%s279 + $0x160] sm:$0xff]
          %v354 = vld [vmem:[%s279 + $0x168] sm:$0xff]
          %v355 = vld [vmem:[%s279 + $0x170] sm:$0xff]
          %v356 = vld [vmem:[%s279 + $0x178] sm:$0xff]
          %v357 = vld [vmem:[%s279 + $0x180] sm:$0xff]
          %v358 = vld [vmem:[%s279 + $0x188] sm:$0xff]
          %v359 = vld [vmem:[%s279 + $0x190] sm:$0xff]
          %v360 = vld [vmem:[%s279 + $0x198] sm:$0xff]
          %v361 = vld [vmem:[%s279 + $0x1a0] sm:$0xff]
          %v362 = vld [vmem:[%s279 + $0x1a8] sm:$0xff]
          %v363 = vld [vmem:[%s279 + $0x1b0] sm:$0xff]
          %v364 = vld [vmem:[%s279 + $0x1b8] sm:$0xff]
          %v365 = vld [vmem:[%s279 + $0x1c0] sm:$0xff]
          %v366 = vld [vmem:[%s279 + $0x1c8] sm:$0xff]
          %v367 = vld [vmem:[%s279 + $0x1d0] sm:$0xff]
          %v368 = vld [vmem:[%s279 + $0x1d8] sm:$0xff]
          %v369 = vld [vmem:[%s279 + $0x1e0] sm:$0xff]
          %v370 = vld [vmem:[%s279 + $0x1e8] sm:$0xff]
          %v371 = vld [vmem:[%s279 + $0x1f0] sm:$0xff]
          %v372 = vld [vmem:[%s279 + $0x1f8] sm:$0xff]
          %373 = vst [vmem:[#allocation5] sm:$0xff] %v309
          %374 = vst [vmem:[#allocation5 + $0x8] sm:$0xff] %v310
          %375 = vst [vmem:[#allocation5 + $0x10] sm:$0xff] %v311
          %376 = vst [vmem:[#allocation5 + $0x18] sm:$0xff] %v312
          %377 = vst [vmem:[#allocation5 + $0x20] sm:$0xff] %v313
          %378 = vst [vmem:[#allocation5 + $0x28] sm:$0xff] %v314
          %379 = vst [vmem:[#allocation5 + $0x30] sm:$0xff] %v315
          %380 = vst [vmem:[#allocation5 + $0x38] sm:$0xff] %v316
          %381 = vst [vmem:[#allocation5 + $0x40] sm:$0xff] %v317
          %382 = vst [vmem:[#allocation5 + $0x48] sm:$0xff] %v318
          %383 = vst [vmem:[#allocation5 + $0x50] sm:$0xff] %v319
          %384 = vst [vmem:[#allocation5 + $0x58] sm:$0xff] %v320
          %385 = vst [vmem:[#allocation5 + $0x60] sm:$0xff] %v321
          %386 = vst [vmem:[#allocation5 + $0x68] sm:$0xff] %v322
          %387 = vst [vmem:[#allocation5 + $0x70] sm:$0xff] %v323
          %388 = vst [vmem:[#allocation5 + $0x78] sm:$0xff] %v324
          %389 = vst [vmem:[#allocation5 + $0x80] sm:$0xff] %v325
          %390 = vst [vmem:[#allocation5 + $0x88] sm:$0xff] %v326
          %391 = vst [vmem:[#allocation5 + $0x90] sm:$0xff] %v327
          %392 = vst [vmem:[#allocation5 + $0x98] sm:$0xff] %v328
          %393 = vst [vmem:[#allocation5 + $0xa0] sm:$0xff] %v329
          %394 = vst [vmem:[#allocation5 + $0xa8] sm:$0xff] %v330
          %395 = vst [vmem:[#allocation5 + $0xb0] sm:$0xff] %v331
          %396 = vst [vmem:[#allocation5 + $0xb8] sm:$0xff] %v332
          %397 = vst [vmem:[#allocation5 + $0xc0] sm:$0xff] %v333
          %398 = vst [vmem:[#allocation5 + $0xc8] sm:$0xff] %v334
          %399 = vst [vmem:[#allocation5 + $0xd0] sm:$0xff] %v335
          %400 = vst [vmem:[#allocation5 + $0xd8] sm:$0xff] %v336
          %401 = vst [vmem:[#allocation5 + $0xe0] sm:$0xff] %v337
          %402 = vst [vmem:[#allocation5 + $0xe8] sm:$0xff] %v338
          %403 = vst [vmem:[#allocation5 + $0xf0] sm:$0xff] %v339
          %404 = vst [vmem:[#allocation5 + $0xf8] sm:$0xff] %v340
          %405 = vst [vmem:[#allocation5 + $0x100] sm:$0xff] %v341
          %406 = vst [vmem:[#allocation5 + $0x108] sm:$0xff] %v342
          %407 = vst [vmem:[#allocation5 + $0x110] sm:$0xff] %v343
          %408 = vst [vmem:[#allocation5 + $0x118] sm:$0xff] %v344
          %409 = vst [vmem:[#allocation5 + $0x120] sm:$0xff] %v345
          %410 = vst [vmem:[#allocation5 + $0x128] sm:$0xff] %v346
          %411 = vst [vmem:[#allocation5 + $0x130] sm:$0xff] %v347
          %412 = vst [vmem:[#allocation5 + $0x138] sm:$0xff] %v348
          %413 = vst [vmem:[#allocation5 + $0x140] sm:$0xff] %v349
          %414 = vst [vmem:[#allocation5 + $0x148] sm:$0xff] %v350
          %415 = vst [vmem:[#allocation5 + $0x150] sm:$0xff] %v351
          %416 = vst [vmem:[#allocation5 + $0x158] sm:$0xff] %v352
          %417 = vst [vmem:[#allocation5 + $0x160] sm:$0xff] %v353
          %418 = vst [vmem:[#allocation5 + $0x168] sm:$0xff] %v354
          %419 = vst [vmem:[#allocation5 + $0x170] sm:$0xff] %v355
          %420 = vst [vmem:[#allocation5 + $0x178] sm:$0xff] %v356
          %421 = vst [vmem:[#allocation5 + $0x180] sm:$0xff] %v357
          %422 = vst [vmem:[#allocation5 + $0x188] sm:$0xff] %v358
          %423 = vst [vmem:[#allocation5 + $0x190] sm:$0xff] %v359
          %424 = vst [vmem:[#allocation5 + $0x198] sm:$0xff] %v360
          %425 = vst [vmem:[#allocation5 + $0x1a0] sm:$0xff] %v361
          %426 = vst [vmem:[#allocation5 + $0x1a8] sm:$0xff] %v362
          %427 = vst [vmem:[#allocation5 + $0x1b0] sm:$0xff] %v363
          %428 = vst [vmem:[#allocation5 + $0x1b8] sm:$0xff] %v364
          %429 = vst [vmem:[#allocation5 + $0x1c0] sm:$0xff] %v365
          %430 = vst [vmem:[#allocation5 + $0x1c8] sm:$0xff] %v366
          %431 = vst [vmem:[#allocation5 + $0x1d0] sm:$0xff] %v367
          %432 = vst [vmem:[#allocation5 + $0x1d8] sm:$0xff] %v368
          %433 = vst [vmem:[#allocation5 + $0x1e0] sm:$0xff] %v369
          %434 = vst [vmem:[#allocation5 + $0x1e8] sm:$0xff] %v370
          %435 = vst [vmem:[#allocation5 + $0x1f0] sm:$0xff] %v371
          %436 = vst [vmem:[#allocation5 + $0x1f8] sm:$0xff] %v372
        $region56: #{decoder_lstm_forward.1} parent=47 // pred_fallthru
          _
        %p437 = scmp.le.s32.totalorder %s304, 0
        // Predicated region
        $region57: #{decoder_lstm_forward.1} parent=47 // pred_check
          %p438 = pneg %p437
        $region58: #{decoder_lstm_forward.1} parent=47 // pred_check_branch
          %440 = sbr.rel (%p438) target = $region60
        $region59: #{decoder_lstm_forward.1} parent=47 // pred_region
          %v441 = vld [vmem:[%s2] sm:$0xff]
          %v442 = vld [vmem:[%s2 + $0x8] sm:$0xff]
          %v443 = vld [vmem:[%s2 + $0x10] sm:$0xff]
          %v444 = vld [vmem:[%s2 + $0x18] sm:$0xff]
          %v445 = vld [vmem:[%s2 + $0x20] sm:$0xff]
          %v446 = vld [vmem:[%s2 + $0x28] sm:$0xff]
          %v447 = vld [vmem:[%s2 + $0x30] sm:$0xff]
          %v448 = vld [vmem:[%s2 + $0x38] sm:$0xff]
          %v449 = vld [vmem:[%s2 + $0x40] sm:$0xff]
          %v450 = vld [vmem:[%s2 + $0x48] sm:$0xff]
          %v451 = vld [vmem:[%s2 + $0x50] sm:$0xff]
          %v452 = vld [vmem:[%s2 + $0x58] sm:$0xff]
          %v453 = vld [vmem:[%s2 + $0x60] sm:$0xff]
          %v454 = vld [vmem:[%s2 + $0x68] sm:$0xff]
          %v455 = vld [vmem:[%s2 + $0x70] sm:$0xff]
          %v456 = vld [vmem:[%s2 + $0x78] sm:$0xff]
          %v457 = vld [vmem:[%s2 + $0x80] sm:$0xff]
          %v458 = vld [vmem:[%s2 + $0x88] sm:$0xff]
          %v459 = vld [vmem:[%s2 + $0x90] sm:$0xff]
          %v460 = vld [vmem:[%s2 + $0x98] sm:$0xff]
          %v461 = vld [vmem:[%s2 + $0xa0] sm:$0xff]
          %v462 = vld [vmem:[%s2 + $0xa8] sm:$0xff]
          %v463 = vld [vmem:[%s2 + $0xb0] sm:$0xff]
          %v464 = vld [vmem:[%s2 + $0xb8] sm:$0xff]
          %v465 = vld [vmem:[%s2 + $0xc0] sm:$0xff]
          %v466 = vld [vmem:[%s2 + $0xc8] sm:$0xff]
          %v467 = vld [vmem:[%s2 + $0xd0] sm:$0xff]
          %v468 = vld [vmem:[%s2 + $0xd8] sm:$0xff]
          %v469 = vld [vmem:[%s2 + $0xe0] sm:$0xff]
          %v470 = vld [vmem:[%s2 + $0xe8] sm:$0xff]
          %v471 = vld [vmem:[%s2 + $0xf0] sm:$0xff]
          %v472 = vld [vmem:[%s2 + $0xf8] sm:$0xff]
          %v473 = vld [vmem:[%s2 + $0x100] sm:$0xff]
          %v474 = vld [vmem:[%s2 + $0x108] sm:$0xff]
          %v475 = vld [vmem:[%s2 + $0x110] sm:$0xff]
          %v476 = vld [vmem:[%s2 + $0x118] sm:$0xff]
          %v477 = vld [vmem:[%s2 + $0x120] sm:$0xff]
          %v478 = vld [vmem:[%s2 + $0x128] sm:$0xff]
          %v479 = vld [vmem:[%s2 + $0x130] sm:$0xff]
          %v480 = vld [vmem:[%s2 + $0x138] sm:$0xff]
          %v481 = vld [vmem:[%s2 + $0x140] sm:$0xff]
          %v482 = vld [vmem:[%s2 + $0x148] sm:$0xff]
          %v483 = vld [vmem:[%s2 + $0x150] sm:$0xff]
          %v484 = vld [vmem:[%s2 + $0x158] sm:$0xff]
          %v485 = vld [vmem:[%s2 + $0x160] sm:$0xff]
          %v486 = vld [vmem:[%s2 + $0x168] sm:$0xff]
          %v487 = vld [vmem:[%s2 + $0x170] sm:$0xff]
          %v488 = vld [vmem:[%s2 + $0x178] sm:$0xff]
          %v489 = vld [vmem:[%s2 + $0x180] sm:$0xff]
          %v490 = vld [vmem:[%s2 + $0x188] sm:$0xff]
          %v491 = vld [vmem:[%s2 + $0x190] sm:$0xff]
          %v492 = vld [vmem:[%s2 + $0x198] sm:$0xff]
          %v493 = vld [vmem:[%s2 + $0x1a0] sm:$0xff]
          %v494 = vld [vmem:[%s2 + $0x1a8] sm:$0xff]
          %v495 = vld [vmem:[%s2 + $0x1b0] sm:$0xff]
          %v496 = vld [vmem:[%s2 + $0x1b8] sm:$0xff]
          %v497 = vld [vmem:[%s2 + $0x1c0] sm:$0xff]
          %v498 = vld [vmem:[%s2 + $0x1c8] sm:$0xff]
          %v499 = vld [vmem:[%s2 + $0x1d0] sm:$0xff]
          %v500 = vld [vmem:[%s2 + $0x1d8] sm:$0xff]
          %v501 = vld [vmem:[%s2 + $0x1e0] sm:$0xff]
          %v502 = vld [vmem:[%s2 + $0x1e8] sm:$0xff]
          %v503 = vld [vmem:[%s2 + $0x1f0] sm:$0xff]
          %v504 = vld [vmem:[%s2 + $0x1f8] sm:$0xff]
          %v505 = vld [vmem:[#allocation4] sm:$0xff]
          %v506 = vld [vmem:[#allocation4 + $0x8] sm:$0xff]
          %v507 = vld [vmem:[#allocation4 + $0x10] sm:$0xff]
          %v508 = vld [vmem:[#allocation4 + $0x18] sm:$0xff]
          %v509 = vld [vmem:[#allocation4 + $0x20] sm:$0xff]
          %v510 = vld [vmem:[#allocation4 + $0x28] sm:$0xff]
          %v511 = vld [vmem:[#allocation4 + $0x30] sm:$0xff]
          %v512 = vld [vmem:[#allocation4 + $0x38] sm:$0xff]
          %v513 = vld [vmem:[%s4] sm:$0xff]
          %v514 = vld [vmem:[%s4 + $0x8] sm:$0xff]
          %v515 = vld [vmem:[%s4 + $0x10] sm:$0xff]
          %v516 = vld [vmem:[%s4 + $0x18] sm:$0xff]
          %v517 = vld [vmem:[%s4 + $0x20] sm:$0xff]
          %v518 = vld [vmem:[%s4 + $0x28] sm:$0xff]
          %v519 = vld [vmem:[%s4 + $0x30] sm:$0xff]
          %v520 = vld [vmem:[%s4 + $0x38] sm:$0xff]
          %v521 = vld [vmem:[%s4 + $0x40] sm:$0xff]
          %v522 = vld [vmem:[%s4 + $0x48] sm:$0xff]
          %v523 = vld [vmem:[%s4 + $0x50] sm:$0xff]
          %v524 = vld [vmem:[%s4 + $0x58] sm:$0xff]
          %v525 = vld [vmem:[%s4 + $0x60] sm:$0xff]
          %v526 = vld [vmem:[%s4 + $0x68] sm:$0xff]
          %v527 = vld [vmem:[%s4 + $0x70] sm:$0xff]
          %v528 = vld [vmem:[%s4 + $0x78] sm:$0xff]
          %v545 = vunpack.c.l.b16 %v513
          %v546 = vunpack.c.h.b16 %v513
          %v547 = vunpack.c.l.b16 %v514
          %v548 = vunpack.c.h.b16 %v514
          %v549 = vunpack.c.l.b16 %v515
          %v550 = vunpack.c.h.b16 %v515
          %v551 = vunpack.c.l.b16 %v516
          %v552 = vunpack.c.h.b16 %v516
          %v553 = vunpack.c.l.b16 %v517
          %v554 = vunpack.c.h.b16 %v517
          %v555 = vunpack.c.l.b16 %v518
          %v556 = vunpack.c.h.b16 %v518
          %v557 = vunpack.c.l.b16 %v519
          %v558 = vunpack.c.h.b16 %v519
          %v559 = vunpack.c.l.b16 %v520
          %v560 = vunpack.c.h.b16 %v520
          %v561 = vunpack.c.l.b16 %v521
          %v562 = vunpack.c.h.b16 %v521
          %v563 = vunpack.c.l.b16 %v522
          %v564 = vunpack.c.h.b16 %v522
          %v565 = vunpack.c.l.b16 %v523
          %v566 = vunpack.c.h.b16 %v523
          %v567 = vunpack.c.l.b16 %v524
          %v568 = vunpack.c.h.b16 %v524
          %v569 = vunpack.c.l.b16 %v525
          %v570 = vunpack.c.h.b16 %v525
          %v571 = vunpack.c.l.b16 %v526
          %v572 = vunpack.c.h.b16 %v526
          %v573 = vunpack.c.l.b16 %v527
          %v574 = vunpack.c.h.b16 %v527
          %v575 = vunpack.c.l.b16 %v528
          %v576 = vunpack.c.h.b16 %v528
          %v577 = vpack.c.b16 %v549, %v545
          %v578 = vpack.c.b16 %v550, %v546
          %v579 = vpack.c.b16 %v551, %v547
          %v580 = vpack.c.b16 %v552, %v548
          %v581 = vpack.c.b16 %v557, %v553
          %v582 = vpack.c.b16 %v558, %v554
          %v583 = vpack.c.b16 %v559, %v555
          %v584 = vpack.c.b16 %v560, %v556
          %v585 = vpack.c.b16 %v565, %v561
          %v586 = vpack.c.b16 %v566, %v562
          %v587 = vpack.c.b16 %v567, %v563
          %v588 = vpack.c.b16 %v568, %v564
          %v589 = vpack.c.b16 %v573, %v569
          %v590 = vpack.c.b16 %v574, %v570
          %v591 = vpack.c.b16 %v575, %v571
          %v592 = vpack.c.b16 %v576, %v572
          %vm609 = vcmask 523264
          %v611 = vsel %vm609, %v505, 0
          %v614 = vsel %vm609, %v506, 0
          %v617 = vsel %vm609, %v507, 0
          %v620 = vsel %vm609, %v508, 0
          %v623 = vsel %vm609, %v509, 0
          %v626 = vsel %vm609, %v510, 0
          %v629 = vsel %vm609, %v511, 0
          %v632 = vsel %vm609, %v512, 0
          %634 = vmatprep.subr.bf16.mxu0 %v578
          %635 = vmatpush1.bf16.msra.mxu0 %v577
          %636 = vmatprep.subr.bf16.mxu0 %v582
          %637 = vmatpush1.bf16.msra.mxu0 %v581
          %638 = vmatprep.subr.bf16.mxu0 %v586
          %639 = vmatpush1.bf16.msra.mxu0 %v585
          %640 = vmatprep.subr.bf16.mxu0 %v590
          %641 = vmatpush1.bf16.msra.mxu0 %v589
          %642 = vmatprep.subr.bf16.mxu0 0
          %643 = vmatpush1.bf16.msra.mxu0 0
          %644 = vmatprep.subr.bf16.mxu0 0
          %645 = vmatpush1.bf16.msra.mxu0 0
          %646 = vmatprep.subr.bf16.mxu0 0
          %647 = vmatpush1.bf16.msra.mxu0 0
          %648 = vmatprep.subr.bf16.mxu0 0
          %649 = vmatpush1.bf16.msra.mxu0 0
          %650 = vmatprep.subr.bf16.mxu0 0
          %651 = vmatpush1.bf16.msra.mxu0 0
          %652 = vmatprep.subr.bf16.mxu0 0
          %653 = vmatpush1.bf16.msra.mxu0 0
          %654 = vmatprep.subr.bf16.mxu0 0
          %655 = vmatpush1.bf16.msra.mxu0 0
          %656 = vmatprep.subr.bf16.mxu0 0
          %657 = vmatpush1.bf16.msra.mxu0 0
          %658 = vmatprep.subr.bf16.mxu0 0
          %659 = vmatpush1.bf16.msra.mxu0 0
          %660 = vmatprep.subr.bf16.mxu0 0
          %661 = vmatpush1.bf16.msra.mxu0 0
          %662 = vmatprep.subr.bf16.mxu0 0
          %663 = vmatpush1.bf16.msra.mxu0 0
          %664 = vmatprep.subr.bf16.mxu0 0
          %665 = vmatpush1.bf16.msra.mxu0 0
          %666 = vmatprep.mubr.bf16.mxu0 0
          %667 = vmatmul.mubr.bf16.gmra.mrb[0].mxu0 %v611
          %v668 = vpop.f32.mrb[0].mxu0
          %v669 = vadd.f32 0.0, %v668
          %v670 = vpop.f32.mrb[0].mxu0
          %v671 = vadd.f32 0.0, %v670
          %v672 = vpop.f32.mrb[0].mxu0
          %v673 = vadd.f32 0.0, %v672
          %v674 = vpop.f32.mrb[0].mxu0
          %v675 = vadd.f32 0.0, %v674
          %676 = vmatprep.mubr.bf16.mxu0 0
          %677 = vmatmul.mubr.bf16.gmra.mrb[0].mxu0 %v614
          %v678 = vpop.f32.mrb[0].mxu0
          %v679 = vadd.f32 0.0, %v678
          %v680 = vpop.f32.mrb[0].mxu0
          %v681 = vadd.f32 0.0, %v680
          %v682 = vpop.f32.mrb[0].mxu0
          %v683 = vadd.f32 0.0, %v682
          %v684 = vpop.f32.mrb[0].mxu0
          %v685 = vadd.f32 0.0, %v684
          %686 = vmatprep.mubr.bf16.mxu0 0
          %687 = vmatmul.mubr.bf16.gmra.mrb[0].mxu0 %v617
          %v688 = vpop.f32.mrb[0].mxu0
          %v689 = vadd.f32 0.0, %v688
          %v690 = vpop.f32.mrb[0].mxu0
          %v691 = vadd.f32 0.0, %v690
          %v692 = vpop.f32.mrb[0].mxu0
          %v693 = vadd.f32 0.0, %v692
          %v694 = vpop.f32.mrb[0].mxu0
          %v695 = vadd.f32 0.0, %v694
          %696 = vmatprep.mubr.bf16.mxu0 0
          %697 = vmatmul.mubr.bf16.gmra.mrb[0].mxu0 %v620
          %v698 = vpop.f32.mrb[0].mxu0
          %v699 = vadd.f32 0.0, %v698
          %v700 = vpop.f32.mrb[0].mxu0
          %v701 = vadd.f32 0.0, %v700
          %v702 = vpop.f32.mrb[0].mxu0
          %v703 = vadd.f32 0.0, %v702
          %v704 = vpop.f32.mrb[0].mxu0
          %v705 = vadd.f32 0.0, %v704
          %706 = vmatprep.mubr.bf16.mxu0 0
          %707 = vmatmul.mubr.bf16.gmra.mrb[0].mxu0 %v623
          %v708 = vpop.f32.mrb[0].mxu0
          %v709 = vadd.f32 0.0, %v708
          %v710 = vpop.f32.mrb[0].mxu0
          %v711 = vadd.f32 0.0, %v710
          %v712 = vpop.f32.mrb[0].mxu0
          %v713 = vadd.f32 0.0, %v712
          %v714 = vpop.f32.mrb[0].mxu0
          %v715 = vadd.f32 0.0, %v714
          %716 = vmatprep.mubr.bf16.mxu0 0
          %717 = vmatmul.mubr.bf16.gmra.mrb[0].mxu0 %v626
          %v718 = vpop.f32.mrb[0].mxu0
          %v719 = vadd.f32 0.0, %v718
          %v720 = vpop.f32.mrb[0].mxu0
          %v721 = vadd.f32 0.0, %v720
          %v722 = vpop.f32.mrb[0].mxu0
          %v723 = vadd.f32 0.0, %v722
          %v724 = vpop.f32.mrb[0].mxu0
          %v725 = vadd.f32 0.0, %v724
          %726 = vmatprep.mubr.bf16.mxu0 0
          %727 = vmatmul.mubr.bf16.gmra.mrb[0].mxu0 %v629
          %v728 = vpop.f32.mrb[0].mxu0
          %v729 = vadd.f32 0.0, %v728
          %v730 = vpop.f32.mrb[0].mxu0
          %v731 = vadd.f32 0.0, %v730
          %v732 = vpop.f32.mrb[0].mxu0
          %v733 = vadd.f32 0.0, %v732
          %v734 = vpop.f32.mrb[0].mxu0
          %v735 = vadd.f32 0.0, %v734
          %736 = vmatprep.mubr.bf16.mxu0 0
          %737 = vmatmul.mubr.bf16.gmra.mrb[0].mxu0 %v632
          %v738 = vpop.f32.mrb[0].mxu0
          %v739 = vadd.f32 0.0, %v738
          %v740 = vpop.f32.mrb[0].mxu0
          %v741 = vadd.f32 0.0, %v740
          %v742 = vpop.f32.mrb[0].mxu0
          %v743 = vadd.f32 0.0, %v742
          %v744 = vpop.f32.mrb[0].mxu0
          %v745 = vadd.f32 0.0, %v744
          %746 = vdwg.mxu0
          %747 = vmatprep.subr.bf16.mxu0 %v580
          %748 = vmatpush1.bf16.msra.mxu0 %v579
          %749 = vmatprep.subr.bf16.mxu0 %v584
          %750 = vmatpush1.bf16.msra.mxu0 %v583
          %751 = vmatprep.subr.bf16.mxu0 %v588
          %752 = vmatpush1.bf16.msra.mxu0 %v587
          %753 = vmatprep.subr.bf16.mxu0 %v592
          %754 = vmatpush1.bf16.msra.mxu0 %v591
          %755 = vmatprep.subr.bf16.mxu0 0
          %756 = vmatpush1.bf16.msra.mxu0 0
          %757 = vmatprep.subr.bf16.mxu0 0
          %758 = vmatpush1.bf16.msra.mxu0 0
          %759 = vmatprep.subr.bf16.mxu0 0
          %760 = vmatpush1.bf16.msra.mxu0 0
          %761 = vmatprep.subr.bf16.mxu0 0
          %762 = vmatpush1.bf16.msra.mxu0 0
          %763 = vmatprep.subr.bf16.mxu0 0
          %764 = vmatpush1.bf16.msra.mxu0 0
          %765 = vmatprep.subr.bf16.mxu0 0
          %766 = vmatpush1.bf16.msra.mxu0 0
          %767 = vmatprep.subr.bf16.mxu0 0
          %768 = vmatpush1.bf16.msra.mxu0 0
          %769 = vmatprep.subr.bf16.mxu0 0
          %770 = vmatpush1.bf16.msra.mxu0 0
          %771 = vmatprep.subr.bf16.mxu0 0
          %772 = vmatpush1.bf16.msra.mxu0 0
          %773 = vmatprep.subr.bf16.mxu0 0
          %774 = vmatpush1.bf16.msra.mxu0 0
          %775 = vmatprep.subr.bf16.mxu0 0
          %776 = vmatpush1.bf16.msra.mxu0 0
          %777 = vmatprep.subr.bf16.mxu0 0
          %778 = vmatpush1.bf16.msra.mxu0 0
          %779 = vmatprep.mubr.bf16.mxu0 0
          %780 = vmatmul.mubr.bf16.gmra.mrb[0].mxu0 %v611
          %v781 = vpop.f32.mrb[0].mxu0
          %v782 = vadd.f32 0.0, %v781
          %v783 = vpop.f32.mrb[0].mxu0
          %v784 = vadd.f32 0.0, %v783
          %v785 = vpop.f32.mrb[0].mxu0
          %v786 = vadd.f32 0.0, %v785
          %v787 = vpop.f32.mrb[0].mxu0
          %v788 = vadd.f32 0.0, %v787
          %789 = vmatprep.mubr.bf16.mxu0 0
          %790 = vmatmul.mubr.bf16.gmra.mrb[0].mxu0 %v614
          %v791 = vpop.f32.mrb[0].mxu0
          %v792 = vadd.f32 0.0, %v791
          %v793 = vpop.f32.mrb[0].mxu0
          %v794 = vadd.f32 0.0, %v793
          %v795 = vpop.f32.mrb[0].mxu0
          %v796 = vadd.f32 0.0, %v795
          %v797 = vpop.f32.mrb[0].mxu0
          %v798 = vadd.f32 0.0, %v797
          %799 = vmatprep.mubr.bf16.mxu0 0
          %800 = vmatmul.mubr.bf16.gmra.mrb[0].mxu0 %v617
          %v801 = vpop.f32.mrb[0].mxu0
          %v802 = vadd.f32 0.0, %v801
          %v803 = vpop.f32.mrb[0].mxu0
          %v804 = vadd.f32 0.0, %v803
          %v805 = vpop.f32.mrb[0].mxu0
          %v806 = vadd.f32 0.0, %v805
          %v807 = vpop.f32.mrb[0].mxu0
          %v808 = vadd.f32 0.0, %v807
          %809 = vmatprep.mubr.bf16.mxu0 0
          %810 = vmatmul.mubr.bf16.gmra.mrb[0].mxu0 %v620
          %v811 = vpop.f32.mrb[0].mxu0
          %v812 = vadd.f32 0.0, %v811
          %v813 = vpop.f32.mrb[0].mxu0
          %v814 = vadd.f32 0.0, %v813
          %v815 = vpop.f32.mrb[0].mxu0
          %v816 = vadd.f32 0.0, %v815
          %v817 = vpop.f32.mrb[0].mxu0
          %v818 = vadd.f32 0.0, %v817
          %819 = vmatprep.mubr.bf16.mxu0 0
          %820 = vmatmul.mubr.bf16.gmra.mrb[0].mxu0 %v623
          %v821 = vpop.f32.mrb[0].mxu0
          %v822 = vadd.f32 0.0, %v821
          %v823 = vpop.f32.mrb[0].mxu0
          %v824 = vadd.f32 0.0, %v823
          %v825 = vpop.f32.mrb[0].mxu0
          %v826 = vadd.f32 0.0, %v825
          %v827 = vpop.f32.mrb[0].mxu0
          %v828 = vadd.f32 0.0, %v827
          %829 = vmatprep.mubr.bf16.mxu0 0
          %830 = vmatmul.mubr.bf16.gmra.mrb[0].mxu0 %v626
          %v831 = vpop.f32.mrb[0].mxu0
          %v832 = vadd.f32 0.0, %v831
          %v833 = vpop.f32.mrb[0].mxu0
          %v834 = vadd.f32 0.0, %v833
          %v835 = vpop.f32.mrb[0].mxu0
          %v836 = vadd.f32 0.0, %v835
          %v837 = vpop.f32.mrb[0].mxu0
          %v838 = vadd.f32 0.0, %v837
          %839 = vmatprep.mubr.bf16.mxu0 0
          %840 = vmatmul.mubr.bf16.gmra.mrb[0].mxu0 %v629
          %v841 = vpop.f32.mrb[0].mxu0
          %v842 = vadd.f32 0.0, %v841
          %v843 = vpop.f32.mrb[0].mxu0
          %v844 = vadd.f32 0.0, %v843
          %v845 = vpop.f32.mrb[0].mxu0
          %v846 = vadd.f32 0.0, %v845
          %v847 = vpop.f32.mrb[0].mxu0
          %v848 = vadd.f32 0.0, %v847
          %849 = vmatprep.mubr.bf16.mxu0 0
          %850 = vmatmul.mubr.bf16.gmra.mrb[0].mxu0 %v632
          %v851 = vpop.f32.mrb[0].mxu0
          %v852 = vadd.f32 0.0, %v851
          %v853 = vpop.f32.mrb[0].mxu0
          %v854 = vadd.f32 0.0, %v853
          %v855 = vpop.f32.mrb[0].mxu0
          %v856 = vadd.f32 0.0, %v855
          %v857 = vpop.f32.mrb[0].mxu0
          %v858 = vadd.f32 0.0, %v857
          %859 = vdwg.mxu0
          %v860 = vadd.f32 %v441, %v669
          %v861 = vadd.f32 %v442, %v671
          %v862 = vadd.f32 %v443, %v782
          %v863 = vadd.f32 %v444, %v784
          %v864 = vadd.f32 %v445, %v673
          %v865 = vadd.f32 %v446, %v675
          %v866 = vadd.f32 %v447, %v786
          %v867 = vadd.f32 %v448, %v788
          %v868 = vadd.f32 %v449, %v679
          %v869 = vadd.f32 %v450, %v681
          %v870 = vadd.f32 %v451, %v792
          %v871 = vadd.f32 %v452, %v794
          %v872 = vadd.f32 %v453, %v683
          %v873 = vadd.f32 %v454, %v685
          %v874 = vadd.f32 %v455, %v796
          %v875 = vadd.f32 %v456, %v798
          %v876 = vadd.f32 %v457, %v689
          %v877 = vadd.f32 %v458, %v691
          %v878 = vadd.f32 %v459, %v802
          %v879 = vadd.f32 %v460, %v804
          %v880 = vadd.f32 %v461, %v693
          %v881 = vadd.f32 %v462, %v695
          %v882 = vadd.f32 %v463, %v806
          %v883 = vadd.f32 %v464, %v808
          %v884 = vadd.f32 %v465, %v699
          %v885 = vadd.f32 %v466, %v701
          %v886 = vadd.f32 %v467, %v812
          %v887 = vadd.f32 %v468, %v814
          %v888 = vadd.f32 %v469, %v703
          %v889 = vadd.f32 %v470, %v705
          %v890 = vadd.f32 %v471, %v816
          %v891 = vadd.f32 %v472, %v818
          %v892 = vadd.f32 %v473, %v709
          %v893 = vadd.f32 %v474, %v711
          %v894 = vadd.f32 %v475, %v822
          %v895 = vadd.f32 %v476, %v824
          %v896 = vadd.f32 %v477, %v713
          %v897 = vadd.f32 %v478, %v715
          %v898 = vadd.f32 %v479, %v826
          %v899 = vadd.f32 %v480, %v828
          %v900 = vadd.f32 %v481, %v719
          %v901 = vadd.f32 %v482, %v721
          %v902 = vadd.f32 %v483, %v832
          %v903 = vadd.f32 %v484, %v834
          %v904 = vadd.f32 %v485, %v723
          %v905 = vadd.f32 %v486, %v725
          %v906 = vadd.f32 %v487, %v836
          %v907 = vadd.f32 %v488, %v838
          %v908 = vadd.f32 %v489, %v729
          %v909 = vadd.f32 %v490, %v731
          %v910 = vadd.f32 %v491, %v842
          %v911 = vadd.f32 %v492, %v844
          %v912 = vadd.f32 %v493, %v733
          %v913 = vadd.f32 %v494, %v735
          %v914 = vadd.f32 %v495, %v846
          %v915 = vadd.f32 %v496, %v848
          %v916 = vadd.f32 %v497, %v739
          %v917 = vadd.f32 %v498, %v741
          %v918 = vadd.f32 %v499, %v852
          %v919 = vadd.f32 %v500, %v854
          %v920 = vadd.f32 %v501, %v743
          %v921 = vadd.f32 %v502, %v745
          %v922 = vadd.f32 %v503, %v856
          %v923 = vadd.f32 %v504, %v858
          %924 = vst [vmem:[#allocation5] sm:$0xff] %v860
          %925 = vst [vmem:[#allocation5 + $0x8] sm:$0xff] %v861
          %926 = vst [vmem:[#allocation5 + $0x10] sm:$0xff] %v862
          %927 = vst [vmem:[#allocation5 + $0x18] sm:$0xff] %v863
          %928 = vst [vmem:[#allocation5 + $0x20] sm:$0xff] %v864
          %929 = vst [vmem:[#allocation5 + $0x28] sm:$0xff] %v865
          %930 = vst [vmem:[#allocation5 + $0x30] sm:$0xff] %v866
          %931 = vst [vmem:[#allocation5 + $0x38] sm:$0xff] %v867
          %932 = vst [vmem:[#allocation5 + $0x40] sm:$0xff] %v868
          %933 = vst [vmem:[#allocation5 + $0x48] sm:$0xff] %v869
          %934 = vst [vmem:[#allocation5 + $0x50] sm:$0xff] %v870
          %935 = vst [vmem:[#allocation5 + $0x58] sm:$0xff] %v871
          %936 = vst [vmem:[#allocation5 + $0x60] sm:$0xff] %v872
          %937 = vst [vmem:[#allocation5 + $0x68] sm:$0xff] %v873
          %938 = vst [vmem:[#allocation5 + $0x70] sm:$0xff] %v874
          %939 = vst [vmem:[#allocation5 + $0x78] sm:$0xff] %v875
          %940 = vst [vmem:[#allocation5 + $0x80] sm:$0xff] %v876
          %941 = vst [vmem:[#allocation5 + $0x88] sm:$0xff] %v877
          %942 = vst [vmem:[#allocation5 + $0x90] sm:$0xff] %v878
          %943 = vst [vmem:[#allocation5 + $0x98] sm:$0xff] %v879
          %944 = vst [vmem:[#allocation5 + $0xa0] sm:$0xff] %v880
          %945 = vst [vmem:[#allocation5 + $0xa8] sm:$0xff] %v881
          %946 = vst [vmem:[#allocation5 + $0xb0] sm:$0xff] %v882
          %947 = vst [vmem:[#allocation5 + $0xb8] sm:$0xff] %v883
          %948 = vst [vmem:[#allocation5 + $0xc0] sm:$0xff] %v884
          %949 = vst [vmem:[#allocation5 + $0xc8] sm:$0xff] %v885
          %950 = vst [vmem:[#allocation5 + $0xd0] sm:$0xff] %v886
          %951 = vst [vmem:[#allocation5 + $0xd8] sm:$0xff] %v887
          %952 = vst [vmem:[#allocation5 + $0xe0] sm:$0xff] %v888
          %953 = vst [vmem:[#allocation5 + $0xe8] sm:$0xff] %v889
          %954 = vst [vmem:[#allocation5 + $0xf0] sm:$0xff] %v890
          %955 = vst [vmem:[#allocation5 + $0xf8] sm:$0xff] %v891
          %956 = vst [vmem:[#allocation5 + $0x100] sm:$0xff] %v892
          %957 = vst [vmem:[#allocation5 + $0x108] sm:$0xff] %v893
          %958 = vst [vmem:[#allocation5 + $0x110] sm:$0xff] %v894
          %959 = vst [vmem:[#allocation5 + $0x118] sm:$0xff] %v895
          %960 = vst [vmem:[#allocation5 + $0x120] sm:$0xff] %v896
          %961 = vst [vmem:[#allocation5 + $0x128] sm:$0xff] %v897
          %962 = vst [vmem:[#allocation5 + $0x130] sm:$0xff] %v898
          %963 = vst [vmem:[#allocation5 + $0x138] sm:$0xff] %v899
          %964 = vst [vmem:[#allocation5 + $0x140] sm:$0xff] %v900
          %965 = vst [vmem:[#allocation5 + $0x148] sm:$0xff] %v901
          %966 = vst [vmem:[#allocation5 + $0x150] sm:$0xff] %v902
          %967 = vst [vmem:[#allocation5 + $0x158] sm:$0xff] %v903
          %968 = vst [vmem:[#allocation5 + $0x160] sm:$0xff] %v904
          %969 = vst [vmem:[#allocation5 + $0x168] sm:$0xff] %v905
          %970 = vst [vmem:[#allocation5 + $0x170] sm:$0xff] %v906
          %971 = vst [vmem:[#allocation5 + $0x178] sm:$0xff] %v907
          %972 = vst [vmem:[#allocation5 + $0x180] sm:$0xff] %v908
          %973 = vst [vmem:[#allocation5 + $0x188] sm:$0xff] %v909
          %974 = vst [vmem:[#allocation5 + $0x190] sm:$0xff] %v910
          %975 = vst [vmem:[#allocation5 + $0x198] sm:$0xff] %v911
          %976 = vst [vmem:[#allocation5 + $0x1a0] sm:$0xff] %v912
          %977 = vst [vmem:[#allocation5 + $0x1a8] sm:$0xff] %v913
          %978 = vst [vmem:[#allocation5 + $0x1b0] sm:$0xff] %v914
          %979 = vst [vmem:[#allocation5 + $0x1b8] sm:$0xff] %v915
          %980 = vst [vmem:[#allocation5 + $0x1c0] sm:$0xff] %v916
          %981 = vst [vmem:[#allocation5 + $0x1c8] sm:$0xff] %v917
          %982 = vst [vmem:[#allocation5 + $0x1d0] sm:$0xff] %v918
          %983 = vst [vmem:[#allocation5 + $0x1d8] sm:$0xff] %v919
          %984 = vst [vmem:[#allocation5 + $0x1e0] sm:$0xff] %v920
          %985 = vst [vmem:[#allocation5 + $0x1e8] sm:$0xff] %v921
          %986 = vst [vmem:[#allocation5 + $0x1f0] sm:$0xff] %v922
          %987 = vst [vmem:[#allocation5 + $0x1f8] sm:$0xff] %v923
        $region60: #{decoder_lstm_forward.1} parent=47 // pred_fallthru
          _
        %v988 = vld [vmem:[#allocation2] sm:$0x1]
        %v989 = vld [vmem:[#allocation3] sm:$0x1]
        loop: start=0, step=1, limit=16
        $region61: #{decoder_lstm_forward.1} parent=47 // loop_pre_header
          _
        $region62: #{decoder_lstm_forward.1} parent=47 // loop_header
          %s991 = sphi 0, %s995
          %p992 = scmp.ge.s32.totalorder %s991, 16
          %v996 = vphi %v988, %v2161
          %v997 = vphi %v989, %v2164
        $region63: #{decoder_lstm_forward.1} parent=47 // loop_header_branch
          %994 = sbr.rel (%p992) target = $region67
        $region64: #{decoder_lstm_forward.1} parent=47 // loop_body
          %s998 = smul.u32 %s991, 8
          %s999 = sshra.s32 %s998, 3
          %s1000 = sand.u32 %s998, 7
          %s1001 = smul.u32 %s999, 4
          %s1002 = smul.addr %s1001, 8
          %s1003 = scalar_lea.vmem [#allocation5], %s1002
          %v1004 = vld [vmem:[%s1003] sm:$0xff]
          %v1005 = vld [vmem:[%s1003 + $0x8] sm:$0xff]
          %v1006 = vld [vmem:[%s1003 + $0x10] sm:$0xff]
          %v1007 = vld [vmem:[%s1003 + $0x18] sm:$0xff]
          %v1008 = vpack.c.bf16 %v996, %v996
          %v1009 = vld [vmem:[%s5] sm:$0xff]
          %v1010 = vld [vmem:[%s5 + $0x8] sm:$0xff]
          %v1011 = vld [vmem:[%s5 + $0x10] sm:$0xff]
          %v1012 = vld [vmem:[%s5 + $0x18] sm:$0xff]
          %v1013 = vld [vmem:[%s5 + $0x20] sm:$0xff]
          %v1014 = vld [vmem:[%s5 + $0x28] sm:$0xff]
          %v1015 = vld [vmem:[%s5 + $0x30] sm:$0xff]
          %v1016 = vld [vmem:[%s5 + $0x38] sm:$0xff]
          %v1017 = vld [vmem:[%s5 + $0x40] sm:$0xff]
          %v1018 = vld [vmem:[%s5 + $0x48] sm:$0xff]
          %v1019 = vld [vmem:[%s5 + $0x50] sm:$0xff]
          %v1020 = vld [vmem:[%s5 + $0x58] sm:$0xff]
          %v1021 = vld [vmem:[%s5 + $0x60] sm:$0xff]
          %v1022 = vld [vmem:[%s5 + $0x68] sm:$0xff]
          %v1023 = vld [vmem:[%s5 + $0x70] sm:$0xff]
          %v1024 = vld [vmem:[%s5 + $0x78] sm:$0xff]
          %v1025 = vld [vmem:[%s5 + $0x80] sm:$0xff]
          %v1026 = vld [vmem:[%s5 + $0x88] sm:$0xff]
          %v1027 = vld [vmem:[%s5 + $0x90] sm:$0xff]
          %v1028 = vld [vmem:[%s5 + $0x98] sm:$0xff]
          %v1029 = vld [vmem:[%s5 + $0xa0] sm:$0xff]
          %v1030 = vld [vmem:[%s5 + $0xa8] sm:$0xff]
          %v1031 = vld [vmem:[%s5 + $0xb0] sm:$0xff]
          %v1032 = vld [vmem:[%s5 + $0xb8] sm:$0xff]
          %v1033 = vld [vmem:[%s5 + $0xc0] sm:$0xff]
          %v1034 = vld [vmem:[%s5 + $0xc8] sm:$0xff]
          %v1035 = vld [vmem:[%s5 + $0xd0] sm:$0xff]
          %v1036 = vld [vmem:[%s5 + $0xd8] sm:$0xff]
          %v1037 = vld [vmem:[%s5 + $0xe0] sm:$0xff]
          %v1038 = vld [vmem:[%s5 + $0xe8] sm:$0xff]
          %v1039 = vld [vmem:[%s5 + $0xf0] sm:$0xff]
          %v1040 = vld [vmem:[%s5 + $0xf8] sm:$0xff]
          %v1073 = vunpack.c.l.b16 %v1009
          %v1074 = vunpack.c.h.b16 %v1009
          %v1075 = vunpack.c.l.b16 %v1010
          %v1076 = vunpack.c.h.b16 %v1010
          %v1077 = vunpack.c.l.b16 %v1011
          %v1078 = vunpack.c.h.b16 %v1011
          %v1079 = vunpack.c.l.b16 %v1012
          %v1080 = vunpack.c.h.b16 %v1012
          %v1081 = vunpack.c.l.b16 %v1013
          %v1082 = vunpack.c.h.b16 %v1013
          %v1083 = vunpack.c.l.b16 %v1014
          %v1084 = vunpack.c.h.b16 %v1014
          %v1085 = vunpack.c.l.b16 %v1015
          %v1086 = vunpack.c.h.b16 %v1015
          %v1087 = vunpack.c.l.b16 %v1016
          %v1088 = vunpack.c.h.b16 %v1016
          %v1089 = vunpack.c.l.b16 %v1017
          %v1090 = vunpack.c.h.b16 %v1017
          %v1091 = vunpack.c.l.b16 %v1018
          %v1092 = vunpack.c.h.b16 %v1018
          %v1093 = vunpack.c.l.b16 %v1019
          %v1094 = vunpack.c.h.b16 %v1019
          %v1095 = vunpack.c.l.b16 %v1020
          %v1096 = vunpack.c.h.b16 %v1020
          %v1097 = vunpack.c.l.b16 %v1021
          %v1098 = vunpack.c.h.b16 %v1021
          %v1099 = vunpack.c.l.b16 %v1022
          %v1100 = vunpack.c.h.b16 %v1022
          %v1101 = vunpack.c.l.b16 %v1023
          %v1102 = vunpack.c.h.b16 %v1023
          %v1103 = vunpack.c.l.b16 %v1024
          %v1104 = vunpack.c.h.b16 %v1024
          %v1105 = vunpack.c.l.b16 %v1025
          %v1106 = vunpack.c.h.b16 %v1025
          %v1107 = vunpack.c.l.b16 %v1026
          %v1108 = vunpack.c.h.b16 %v1026
          %v1109 = vunpack.c.l.b16 %v1027
          %v1110 = vunpack.c.h.b16 %v1027
          %v1111 = vunpack.c.l.b16 %v1028
          %v1112 = vunpack.c.h.b16 %v1028
          %v1113 = vunpack.c.l.b16 %v1029
          %v1114 = vunpack.c.h.b16 %v1029
          %v1115 = vunpack.c.l.b16 %v1030
          %v1116 = vunpack.c.h.b16 %v1030
          %v1117 = vunpack.c.l.b16 %v1031
          %v1118 = vunpack.c.h.b16 %v1031
          %v1119 = vunpack.c.l.b16 %v1032
          %v1120 = vunpack.c.h.b16 %v1032
          %v1121 = vunpack.c.l.b16 %v1033
          %v1122 = vunpack.c.h.b16 %v1033
          %v1123 = vunpack.c.l.b16 %v1034
          %v1124 = vunpack.c.h.b16 %v1034
          %v1125 = vunpack.c.l.b16 %v1035
          %v1126 = vunpack.c.h.b16 %v1035
          %v1127 = vunpack.c.l.b16 %v1036
          %v1128 = vunpack.c.h.b16 %v1036
          %v1129 = vunpack.c.l.b16 %v1037
          %v1130 = vunpack.c.h.b16 %v1037
          %v1131 = vunpack.c.l.b16 %v1038
          %v1132 = vunpack.c.h.b16 %v1038
          %v1133 = vunpack.c.l.b16 %v1039
          %v1134 = vunpack.c.h.b16 %v1039
          %v1135 = vunpack.c.l.b16 %v1040
          %v1136 = vunpack.c.h.b16 %v1040
          %v1137 = vpack.c.b16 %v1077, %v1073
          %v1138 = vpack.c.b16 %v1078, %v1074
          %v1139 = vpack.c.b16 %v1079, %v1075
          %v1140 = vpack.c.b16 %v1080, %v1076
          %v1141 = vpack.c.b16 %v1085, %v1081
          %v1142 = vpack.c.b16 %v1086, %v1082
          %v1143 = vpack.c.b16 %v1087, %v1083
          %v1144 = vpack.c.b16 %v1088, %v1084
          %v1145 = vpack.c.b16 %v1093, %v1089
          %v1146 = vpack.c.b16 %v1094, %v1090
          %v1147 = vpack.c.b16 %v1095, %v1091
          %v1148 = vpack.c.b16 %v1096, %v1092
          %v1149 = vpack.c.b16 %v1101, %v1097
          %v1150 = vpack.c.b16 %v1102, %v1098
          %v1151 = vpack.c.b16 %v1103, %v1099
          %v1152 = vpack.c.b16 %v1104, %v1100
          %v1153 = vpack.c.b16 %v1109, %v1105
          %v1154 = vpack.c.b16 %v1110, %v1106
          %v1155 = vpack.c.b16 %v1111, %v1107
          %v1156 = vpack.c.b16 %v1112, %v1108
          %v1157 = vpack.c.b16 %v1117, %v1113
          %v1158 = vpack.c.b16 %v1118, %v1114
          %v1159 = vpack.c.b16 %v1119, %v1115
          %v1160 = vpack.c.b16 %v1120, %v1116
          %v1161 = vpack.c.b16 %v1125, %v1121
          %v1162 = vpack.c.b16 %v1126, %v1122
          %v1163 = vpack.c.b16 %v1127, %v1123
          %v1164 = vpack.c.b16 %v1128, %v1124
          %v1165 = vpack.c.b16 %v1133, %v1129
          %v1166 = vpack.c.b16 %v1134, %v1130
          %v1167 = vpack.c.b16 %v1135, %v1131
          %v1168 = vpack.c.b16 %v1136, %v1132
          %1201 = vmatprep.subr.bf16.mxu0 %v1138
          %1202 = vmatpush1.bf16.msra.mxu0 %v1137
          %1203 = vmatprep.subr.bf16.mxu0 %v1142
          %1204 = vmatpush1.bf16.msra.mxu0 %v1141
          %1205 = vmatprep.subr.bf16.mxu0 %v1146
          %1206 = vmatpush1.bf16.msra.mxu0 %v1145
          %1207 = vmatprep.subr.bf16.mxu0 %v1150
          %1208 = vmatpush1.bf16.msra.mxu0 %v1149
          %1209 = vmatprep.subr.bf16.mxu0 %v1154
          %1210 = vmatpush1.bf16.msra.mxu0 %v1153
          %1211 = vmatprep.subr.bf16.mxu0 %v1158
          %1212 = vmatpush1.bf16.msra.mxu0 %v1157
          %1213 = vmatprep.subr.bf16.mxu0 %v1162
          %1214 = vmatpush1.bf16.msra.mxu0 %v1161
          %1215 = vmatprep.subr.bf16.mxu0 %v1166
          %1216 = vmatpush1.bf16.msra.mxu0 %v1165
          %1217 = vmatprep.subr.bf16.mxu0 0
          %1218 = vmatpush1.bf16.msra.mxu0 0
          %1219 = vmatprep.subr.bf16.mxu0 0
          %1220 = vmatpush1.bf16.msra.mxu0 0
          %1221 = vmatprep.subr.bf16.mxu0 0
          %1222 = vmatpush1.bf16.msra.mxu0 0
          %1223 = vmatprep.subr.bf16.mxu0 0
          %1224 = vmatpush1.bf16.msra.mxu0 0
          %1225 = vmatprep.subr.bf16.mxu0 0
          %1226 = vmatpush1.bf16.msra.mxu0 0
          %1227 = vmatprep.subr.bf16.mxu0 0
          %1228 = vmatpush1.bf16.msra.mxu0 0
          %1229 = vmatprep.subr.bf16.mxu0 0
          %1230 = vmatpush1.bf16.msra.mxu0 0
          %1231 = vmatprep.subr.bf16.mxu0 0
          %1232 = vmatpush1.bf16.msra.mxu0 0
          %1233 = vmatprep.mubr.bf16.mxu0 0
          %1234 = vmatmul.mubr.bf16.gmra.mrb[0].mxu0 %v1008
          %v1235 = vpop.f32.mrb[0].mxu0
          %v1236 = vadd.f32 0.0, %v1235
          %v1237 = vpop.f32.mrb[0].mxu0
          %v1238 = vadd.f32 0.0, %v1237
          %v1239 = vpop.f32.mrb[0].mxu0
          %v1240 = vpop.f32.mrb[0].mxu0
          %1241 = vdwg.mxu0
          %1242 = vmatprep.subr.bf16.mxu0 %v1140
          %1243 = vmatpush1.bf16.msra.mxu0 %v1139
          %1244 = vmatprep.subr.bf16.mxu0 %v1144
          %1245 = vmatpush1.bf16.msra.mxu0 %v1143
          %1246 = vmatprep.subr.bf16.mxu0 %v1148
          %1247 = vmatpush1.bf16.msra.mxu0 %v1147
          %1248 = vmatprep.subr.bf16.mxu0 %v1152
          %1249 = vmatpush1.bf16.msra.mxu0 %v1151
          %1250 = vmatprep.subr.bf16.mxu0 %v1156
          %1251 = vmatpush1.bf16.msra.mxu0 %v1155
          %1252 = vmatprep.subr.bf16.mxu0 %v1160
          %1253 = vmatpush1.bf16.msra.mxu0 %v1159
          %1254 = vmatprep.subr.bf16.mxu0 %v1164
          %1255 = vmatpush1.bf16.msra.mxu0 %v1163
          %1256 = vmatprep.subr.bf16.mxu0 %v1168
          %1257 = vmatpush1.bf16.msra.mxu0 %v1167
          %1258 = vmatprep.subr.bf16.mxu0 0
          %1259 = vmatpush1.bf16.msra.mxu0 0
          %1260 = vmatprep.subr.bf16.mxu0 0
          %1261 = vmatpush1.bf16.msra.mxu0 0
          %1262 = vmatprep.subr.bf16.mxu0 0
          %1263 = vmatpush1.bf16.msra.mxu0 0
          %1264 = vmatprep.subr.bf16.mxu0 0
          %1265 = vmatpush1.bf16.msra.mxu0 0
          %1266 = vmatprep.subr.bf16.mxu0 0
          %1267 = vmatpush1.bf16.msra.mxu0 0
          %1268 = vmatprep.subr.bf16.mxu0 0
          %1269 = vmatpush1.bf16.msra.mxu0 0
          %1270 = vmatprep.subr.bf16.mxu0 0
          %1271 = vmatpush1.bf16.msra.mxu0 0
          %1272 = vmatprep.subr.bf16.mxu0 0
          %1273 = vmatpush1.bf16.msra.mxu0 0
          %1274 = vmatprep.mubr.bf16.mxu0 0
          %1275 = vmatmul.mubr.bf16.gmra.mrb[0].mxu0 %v1008
          %v1276 = vpop.f32.mrb[0].mxu0
          %v1277 = vadd.f32 0.0, %v1276
          %v1278 = vpop.f32.mrb[0].mxu0
          %v1279 = vadd.f32 0.0, %v1278
          %v1280 = vpop.f32.mrb[0].mxu0
          %v1281 = vpop.f32.mrb[0].mxu0
          %1282 = vdwg.mxu0
          %v1283 = vadd.f32 %v1004, %v1236
          %v1284 = vadd.f32 %v1005, %v1238
          %v1285 = vadd.f32 %v1006, %v1277
          %v1286 = vadd.f32 %v1007, %v1279
          %v1287 = vtanh.pop %v1283
          %v1288 = vtanh.pop %v1284
          %v1289 = vtanh.pop %v1285
          %v1290 = vtanh.pop %v1286
          %v1291 = vadd.f32 %v1287, 1.0
          %v1292 = vmul.f32 %v1291, 0.5
          %v1293 = vadd.f32 %v1288, 1.0
          %v1294 = vmul.f32 %v1293, 0.5
          %v1295 = vadd.f32 %v1290, 1.0
          %v1296 = vmul.f32 %v1295, 0.5
          %v1297 = vmul.f32 %v1294, %v997
          %v1298 = vmul.f32 %v1292, %v1289
          %v1299 = vadd.f32 %v1297, %v1298
          %v1300 = vtanh.pop %v1299
          %v1301 = vmul.f32 %v1296, %v1300
          %v1302 = vpack.c.bf16 %v1301, %v1301
          %1303 = vmatprep.subr.bf16.mxu0 %v1138
          %1304 = vmatpush1.bf16.msra.mxu0 %v1137
          %1305 = vmatprep.subr.bf16.mxu0 %v1142
          %1306 = vmatpush1.bf16.msra.mxu0 %v1141
          %1307 = vmatprep.subr.bf16.mxu0 %v1146
          %1308 = vmatpush1.bf16.msra.mxu0 %v1145
          %1309 = vmatprep.subr.bf16.mxu0 %v1150
          %1310 = vmatpush1.bf16.msra.mxu0 %v1149
          %1311 = vmatprep.subr.bf16.mxu0 %v1154
          %1312 = vmatpush1.bf16.msra.mxu0 %v1153
          %1313 = vmatprep.subr.bf16.mxu0 %v1158
          %1314 = vmatpush1.bf16.msra.mxu0 %v1157
          %1315 = vmatprep.subr.bf16.mxu0 %v1162
          %1316 = vmatpush1.bf16.msra.mxu0 %v1161
          %1317 = vmatprep.subr.bf16.mxu0 %v1166
          %1318 = vmatpush1.bf16.msra.mxu0 %v1165
          %1319 = vmatprep.subr.bf16.mxu0 0
          %1320 = vmatpush1.bf16.msra.mxu0 0
          %1321 = vmatprep.subr.bf16.mxu0 0
          %1322 = vmatpush1.bf16.msra.mxu0 0
          %1323 = vmatprep.subr.bf16.mxu0 0
          %1324 = vmatpush1.bf16.msra.mxu0 0
          %1325 = vmatprep.subr.bf16.mxu0 0
          %1326 = vmatpush1.bf16.msra.mxu0 0
          %1327 = vmatprep.subr.bf16.mxu0 0
          %1328 = vmatpush1.bf16.msra.mxu0 0
          %1329 = vmatprep.subr.bf16.mxu0 0
          %1330 = vmatpush1.bf16.msra.mxu0 0
          %1331 = vmatprep.subr.bf16.mxu0 0
          %1332 = vmatpush1.bf16.msra.mxu0 0
          %1333 = vmatprep.subr.bf16.mxu0 0
          %1334 = vmatpush1.bf16.msra.mxu0 0
          %1335 = vmatprep.mubr.bf16.mxu0 0
          %1336 = vmatmul.mubr.bf16.gmra.mrb[0].mxu0 %v1302
          %v1337 = vpop.f32.mrb[0].mxu0
          %v1338 = vadd.f32 0.0, %v1337
          %v1339 = vpop.f32.mrb[0].mxu0
          %v1340 = vadd.f32 0.0, %v1339
          %v1341 = vpop.f32.mrb[0].mxu0
          %v1342 = vpop.f32.mrb[0].mxu0
          %1343 = vdwg.mxu0
          %1344 = vmatprep.subr.bf16.mxu0 %v1140
          %1345 = vmatpush1.bf16.msra.mxu0 %v1139
          %1346 = vmatprep.subr.bf16.mxu0 %v1144
          %1347 = vmatpush1.bf16.msra.mxu0 %v1143
          %1348 = vmatprep.subr.bf16.mxu0 %v1148
          %1349 = vmatpush1.bf16.msra.mxu0 %v1147
          %1350 = vmatprep.subr.bf16.mxu0 %v1152
          %1351 = vmatpush1.bf16.msra.mxu0 %v1151
          %1352 = vmatprep.subr.bf16.mxu0 %v1156
          %1353 = vmatpush1.bf16.msra.mxu0 %v1155
          %1354 = vmatprep.subr.bf16.mxu0 %v1160
          %1355 = vmatpush1.bf16.msra.mxu0 %v1159
          %1356 = vmatprep.subr.bf16.mxu0 %v1164
          %1357 = vmatpush1.bf16.msra.mxu0 %v1163
          %1358 = vmatprep.subr.bf16.mxu0 %v1168
          %1359 = vmatpush1.bf16.msra.mxu0 %v1167
          %1360 = vmatprep.subr.bf16.mxu0 0
          %1361 = vmatpush1.bf16.msra.mxu0 0
          %1362 = vmatprep.subr.bf16.mxu0 0
          %1363 = vmatpush1.bf16.msra.mxu0 0
          %1364 = vmatprep.subr.bf16.mxu0 0
          %1365 = vmatpush1.bf16.msra.mxu0 0
          %1366 = vmatprep.subr.bf16.mxu0 0
          %1367 = vmatpush1.bf16.msra.mxu0 0
          %1368 = vmatprep.subr.bf16.mxu0 0
          %1369 = vmatpush1.bf16.msra.mxu0 0
          %1370 = vmatprep.subr.bf16.mxu0 0
          %1371 = vmatpush1.bf16.msra.mxu0 0
          %1372 = vmatprep.subr.bf16.mxu0 0
          %1373 = vmatpush1.bf16.msra.mxu0 0
          %1374 = vmatprep.subr.bf16.mxu0 0
          %1375 = vmatpush1.bf16.msra.mxu0 0
          %1376 = vmatprep.mubr.bf16.mxu0 0
          %1377 = vmatmul.mubr.bf16.gmra.mrb[0].mxu0 %v1302
          %v1378 = vpop.f32.mrb[0].mxu0
          %v1379 = vadd.f32 0.0, %v1378
          %v1380 = vpop.f32.mrb[0].mxu0
          %v1381 = vadd.f32 0.0, %v1380
          %v1382 = vpop.f32.mrb[0].mxu0
          %v1383 = vpop.f32.mrb[0].mxu0
          %1384 = vdwg.mxu0
          %v1389 = vrot.slane %v1338, 7
          %v1390 = vrot.slane %v1340, 7
          %v1391 = vrot.slane %v1379, 7
          %v1392 = vrot.slane %v1381, 7
          %v1397 = vadd.f32 %v1004, %v1389
          %v1398 = vadd.f32 %v1005, %v1390
          %v1399 = vadd.f32 %v1006, %v1391
          %v1400 = vadd.f32 %v1007, %v1392
          %v1401 = vtanh.pop %v1397
          %v1402 = vtanh.pop %v1398
          %v1403 = vtanh.pop %v1399
          %v1404 = vtanh.pop %v1400
          %v1405 = vadd.f32 %v1401, 1.0
          %v1406 = vmul.f32 %v1405, 0.5
          %v1407 = vadd.f32 %v1402, 1.0
          %v1408 = vmul.f32 %v1407, 0.5
          %v1409 = vadd.f32 %v1404, 1.0
          %v1410 = vmul.f32 %v1409, 0.5
          %v1412 = vrot.slane %v1299, 7
          %v1414 = vmul.f32 %v1408, %v1412
          %v1415 = vmul.f32 %v1406, %v1403
          %v1416 = vadd.f32 %v1414, %v1415
          %v1417 = vtanh.pop %v1416
          %v1418 = vmul.f32 %v1410, %v1417
          %v1419 = vpack.c.bf16 %v1418, %v1418
          %v1421 = vshrl.u32 %v1419, 16
          %1424 = vmatprep.subr.bf16.mxu0 %v1138
          %1425 = vmatpush1.bf16.msra.mxu0 %v1137
          %1426 = vmatprep.subr.bf16.mxu0 %v1142
          %1427 = vmatpush1.bf16.msra.mxu0 %v1141
          %1428 = vmatprep.subr.bf16.mxu0 %v1146
          %1429 = vmatpush1.bf16.msra.mxu0 %v1145
          %1430 = vmatprep.subr.bf16.mxu0 %v1150
          %1431 = vmatpush1.bf16.msra.mxu0 %v1149
          %1432 = vmatprep.subr.bf16.mxu0 %v1154
          %1433 = vmatpush1.bf16.msra.mxu0 %v1153
          %1434 = vmatprep.subr.bf16.mxu0 %v1158
          %1435 = vmatpush1.bf16.msra.mxu0 %v1157
          %1436 = vmatprep.subr.bf16.mxu0 %v1162
          %1437 = vmatpush1.bf16.msra.mxu0 %v1161
          %1438 = vmatprep.subr.bf16.mxu0 %v1166
          %1439 = vmatpush1.bf16.msra.mxu0 %v1165
          %1440 = vmatprep.subr.bf16.mxu0 0
          %1441 = vmatpush1.bf16.msra.mxu0 0
          %1442 = vmatprep.subr.bf16.mxu0 0
          %1443 = vmatpush1.bf16.msra.mxu0 0
          %1444 = vmatprep.subr.bf16.mxu0 0
          %1445 = vmatpush1.bf16.msra.mxu0 0
          %1446 = vmatprep.subr.bf16.mxu0 0
          %1447 = vmatpush1.bf16.msra.mxu0 0
          %1448 = vmatprep.subr.bf16.mxu0 0
          %1449 = vmatpush1.bf16.msra.mxu0 0
          %1450 = vmatprep.subr.bf16.mxu0 0
          %1451 = vmatpush1.bf16.msra.mxu0 0
          %1452 = vmatprep.subr.bf16.mxu0 0
          %1453 = vmatpush1.bf16.msra.mxu0 0
          %1454 = vmatprep.subr.bf16.mxu0 0
          %1455 = vmatpush1.bf16.msra.mxu0 0
          %1456 = vmatprep.mubr.bf16.mxu0 0
          %1457 = vmatmul.mubr.bf16.gmra.mrb[0].mxu0 %v1421
          %v1458 = vpop.f32.mrb[0].mxu0
          %v1459 = vadd.f32 0.0, %v1458
          %v1460 = vpop.f32.mrb[0].mxu0
          %v1461 = vadd.f32 0.0, %v1460
          %v1462 = vpop.f32.mrb[0].mxu0
          %v1463 = vpop.f32.mrb[0].mxu0
          %1464 = vdwg.mxu0
          %1465 = vmatprep.subr.bf16.mxu0 %v1140
          %1466 = vmatpush1.bf16.msra.mxu0 %v1139
          %1467 = vmatprep.subr.bf16.mxu0 %v1144
          %1468 = vmatpush1.bf16.msra.mxu0 %v1143
          %1469 = vmatprep.subr.bf16.mxu0 %v1148
          %1470 = vmatpush1.bf16.msra.mxu0 %v1147
          %1471 = vmatprep.subr.bf16.mxu0 %v1152
          %1472 = vmatpush1.bf16.msra.mxu0 %v1151
          %1473 = vmatprep.subr.bf16.mxu0 %v1156
          %1474 = vmatpush1.bf16.msra.mxu0 %v1155
          %1475 = vmatprep.subr.bf16.mxu0 %v1160
          %1476 = vmatpush1.bf16.msra.mxu0 %v1159
          %1477 = vmatprep.subr.bf16.mxu0 %v1164
          %1478 = vmatpush1.bf16.msra.mxu0 %v1163
          %1479 = vmatprep.subr.bf16.mxu0 %v1168
          %1480 = vmatpush1.bf16.msra.mxu0 %v1167
          %1481 = vmatprep.subr.bf16.mxu0 0
          %1482 = vmatpush1.bf16.msra.mxu0 0
          %1483 = vmatprep.subr.bf16.mxu0 0
          %1484 = vmatpush1.bf16.msra.mxu0 0
          %1485 = vmatprep.subr.bf16.mxu0 0
          %1486 = vmatpush1.bf16.msra.mxu0 0
          %1487 = vmatprep.subr.bf16.mxu0 0
          %1488 = vmatpush1.bf16.msra.mxu0 0
          %1489 = vmatprep.subr.bf16.mxu0 0
          %1490 = vmatpush1.bf16.msra.mxu0 0
          %1491 = vmatprep.subr.bf16.mxu0 0
          %1492 = vmatpush1.bf16.msra.mxu0 0
          %1493 = vmatprep.subr.bf16.mxu0 0
          %1494 = vmatpush1.bf16.msra.mxu0 0
          %1495 = vmatprep.subr.bf16.mxu0 0
          %1496 = vmatpush1.bf16.msra.mxu0 0
          %1497 = vmatprep.mubr.bf16.mxu0 0
          %1498 = vmatmul.mubr.bf16.gmra.mrb[0].mxu0 %v1421
          %v1499 = vpop.f32.mrb[0].mxu0
          %v1500 = vadd.f32 0.0, %v1499
          %v1501 = vpop.f32.mrb[0].mxu0
          %v1502 = vadd.f32 0.0, %v1501
          %v1503 = vpop.f32.mrb[0].mxu0
          %v1504 = vpop.f32.mrb[0].mxu0
          %1505 = vdwg.mxu0
          %v1510 = vrot.slane %v1459, 6
          %v1511 = vrot.slane %v1461, 6
          %v1512 = vrot.slane %v1500, 6
          %v1513 = vrot.slane %v1502, 6
          %v1518 = vadd.f32 %v1004, %v1510
          %v1519 = vadd.f32 %v1005, %v1511
          %v1520 = vadd.f32 %v1006, %v1512
          %v1521 = vadd.f32 %v1007, %v1513
          %v1522 = vtanh.pop %v1518
          %v1523 = vtanh.pop %v1519
          %v1524 = vtanh.pop %v1520
          %v1525 = vtanh.pop %v1521
          %v1526 = vadd.f32 %v1522, 1.0
          %v1527 = vmul.f32 %v1526, 0.5
          %v1528 = vadd.f32 %v1523, 1.0
          %v1529 = vmul.f32 %v1528, 0.5
          %v1530 = vadd.f32 %v1525, 1.0
          %v1531 = vmul.f32 %v1530, 0.5
          %v1533 = vrot.slane %v1416, 7
          %v1535 = vmul.f32 %v1529, %v1533
          %v1536 = vmul.f32 %v1527, %v1524
          %v1537 = vadd.f32 %v1535, %v1536
          %v1538 = vtanh.pop %v1537
          %v1539 = vmul.f32 %v1531, %v1538
          %v1540 = vpack.c.bf16 %v1539, %v1539
          %v1542 = vrot.slane %v1540, 1
          %1544 = vmatprep.subr.bf16.mxu0 %v1138
          %1545 = vmatpush1.bf16.msra.mxu0 %v1137
          %1546 = vmatprep.subr.bf16.mxu0 %v1142
          %1547 = vmatpush1.bf16.msra.mxu0 %v1141
          %1548 = vmatprep.subr.bf16.mxu0 %v1146
          %1549 = vmatpush1.bf16.msra.mxu0 %v1145
          %1550 = vmatprep.subr.bf16.mxu0 %v1150
          %1551 = vmatpush1.bf16.msra.mxu0 %v1149
          %1552 = vmatprep.subr.bf16.mxu0 %v1154
          %1553 = vmatpush1.bf16.msra.mxu0 %v1153
          %1554 = vmatprep.subr.bf16.mxu0 %v1158
          %1555 = vmatpush1.bf16.msra.mxu0 %v1157
          %1556 = vmatprep.subr.bf16.mxu0 %v1162
          %1557 = vmatpush1.bf16.msra.mxu0 %v1161
          %1558 = vmatprep.subr.bf16.mxu0 %v1166
          %1559 = vmatpush1.bf16.msra.mxu0 %v1165
          %1560 = vmatprep.subr.bf16.mxu0 0
          %1561 = vmatpush1.bf16.msra.mxu0 0
          %1562 = vmatprep.subr.bf16.mxu0 0
          %1563 = vmatpush1.bf16.msra.mxu0 0
          %1564 = vmatprep.subr.bf16.mxu0 0
          %1565 = vmatpush1.bf16.msra.mxu0 0
          %1566 = vmatprep.subr.bf16.mxu0 0
          %1567 = vmatpush1.bf16.msra.mxu0 0
          %1568 = vmatprep.subr.bf16.mxu0 0
          %1569 = vmatpush1.bf16.msra.mxu0 0
          %1570 = vmatprep.subr.bf16.mxu0 0
          %1571 = vmatpush1.bf16.msra.mxu0 0
          %1572 = vmatprep.subr.bf16.mxu0 0
          %1573 = vmatpush1.bf16.msra.mxu0 0
          %1574 = vmatprep.subr.bf16.mxu0 0
          %1575 = vmatpush1.bf16.msra.mxu0 0
          %1576 = vmatprep.mubr.bf16.mxu0 0
          %1577 = vmatmul.mubr.bf16.gmra.mrb[0].mxu0 %v1542
          %v1578 = vpop.f32.mrb[0].mxu0
          %v1579 = vadd.f32 0.0, %v1578
          %v1580 = vpop.f32.mrb[0].mxu0
          %v1581 = vadd.f32 0.0, %v1580
          %v1582 = vpop.f32.mrb[0].mxu0
          %v1583 = vpop.f32.mrb[0].mxu0
          %1584 = vdwg.mxu0
          %1585 = vmatprep.subr.bf16.mxu0 %v1140
          %1586 = vmatpush1.bf16.msra.mxu0 %v1139
          %1587 = vmatprep.subr.bf16.mxu0 %v1144
          %1588 = vmatpush1.bf16.msra.mxu0 %v1143
          %1589 = vmatprep.subr.bf16.mxu0 %v1148
          %1590 = vmatpush1.bf16.msra.mxu0 %v1147
          %1591 = vmatprep.subr.bf16.mxu0 %v1152
          %1592 = vmatpush1.bf16.msra.mxu0 %v1151
          %1593 = vmatprep.subr.bf16.mxu0 %v1156
          %1594 = vmatpush1.bf16.msra.mxu0 %v1155
          %1595 = vmatprep.subr.bf16.mxu0 %v1160
          %1596 = vmatpush1.bf16.msra.mxu0 %v1159
          %1597 = vmatprep.subr.bf16.mxu0 %v1164
          %1598 = vmatpush1.bf16.msra.mxu0 %v1163
          %1599 = vmatprep.subr.bf16.mxu0 %v1168
          %1600 = vmatpush1.bf16.msra.mxu0 %v1167
          %1601 = vmatprep.subr.bf16.mxu0 0
          %1602 = vmatpush1.bf16.msra.mxu0 0
          %1603 = vmatprep.subr.bf16.mxu0 0
          %1604 = vmatpush1.bf16.msra.mxu0 0
          %1605 = vmatprep.subr.bf16.mxu0 0
          %1606 = vmatpush1.bf16.msra.mxu0 0
          %1607 = vmatprep.subr.bf16.mxu0 0
          %1608 = vmatpush1.bf16.msra.mxu0 0
          %1609 = vmatprep.subr.bf16.mxu0 0
          %1610 = vmatpush1.bf16.msra.mxu0 0
          %1611 = vmatprep.subr.bf16.mxu0 0
          %1612 = vmatpush1.bf16.msra.mxu0 0
          %1613 = vmatprep.subr.bf16.mxu0 0
          %1614 = vmatpush1.bf16.msra.mxu0 0
          %1615 = vmatprep.subr.bf16.mxu0 0
          %1616 = vmatpush1.bf16.msra.mxu0 0
          %1617 = vmatprep.mubr.bf16.mxu0 0
          %1618 = vmatmul.mubr.bf16.gmra.mrb[0].mxu0 %v1542
          %v1619 = vpop.f32.mrb[0].mxu0
          %v1620 = vadd.f32 0.0, %v1619
          %v1621 = vpop.f32.mrb[0].mxu0
          %v1622 = vadd.f32 0.0, %v1621
          %v1623 = vpop.f32.mrb[0].mxu0
          %v1624 = vpop.f32.mrb[0].mxu0
          %1625 = vdwg.mxu0
          %v1630 = vrot.slane %v1579, 5
          %v1631 = vrot.slane %v1581, 5
          %v1632 = vrot.slane %v1620, 5
          %v1633 = vrot.slane %v1622, 5
          %v1638 = vadd.f32 %v1004, %v1630
          %v1639 = vadd.f32 %v1005, %v1631
          %v1640 = vadd.f32 %v1006, %v1632
          %v1641 = vadd.f32 %v1007, %v1633
          %v1642 = vtanh.pop %v1638
          %v1643 = vtanh.pop %v1639
          %v1644 = vtanh.pop %v1640
          %v1645 = vtanh.pop %v1641
          %v1646 = vadd.f32 %v1642, 1.0
          %v1647 = vmul.f32 %v1646, 0.5
          %v1648 = vadd.f32 %v1643, 1.0
          %v1649 = vmul.f32 %v1648, 0.5
          %v1650 = vadd.f32 %v1645, 1.0
          %v1651 = vmul.f32 %v1650, 0.5
          %v1653 = vrot.slane %v1537, 7
          %v1655 = vmul.f32 %v1649, %v1653
          %v1656 = vmul.f32 %v1647, %v1644
          %v1657 = vadd.f32 %v1655, %v1656
          %v1658 = vtanh.pop %v1657
          %v1659 = vmul.f32 %v1651, %v1658
          %v1660 = vpack.c.bf16 %v1659, %v1659
          %v1662 = vshrl.u32 %v1660, 16
          %v1664 = vrot.slane %v1662, 1
          %1666 = vmatprep.subr.bf16.mxu0 %v1138
          %1667 = vmatpush1.bf16.msra.mxu0 %v1137
          %1668 = vmatprep.subr.bf16.mxu0 %v1142
          %1669 = vmatpush1.bf16.msra.mxu0 %v1141
          %1670 = vmatprep.subr.bf16.mxu0 %v1146
          %1671 = vmatpush1.bf16.msra.mxu0 %v1145
          %1672 = vmatprep.subr.bf16.mxu0 %v1150
          %1673 = vmatpush1.bf16.msra.mxu0 %v1149
          %1674 = vmatprep.subr.bf16.mxu0 %v1154
          %1675 = vmatpush1.bf16.msra.mxu0 %v1153
          %1676 = vmatprep.subr.bf16.mxu0 %v1158
          %1677 = vmatpush1.bf16.msra.mxu0 %v1157
          %1678 = vmatprep.subr.bf16.mxu0 %v1162
          %1679 = vmatpush1.bf16.msra.mxu0 %v1161
          %1680 = vmatprep.subr.bf16.mxu0 %v1166
          %1681 = vmatpush1.bf16.msra.mxu0 %v1165
          %1682 = vmatprep.subr.bf16.mxu0 0
          %1683 = vmatpush1.bf16.msra.mxu0 0
          %1684 = vmatprep.subr.bf16.mxu0 0
          %1685 = vmatpush1.bf16.msra.mxu0 0
          %1686 = vmatprep.subr.bf16.mxu0 0
          %1687 = vmatpush1.bf16.msra.mxu0 0
          %1688 = vmatprep.subr.bf16.mxu0 0
          %1689 = vmatpush1.bf16.msra.mxu0 0
          %1690 = vmatprep.subr.bf16.mxu0 0
          %1691 = vmatpush1.bf16.msra.mxu0 0
          %1692 = vmatprep.subr.bf16.mxu0 0
          %1693 = vmatpush1.bf16.msra.mxu0 0
          %1694 = vmatprep.subr.bf16.mxu0 0
          %1695 = vmatpush1.bf16.msra.mxu0 0
          %1696 = vmatprep.subr.bf16.mxu0 0
          %1697 = vmatpush1.bf16.msra.mxu0 0
          %1698 = vmatprep.mubr.bf16.mxu0 0
          %1699 = vmatmul.mubr.bf16.gmra.mrb[0].mxu0 %v1664
          %v1700 = vpop.f32.mrb[0].mxu0
          %v1701 = vadd.f32 0.0, %v1700
          %v1702 = vpop.f32.mrb[0].mxu0
          %v1703 = vadd.f32 0.0, %v1702
          %v1704 = vpop.f32.mrb[0].mxu0
          %v1705 = vpop.f32.mrb[0].mxu0
          %1706 = vdwg.mxu0
          %1707 = vmatprep.subr.bf16.mxu0 %v1140
          %1708 = vmatpush1.bf16.msra.mxu0 %v1139
          %1709 = vmatprep.subr.bf16.mxu0 %v1144
          %1710 = vmatpush1.bf16.msra.mxu0 %v1143
          %1711 = vmatprep.subr.bf16.mxu0 %v1148
          %1712 = vmatpush1.bf16.msra.mxu0 %v1147
          %1713 = vmatprep.subr.bf16.mxu0 %v1152
          %1714 = vmatpush1.bf16.msra.mxu0 %v1151
          %1715 = vmatprep.subr.bf16.mxu0 %v1156
          %1716 = vmatpush1.bf16.msra.mxu0 %v1155
          %1717 = vmatprep.subr.bf16.mxu0 %v1160
          %1718 = vmatpush1.bf16.msra.mxu0 %v1159
          %1719 = vmatprep.subr.bf16.mxu0 %v1164
          %1720 = vmatpush1.bf16.msra.mxu0 %v1163
          %1721 = vmatprep.subr.bf16.mxu0 %v1168
          %1722 = vmatpush1.bf16.msra.mxu0 %v1167
          %1723 = vmatprep.subr.bf16.mxu0 0
          %1724 = vmatpush1.bf16.msra.mxu0 0
          %1725 = vmatprep.subr.bf16.mxu0 0
          %1726 = vmatpush1.bf16.msra.mxu0 0
          %1727 = vmatprep.subr.bf16.mxu0 0
          %1728 = vmatpush1.bf16.msra.mxu0 0
          %1729 = vmatprep.subr.bf16.mxu0 0
          %1730 = vmatpush1.bf16.msra.mxu0 0
          %1731 = vmatprep.subr.bf16.mxu0 0
          %1732 = vmatpush1.bf16.msra.mxu0 0
          %1733 = vmatprep.subr.bf16.mxu0 0
          %1734 = vmatpush1.bf16.msra.mxu0 0
          %1735 = vmatprep.subr.bf16.mxu0 0
          %1736 = vmatpush1.bf16.msra.mxu0 0
          %1737 = vmatprep.subr.bf16.mxu0 0
          %1738 = vmatpush1.bf16.msra.mxu0 0
          %1739 = vmatprep.mubr.bf16.mxu0 0
          %1740 = vmatmul.mubr.bf16.gmra.mrb[0].mxu0 %v1664
          %v1741 = vpop.f32.mrb[0].mxu0
          %v1742 = vadd.f32 0.0, %v1741
          %v1743 = vpop.f32.mrb[0].mxu0
          %v1744 = vadd.f32 0.0, %v1743
          %v1745 = vpop.f32.mrb[0].mxu0
          %v1746 = vpop.f32.mrb[0].mxu0
          %1747 = vdwg.mxu0
          %v1752 = vrot.slane %v1701, 4
          %v1753 = vrot.slane %v1703, 4
          %v1754 = vrot.slane %v1742, 4
          %v1755 = vrot.slane %v1744, 4
          %v1760 = vadd.f32 %v1004, %v1752
          %v1761 = vadd.f32 %v1005, %v1753
          %v1762 = vadd.f32 %v1006, %v1754
          %v1763 = vadd.f32 %v1007, %v1755
          %v1764 = vtanh.pop %v1760
          %v1765 = vtanh.pop %v1761
          %v1766 = vtanh.pop %v1762
          %v1767 = vtanh.pop %v1763
          %v1768 = vadd.f32 %v1764, 1.0
          %v1769 = vmul.f32 %v1768, 0.5
          %v1770 = vadd.f32 %v1765, 1.0
          %v1771 = vmul.f32 %v1770, 0.5
          %v1772 = vadd.f32 %v1767, 1.0
          %v1773 = vmul.f32 %v1772, 0.5
          %v1775 = vrot.slane %v1657, 7
          %v1777 = vmul.f32 %v1771, %v1775
          %v1778 = vmul.f32 %v1769, %v1766
          %v1779 = vadd.f32 %v1777, %v1778
          %v1780 = vtanh.pop %v1779
          %v1781 = vmul.f32 %v1773, %v1780
          %v1782 = vpack.c.bf16 %v1781, %v1781
          %v1784 = vrot.slane %v1782, 2
          %1786 = vmatprep.subr.bf16.mxu0 %v1138
          %1787 = vmatpush1.bf16.msra.mxu0 %v1137
          %1788 = vmatprep.subr.bf16.mxu0 %v1142
          %1789 = vmatpush1.bf16.msra.mxu0 %v1141
          %1790 = vmatprep.subr.bf16.mxu0 %v1146
          %1791 = vmatpush1.bf16.msra.mxu0 %v1145
          %1792 = vmatprep.subr.bf16.mxu0 %v1150
          %1793 = vmatpush1.bf16.msra.mxu0 %v1149
          %1794 = vmatprep.subr.bf16.mxu0 %v1154
          %1795 = vmatpush1.bf16.msra.mxu0 %v1153
          %1796 = vmatprep.subr.bf16.mxu0 %v1158
          %1797 = vmatpush1.bf16.msra.mxu0 %v1157
          %1798 = vmatprep.subr.bf16.mxu0 %v1162
          %1799 = vmatpush1.bf16.msra.mxu0 %v1161
          %1800 = vmatprep.subr.bf16.mxu0 %v1166
          %1801 = vmatpush1.bf16.msra.mxu0 %v1165
          %1802 = vmatprep.subr.bf16.mxu0 0
          %1803 = vmatpush1.bf16.msra.mxu0 0
          %1804 = vmatprep.subr.bf16.mxu0 0
          %1805 = vmatpush1.bf16.msra.mxu0 0
          %1806 = vmatprep.subr.bf16.mxu0 0
          %1807 = vmatpush1.bf16.msra.mxu0 0
          %1808 = vmatprep.subr.bf16.mxu0 0
          %1809 = vmatpush1.bf16.msra.mxu0 0
          %1810 = vmatprep.subr.bf16.mxu0 0
          %1811 = vmatpush1.bf16.msra.mxu0 0
          %1812 = vmatprep.subr.bf16.mxu0 0
          %1813 = vmatpush1.bf16.msra.mxu0 0
          %1814 = vmatprep.subr.bf16.mxu0 0
          %1815 = vmatpush1.bf16.msra.mxu0 0
          %1816 = vmatprep.subr.bf16.mxu0 0
          %1817 = vmatpush1.bf16.msra.mxu0 0
          %1818 = vmatprep.mubr.bf16.mxu0 0
          %1819 = vmatmul.mubr.bf16.gmra.mrb[0].mxu0 %v1784
          %v1820 = vpop.f32.mrb[0].mxu0
          %v1821 = vadd.f32 0.0, %v1820
          %v1822 = vpop.f32.mrb[0].mxu0
          %v1823 = vadd.f32 0.0, %v1822
          %v1824 = vpop.f32.mrb[0].mxu0
          %v1825 = vpop.f32.mrb[0].mxu0
          %1826 = vdwg.mxu0
          %1827 = vmatprep.subr.bf16.mxu0 %v1140
          %1828 = vmatpush1.bf16.msra.mxu0 %v1139
          %1829 = vmatprep.subr.bf16.mxu0 %v1144
          %1830 = vmatpush1.bf16.msra.mxu0 %v1143
          %1831 = vmatprep.subr.bf16.mxu0 %v1148
          %1832 = vmatpush1.bf16.msra.mxu0 %v1147
          %1833 = vmatprep.subr.bf16.mxu0 %v1152
          %1834 = vmatpush1.bf16.msra.mxu0 %v1151
          %1835 = vmatprep.subr.bf16.mxu0 %v1156
          %1836 = vmatpush1.bf16.msra.mxu0 %v1155
          %1837 = vmatprep.subr.bf16.mxu0 %v1160
          %1838 = vmatpush1.bf16.msra.mxu0 %v1159
          %1839 = vmatprep.subr.bf16.mxu0 %v1164
          %1840 = vmatpush1.bf16.msra.mxu0 %v1163
          %1841 = vmatprep.subr.bf16.mxu0 %v1168
          %1842 = vmatpush1.bf16.msra.mxu0 %v1167
          %1843 = vmatprep.subr.bf16.mxu0 0
          %1844 = vmatpush1.bf16.msra.mxu0 0
          %1845 = vmatprep.subr.bf16.mxu0 0
          %1846 = vmatpush1.bf16.msra.mxu0 0
          %1847 = vmatprep.subr.bf16.mxu0 0
          %1848 = vmatpush1.bf16.msra.mxu0 0
          %1849 = vmatprep.subr.bf16.mxu0 0
          %1850 = vmatpush1.bf16.msra.mxu0 0
          %1851 = vmatprep.subr.bf16.mxu0 0
          %1852 = vmatpush1.bf16.msra.mxu0 0
          %1853 = vmatprep.subr.bf16.mxu0 0
          %1854 = vmatpush1.bf16.msra.mxu0 0
          %1855 = vmatprep.subr.bf16.mxu0 0
          %1856 = vmatpush1.bf16.msra.mxu0 0
          %1857 = vmatprep.subr.bf16.mxu0 0
          %1858 = vmatpush1.bf16.msra.mxu0 0
          %1859 = vmatprep.mubr.bf16.mxu0 0
          %1860 = vmatmul.mubr.bf16.gmra.mrb[0].mxu0 %v1784
          %v1861 = vpop.f32.mrb[0].mxu0
          %v1862 = vadd.f32 0.0, %v1861
          %v1863 = vpop.f32.mrb[0].mxu0
          %v1864 = vadd.f32 0.0, %v1863
          %v1865 = vpop.f32.mrb[0].mxu0
          %v1866 = vpop.f32.mrb[0].mxu0
          %1867 = vdwg.mxu0
          %v1872 = vrot.slane %v1821, 3
          %v1873 = vrot.slane %v1823, 3
          %v1874 = vrot.slane %v1862, 3
          %v1875 = vrot.slane %v1864, 3
          %v1880 = vadd.f32 %v1004, %v1872
          %v1881 = vadd.f32 %v1005, %v1873
          %v1882 = vadd.f32 %v1006, %v1874
          %v1883 = vadd.f32 %v1007, %v1875
          %v1884 = vtanh.pop %v1880
          %v1885 = vtanh.pop %v1881
          %v1886 = vtanh.pop %v1882
          %v1887 = vtanh.pop %v1883
          %v1888 = vadd.f32 %v1884, 1.0
          %v1889 = vmul.f32 %v1888, 0.5
          %v1890 = vadd.f32 %v1885, 1.0
          %v1891 = vmul.f32 %v1890, 0.5
          %v1892 = vadd.f32 %v1887, 1.0
          %v1893 = vmul.f32 %v1892, 0.5
          %v1895 = vrot.slane %v1779, 7
          %v1897 = vmul.f32 %v1891, %v1895
          %v1898 = vmul.f32 %v1889, %v1886
          %v1899 = vadd.f32 %v1897, %v1898
          %v1900 = vtanh.pop %v1899
          %v1901 = vmul.f32 %v1893, %v1900
          %v1902 = vpack.c.bf16 %v1901, %v1901
          %v1904 = vshrl.u32 %v1902, 16
          %v1906 = vrot.slane %v1904, 2
          %1908 = vmatprep.subr.bf16.mxu0 %v1138
          %1909 = vmatpush1.bf16.msra.mxu0 %v1137
          %1910 = vmatprep.subr.bf16.mxu0 %v1142
          %1911 = vmatpush1.bf16.msra.mxu0 %v1141
          %1912 = vmatprep.subr.bf16.mxu0 %v1146
          %1913 = vmatpush1.bf16.msra.mxu0 %v1145
          %1914 = vmatprep.subr.bf16.mxu0 %v1150
          %1915 = vmatpush1.bf16.msra.mxu0 %v1149
          %1916 = vmatprep.subr.bf16.mxu0 %v1154
          %1917 = vmatpush1.bf16.msra.mxu0 %v1153
          %1918 = vmatprep.subr.bf16.mxu0 %v1158
          %1919 = vmatpush1.bf16.msra.mxu0 %v1157
          %1920 = vmatprep.subr.bf16.mxu0 %v1162
          %1921 = vmatpush1.bf16.msra.mxu0 %v1161
          %1922 = vmatprep.subr.bf16.mxu0 %v1166
          %1923 = vmatpush1.bf16.msra.mxu0 %v1165
          %1924 = vmatprep.subr.bf16.mxu0 0
          %1925 = vmatpush1.bf16.msra.mxu0 0
          %1926 = vmatprep.subr.bf16.mxu0 0
          %1927 = vmatpush1.bf16.msra.mxu0 0
          %1928 = vmatprep.subr.bf16.mxu0 0
          %1929 = vmatpush1.bf16.msra.mxu0 0
          %1930 = vmatprep.subr.bf16.mxu0 0
          %1931 = vmatpush1.bf16.msra.mxu0 0
          %1932 = vmatprep.subr.bf16.mxu0 0
          %1933 = vmatpush1.bf16.msra.mxu0 0
          %1934 = vmatprep.subr.bf16.mxu0 0
          %1935 = vmatpush1.bf16.msra.mxu0 0
          %1936 = vmatprep.subr.bf16.mxu0 0
          %1937 = vmatpush1.bf16.msra.mxu0 0
          %1938 = vmatprep.subr.bf16.mxu0 0
          %1939 = vmatpush1.bf16.msra.mxu0 0
          %1940 = vmatprep.mubr.bf16.mxu0 0
          %1941 = vmatmul.mubr.bf16.gmra.mrb[0].mxu0 %v1906
          %v1942 = vpop.f32.mrb[0].mxu0
          %v1943 = vadd.f32 0.0, %v1942
          %v1944 = vpop.f32.mrb[0].mxu0
          %v1945 = vadd.f32 0.0, %v1944
          %v1946 = vpop.f32.mrb[0].mxu0
          %v1947 = vpop.f32.mrb[0].mxu0
          %1948 = vdwg.mxu0
          %1949 = vmatprep.subr.bf16.mxu0 %v1140
          %1950 = vmatpush1.bf16.msra.mxu0 %v1139
          %1951 = vmatprep.subr.bf16.mxu0 %v1144
          %1952 = vmatpush1.bf16.msra.mxu0 %v1143
          %1953 = vmatprep.subr.bf16.mxu0 %v1148
          %1954 = vmatpush1.bf16.msra.mxu0 %v1147
          %1955 = vmatprep.subr.bf16.mxu0 %v1152
          %1956 = vmatpush1.bf16.msra.mxu0 %v1151
          %1957 = vmatprep.subr.bf16.mxu0 %v1156
          %1958 = vmatpush1.bf16.msra.mxu0 %v1155
          %1959 = vmatprep.subr.bf16.mxu0 %v1160
          %1960 = vmatpush1.bf16.msra.mxu0 %v1159
          %1961 = vmatprep.subr.bf16.mxu0 %v1164
          %1962 = vmatpush1.bf16.msra.mxu0 %v1163
          %1963 = vmatprep.subr.bf16.mxu0 %v1168
          %1964 = vmatpush1.bf16.msra.mxu0 %v1167
          %1965 = vmatprep.subr.bf16.mxu0 0
          %1966 = vmatpush1.bf16.msra.mxu0 0
          %1967 = vmatprep.subr.bf16.mxu0 0
          %1968 = vmatpush1.bf16.msra.mxu0 0
          %1969 = vmatprep.subr.bf16.mxu0 0
          %1970 = vmatpush1.bf16.msra.mxu0 0
          %1971 = vmatprep.subr.bf16.mxu0 0
          %1972 = vmatpush1.bf16.msra.mxu0 0
          %1973 = vmatprep.subr.bf16.mxu0 0
          %1974 = vmatpush1.bf16.msra.mxu0 0
          %1975 = vmatprep.subr.bf16.mxu0 0
          %1976 = vmatpush1.bf16.msra.mxu0 0
          %1977 = vmatprep.subr.bf16.mxu0 0
          %1978 = vmatpush1.bf16.msra.mxu0 0
          %1979 = vmatprep.subr.bf16.mxu0 0
          %1980 = vmatpush1.bf16.msra.mxu0 0
          %1981 = vmatprep.mubr.bf16.mxu0 0
          %1982 = vmatmul.mubr.bf16.gmra.mrb[0].mxu0 %v1906
          %v1983 = vpop.f32.mrb[0].mxu0
          %v1984 = vadd.f32 0.0, %v1983
          %v1985 = vpop.f32.mrb[0].mxu0
          %v1986 = vadd.f32 0.0, %v1985
          %v1987 = vpop.f32.mrb[0].mxu0
          %v1988 = vpop.f32.mrb[0].mxu0
          %1989 = vdwg.mxu0
          %v1994 = vrot.slane %v1943, 2
          %v1995 = vrot.slane %v1945, 2
          %v1996 = vrot.slane %v1984, 2
          %v1997 = vrot.slane %v1986, 2
          %v2002 = vadd.f32 %v1004, %v1994
          %v2003 = vadd.f32 %v1005, %v1995
          %v2004 = vadd.f32 %v1006, %v1996
          %v2005 = vadd.f32 %v1007, %v1997
          %v2006 = vtanh.pop %v2002
          %v2007 = vtanh.pop %v2003
          %v2008 = vtanh.pop %v2004
          %v2009 = vtanh.pop %v2005
          %v2010 = vadd.f32 %v2006, 1.0
          %v2011 = vmul.f32 %v2010, 0.5
          %v2012 = vadd.f32 %v2007, 1.0
          %v2013 = vmul.f32 %v2012, 0.5
          %v2014 = vadd.f32 %v2009, 1.0
          %v2015 = vmul.f32 %v2014, 0.5
          %v2017 = vrot.slane %v1899, 7
          %v2019 = vmul.f32 %v2013, %v2017
          %v2020 = vmul.f32 %v2011, %v2008
          %v2021 = vadd.f32 %v2019, %v2020
          %v2022 = vtanh.pop %v2021
          %v2023 = vmul.f32 %v2015, %v2022
          %v2024 = vpack.c.bf16 %v2023, %v2023
          %v2026 = vrot.slane %v2024, 3
          %2028 = vmatprep.subr.bf16.mxu0 %v1138
          %2029 = vmatpush1.bf16.msra.mxu0 %v1137
          %2030 = vmatprep.subr.bf16.mxu0 %v1142
          %2031 = vmatpush1.bf16.msra.mxu0 %v1141
          %2032 = vmatprep.subr.bf16.mxu0 %v1146
          %2033 = vmatpush1.bf16.msra.mxu0 %v1145
          %2034 = vmatprep.subr.bf16.mxu0 %v1150
          %2035 = vmatpush1.bf16.msra.mxu0 %v1149
          %2036 = vmatprep.subr.bf16.mxu0 %v1154
          %2037 = vmatpush1.bf16.msra.mxu0 %v1153
          %2038 = vmatprep.subr.bf16.mxu0 %v1158
          %2039 = vmatpush1.bf16.msra.mxu0 %v1157
          %2040 = vmatprep.subr.bf16.mxu0 %v1162
          %2041 = vmatpush1.bf16.msra.mxu0 %v1161
          %2042 = vmatprep.subr.bf16.mxu0 %v1166
          %2043 = vmatpush1.bf16.msra.mxu0 %v1165
          %2044 = vmatprep.subr.bf16.mxu0 0
          %2045 = vmatpush1.bf16.msra.mxu0 0
          %2046 = vmatprep.subr.bf16.mxu0 0
          %2047 = vmatpush1.bf16.msra.mxu0 0
          %2048 = vmatprep.subr.bf16.mxu0 0
          %2049 = vmatpush1.bf16.msra.mxu0 0
          %2050 = vmatprep.subr.bf16.mxu0 0
          %2051 = vmatpush1.bf16.msra.mxu0 0
          %2052 = vmatprep.subr.bf16.mxu0 0
          %2053 = vmatpush1.bf16.msra.mxu0 0
          %2054 = vmatprep.subr.bf16.mxu0 0
          %2055 = vmatpush1.bf16.msra.mxu0 0
          %2056 = vmatprep.subr.bf16.mxu0 0
          %2057 = vmatpush1.bf16.msra.mxu0 0
          %2058 = vmatprep.subr.bf16.mxu0 0
          %2059 = vmatpush1.bf16.msra.mxu0 0
          %2060 = vmatprep.mubr.bf16.mxu0 0
          %2061 = vmatmul.mubr.bf16.gmra.mrb[0].mxu0 %v2026
          %v2062 = vpop.f32.mrb[0].mxu0
          %v2063 = vadd.f32 0.0, %v2062
          %v2064 = vpop.f32.mrb[0].mxu0
          %v2065 = vadd.f32 0.0, %v2064
          %v2066 = vpop.f32.mrb[0].mxu0
          %v2067 = vpop.f32.mrb[0].mxu0
          %2068 = vdwg.mxu0
          %2069 = vmatprep.subr.bf16.mxu0 %v1140
          %2070 = vmatpush1.bf16.msra.mxu0 %v1139
          %2071 = vmatprep.subr.bf16.mxu0 %v1144
          %2072 = vmatpush1.bf16.msra.mxu0 %v1143
          %2073 = vmatprep.subr.bf16.mxu0 %v1148
          %2074 = vmatpush1.bf16.msra.mxu0 %v1147
          %2075 = vmatprep.subr.bf16.mxu0 %v1152
          %2076 = vmatpush1.bf16.msra.mxu0 %v1151
          %2077 = vmatprep.subr.bf16.mxu0 %v1156
          %2078 = vmatpush1.bf16.msra.mxu0 %v1155
          %2079 = vmatprep.subr.bf16.mxu0 %v1160
          %2080 = vmatpush1.bf16.msra.mxu0 %v1159
          %2081 = vmatprep.subr.bf16.mxu0 %v1164
          %2082 = vmatpush1.bf16.msra.mxu0 %v1163
          %2083 = vmatprep.subr.bf16.mxu0 %v1168
          %2084 = vmatpush1.bf16.msra.mxu0 %v1167
          %2085 = vmatprep.subr.bf16.mxu0 0
          %2086 = vmatpush1.bf16.msra.mxu0 0
          %2087 = vmatprep.subr.bf16.mxu0 0
          %2088 = vmatpush1.bf16.msra.mxu0 0
          %2089 = vmatprep.subr.bf16.mxu0 0
          %2090 = vmatpush1.bf16.msra.mxu0 0
          %2091 = vmatprep.subr.bf16.mxu0 0
          %2092 = vmatpush1.bf16.msra.mxu0 0
          %2093 = vmatprep.subr.bf16.mxu0 0
          %2094 = vmatpush1.bf16.msra.mxu0 0
          %2095 = vmatprep.subr.bf16.mxu0 0
          %2096 = vmatpush1.bf16.msra.mxu0 0
          %2097 = vmatprep.subr.bf16.mxu0 0
          %2098 = vmatpush1.bf16.msra.mxu0 0
          %2099 = vmatprep.subr.bf16.mxu0 0
          %2100 = vmatpush1.bf16.msra.mxu0 0
          %2101 = vmatprep.mubr.bf16.mxu0 0
          %2102 = vmatmul.mubr.bf16.gmra.mrb[0].mxu0 %v2026
          %v2103 = vpop.f32.mrb[0].mxu0
          %v2104 = vadd.f32 0.0, %v2103
          %v2105 = vpop.f32.mrb[0].mxu0
          %v2106 = vadd.f32 0.0, %v2105
          %v2107 = vpop.f32.mrb[0].mxu0
          %v2108 = vpop.f32.mrb[0].mxu0
          %2109 = vdwg.mxu0
          %v2114 = vrot.slane %v2063, 1
          %v2115 = vrot.slane %v2065, 1
          %v2116 = vrot.slane %v2104, 1
          %v2117 = vrot.slane %v2106, 1
          %v2122 = vadd.f32 %v1004, %v2114
          %v2123 = vadd.f32 %v1005, %v2115
          %v2124 = vadd.f32 %v1006, %v2116
          %v2125 = vadd.f32 %v1007, %v2117
          %v2126 = vtanh.pop %v2122
          %v2127 = vtanh.pop %v2123
          %v2128 = vtanh.pop %v2124
          %v2129 = vtanh.pop %v2125
          %v2130 = vadd.f32 %v2126, 1.0
          %v2131 = vmul.f32 %v2130, 0.5
          %v2132 = vadd.f32 %v2127, 1.0
          %v2133 = vmul.f32 %v2132, 0.5
          %v2134 = vadd.f32 %v2129, 1.0
          %v2135 = vmul.f32 %v2134, 0.5
          %v2137 = vrot.slane %v2021, 7
          %v2139 = vmul.f32 %v2133, %v2137
          %v2140 = vmul.f32 %v2131, %v2128
          %v2141 = vadd.f32 %v2139, %v2140
          %v2142 = vtanh.pop %v2141
          %v2143 = vmul.f32 %v2135, %v2142
          %vm2144 = vcmask 1040384
          %v2145 = vsel %vm2144, %v1301, %v1418
          %vm2146 = vcmask 1041408
          %v2147 = vsel %vm2146, %v2145, %v1539
          %vm2148 = vcmask 1042432
          %v2149 = vsel %vm2148, %v2147, %v1659
          %vm2150 = vcmask 1043456
          %v2151 = vsel %vm2150, %v2149, %v1781
          %vm2152 = vcmask 1044480
          %v2153 = vsel %vm2152, %v2151, %v1901
          %vm2154 = vcmask 1045504
          %v2155 = vsel %vm2154, %v2153, %v2023
          %vm2156 = vcmask 1046528
          %v2157 = vsel %vm2156, %v2155, %v2143
          %s2158 = scalar_lea.vmem [#allocation6], %s998
          %2159 = vst [vmem:[%s2158] sm:$0xff] %v2157
          %v2161 = vrot.slane %v2143, 7
          %v2164 = vrot.slane %v2141, 7
        $region65: #{decoder_lstm_forward.1} parent=47 // loop_footer
          %s995 = sadd.s32 1, %s991
        $region66: #{decoder_lstm_forward.1} parent=47 // loop_footer_branch
          %990 = sbr.rel target = $region62
        $region67: #{decoder_lstm_forward.1} parent=47 // loop_exit
          _
        %2166 = vst [vmem:[#allocation2] sm:$0x1] %v996
        %2167 = vst [vmem:[#allocation3] sm:$0x1] %v997
        %v2168 = vld [vmem:[#allocation6] sm:$0xff]
        %v2169 = vld [vmem:[#allocation6 + $0x8] sm:$0xff]
        %v2170 = vld [vmem:[#allocation6 + $0x10] sm:$0xff]
        %v2171 = vld [vmem:[#allocation6 + $0x18] sm:$0xff]
        %v2172 = vld [vmem:[#allocation6 + $0x20] sm:$0xff]
        %v2173 = vld [vmem:[#allocation6 + $0x28] sm:$0xff]
        %v2174 = vld [vmem:[#allocation6 + $0x30] sm:$0xff]
        %v2175 = vld [vmem:[#allocation6 + $0x38] sm:$0xff]
        %v2176 = vld [vmem:[#allocation6 + $0x40] sm:$0xff]
        %v2177 = vld [vmem:[#allocation6 + $0x48] sm:$0xff]
        %v2178 = vld [vmem:[#allocation6 + $0x50] sm:$0xff]
        %v2179 = vld [vmem:[#allocation6 + $0x58] sm:$0xff]
        %v2180 = vld [vmem:[#allocation6 + $0x60] sm:$0xff]
        %v2181 = vld [vmem:[#allocation6 + $0x68] sm:$0xff]
        %v2182 = vld [vmem:[#allocation6 + $0x70] sm:$0xff]
        %v2183 = vld [vmem:[#allocation6 + $0x78] sm:$0xff]
        %v2184 = vpack.c.bf16 %v2169, %v2168
        %v2185 = vpack.c.bf16 %v2171, %v2170
        %v2186 = vpack.c.bf16 %v2173, %v2172
        %v2187 = vpack.c.bf16 %v2175, %v2174
        %v2188 = vpack.c.bf16 %v2177, %v2176
        %v2189 = vpack.c.bf16 %v2179, %v2178
        %v2190 = vpack.c.bf16 %v2181, %v2180
        %v2191 = vpack.c.bf16 %v2183, %v2182
        %v2192 = vld [vmem:[%s6] sm:$0xf]
        %v2193 = vld [vmem:[%s6 + $0x4] sm:$0xf]
        %v2194 = vld [vmem:[%s6 + $0x8] sm:$0xf]
        %v2195 = vld [vmem:[%s6 + $0xc] sm:$0xf]
        %v2196 = vld [vmem:[%s6 + $0x10] sm:$0xf]
        %v2197 = vld [vmem:[%s6 + $0x14] sm:$0xf]
        %v2198 = vld [vmem:[%s6 + $0x18] sm:$0xf]
        %v2199 = vld [vmem:[%s6 + $0x1c] sm:$0xf]
        %v2200 = vld [vmem:[%s6 + $0x20] sm:$0xf]
        %v2201 = vld [vmem:[%s6 + $0x24] sm:$0xf]
        %v2202 = vld [vmem:[%s6 + $0x28] sm:$0xf]
        %v2203 = vld [vmem:[%s6 + $0x2c] sm:$0xf]
        %v2204 = vld [vmem:[%s6 + $0x30] sm:$0xf]
        %v2205 = vld [vmem:[%s6 + $0x34] sm:$0xf]
        %v2206 = vld [vmem:[%s6 + $0x38] sm:$0xf]
        %v2207 = vld [vmem:[%s6 + $0x3c] sm:$0xf]
        %v2208 = vld [vmem:[%s7] sm:$0x1]
        %v2210 = vlaneseq
        %v2211 = vshrl.u32 %v2210, 7
        %v2212 = vsub.s32 0, %v2211
        %v2213 = vrot.slane %v2208, %v2212
        %v2231 = vunpack.c.l.b16 %v2192
        %v2232 = vunpack.c.l.b16 %v2193
        %v2233 = vunpack.c.l.b16 %v2194
        %v2234 = vunpack.c.l.b16 %v2195
        %v2235 = vunpack.c.l.b16 %v2196
        %v2236 = vunpack.c.l.b16 %v2197
        %v2237 = vunpack.c.l.b16 %v2198
        %v2238 = vunpack.c.l.b16 %v2199
        %v2239 = vunpack.c.l.b16 %v2200
        %v2240 = vunpack.c.l.b16 %v2201
        %v2241 = vunpack.c.l.b16 %v2202
        %v2242 = vunpack.c.l.b16 %v2203
        %v2243 = vunpack.c.l.b16 %v2204
        %v2244 = vunpack.c.l.b16 %v2205
        %v2245 = vunpack.c.l.b16 %v2206
        %v2246 = vunpack.c.l.b16 %v2207
        %v2247 = vpack.c.b16 %v2232, %v2231
        %v2248 = vpack.c.b16 %v2234, %v2233
        %v2249 = vpack.c.b16 %v2236, %v2235
        %v2250 = vpack.c.b16 %v2238, %v2237
        %v2251 = vpack.c.b16 %v2240, %v2239
        %v2252 = vpack.c.b16 %v2242, %v2241
        %v2253 = vpack.c.b16 %v2244, %v2243
        %v2254 = vpack.c.b16 %v2246, %v2245
        %2263 = vmatprep.subr.bf16.mxu0 0
        %2264 = vmatpush1.bf16.msra.mxu0 %v2247
        %2265 = vmatprep.subr.bf16.mxu0 0
        %2266 = vmatpush1.bf16.msra.mxu0 %v2248
        %2267 = vmatprep.subr.bf16.mxu0 0
        %2268 = vmatpush1.bf16.msra.mxu0 %v2249
        %2269 = vmatprep.subr.bf16.mxu0 0
        %2270 = vmatpush1.bf16.msra.mxu0 %v2250
        %2271 = vmatprep.subr.bf16.mxu0 0
        %2272 = vmatpush1.bf16.msra.mxu0 %v2251
        %2273 = vmatprep.subr.bf16.mxu0 0
        %2274 = vmatpush1.bf16.msra.mxu0 %v2252
        %2275 = vmatprep.subr.bf16.mxu0 0
        %2276 = vmatpush1.bf16.msra.mxu0 %v2253
        %2277 = vmatprep.subr.bf16.mxu0 0
        %2278 = vmatpush1.bf16.msra.mxu0 %v2254
        %2279 = vmatprep.subr.bf16.mxu0 0
        %2280 = vmatpush1.bf16.msra.mxu0 0
        %2281 = vmatprep.subr.bf16.mxu0 0
        %2282 = vmatpush1.bf16.msra.mxu0 0
        %2283 = vmatprep.subr.bf16.mxu0 0
        %2284 = vmatpush1.bf16.msra.mxu0 0
        %2285 = vmatprep.subr.bf16.mxu0 0
        %2286 = vmatpush1.bf16.msra.mxu0 0
        %2287 = vmatprep.subr.bf16.mxu0 0
        %2288 = vmatpush1.bf16.msra.mxu0 0
        %2289 = vmatprep.subr.bf16.mxu0 0
        %2290 = vmatpush1.bf16.msra.mxu0 0
        %2291 = vmatprep.subr.bf16.mxu0 0
        %2292 = vmatpush1.bf16.msra.mxu0 0
        %2293 = vmatprep.subr.bf16.mxu0 0
        %2294 = vmatpush1.bf16.msra.mxu0 0
        %2295 = vmatprep.mubr.bf16.mxu0 0
        %2296 = vmatmul.mubr.bf16.gmra.mrb[0].mxu0 %v2184
        %v2297 = vpop.f32.mrb[0].mxu0
        %v2298 = vadd.f32 %v2213, %v2297
        %v2299 = vpop.f32.mrb[0].mxu0
        %v2300 = vpop.f32.mrb[0].mxu0
        %v2301 = vadd.f32 %v2213, %v2300
        %v2302 = vpop.f32.mrb[0].mxu0
        %2303 = vmatprep.mubr.bf16.mxu0 0
        %2304 = vmatmul.mubr.bf16.gmra.mrb[0].mxu0 %v2185
        %v2305 = vpop.f32.mrb[0].mxu0
        %v2306 = vadd.f32 %v2213, %v2305
        %v2307 = vpop.f32.mrb[0].mxu0
        %v2308 = vpop.f32.mrb[0].mxu0
        %v2309 = vadd.f32 %v2213, %v2308
        %v2310 = vpop.f32.mrb[0].mxu0
        %2311 = vmatprep.mubr.bf16.mxu0 0
        %2312 = vmatmul.mubr.bf16.gmra.mrb[0].mxu0 %v2186
        %v2313 = vpop.f32.mrb[0].mxu0
        %v2314 = vadd.f32 %v2213, %v2313
        %v2315 = vpop.f32.mrb[0].mxu0
        %v2316 = vpop.f32.mrb[0].mxu0
        %v2317 = vadd.f32 %v2213, %v2316
        %v2318 = vpop.f32.mrb[0].mxu0
        %2319 = vmatprep.mubr.bf16.mxu0 0
        %2320 = vmatmul.mubr.bf16.gmra.mrb[0].mxu0 %v2187
        %v2321 = vpop.f32.mrb[0].mxu0
        %v2322 = vadd.f32 %v2213, %v2321
        %v2323 = vpop.f32.mrb[0].mxu0
        %v2324 = vpop.f32.mrb[0].mxu0
        %v2325 = vadd.f32 %v2213, %v2324
        %v2326 = vpop.f32.mrb[0].mxu0
        %2327 = vmatprep.mubr.bf16.mxu0 0
        %2328 = vmatmul.mubr.bf16.gmra.mrb[0].mxu0 %v2188
        %v2329 = vpop.f32.mrb[0].mxu0
        %v2330 = vadd.f32 %v2213, %v2329
        %v2331 = vpop.f32.mrb[0].mxu0
        %v2332 = vpop.f32.mrb[0].mxu0
        %v2333 = vadd.f32 %v2213, %v2332
        %v2334 = vpop.f32.mrb[0].mxu0
        %2335 = vmatprep.mubr.bf16.mxu0 0
        %2336 = vmatmul.mubr.bf16.gmra.mrb[0].mxu0 %v2189
        %v2337 = vpop.f32.mrb[0].mxu0
        %v2338 = vadd.f32 %v2213, %v2337
        %v2339 = vpop.f32.mrb[0].mxu0
        %v2340 = vpop.f32.mrb[0].mxu0
        %v2341 = vadd.f32 %v2213, %v2340
        %v2342 = vpop.f32.mrb[0].mxu0
        %2343 = vmatprep.mubr.bf16.mxu0 0
        %2344 = vmatmul.mubr.bf16.gmra.mrb[0].mxu0 %v2190
        %v2345 = vpop.f32.mrb[0].mxu0
        %v2346 = vadd.f32 %v2213, %v2345
        %v2347 = vpop.f32.mrb[0].mxu0
        %v2348 = vpop.f32.mrb[0].mxu0
        %v2349 = vadd.f32 %v2213, %v2348
        %v2350 = vpop.f32.mrb[0].mxu0
        %2351 = vmatprep.mubr.bf16.mxu0 0
        %2352 = vmatmul.mubr.bf16.gmra.mrb[0].mxu0 %v2191
        %v2353 = vpop.f32.mrb[0].mxu0
        %v2354 = vadd.f32 %v2213, %v2353
        %v2355 = vpop.f32.mrb[0].mxu0
        %v2356 = vpop.f32.mrb[0].mxu0
        %v2357 = vadd.f32 %v2213, %v2356
        %v2358 = vpop.f32.mrb[0].mxu0
        %2359 = vdwg.mxu0
        %2360 = vst [vmem:[%s274] sm:$0xff] %v2298
        %2361 = vst [vmem:[%s274 + $0x8] sm:$0xff] %v2301
        %2362 = vst [vmem:[%s274 + $0x10] sm:$0xff] %v2306
        %2363 = vst [vmem:[%s274 + $0x18] sm:$0xff] %v2309
        %2364 = vst [vmem:[%s274 + $0x20] sm:$0xff] %v2314
        %2365 = vst [vmem:[%s274 + $0x28] sm:$0xff] %v2317
        %2366 = vst [vmem:[%s274 + $0x30] sm:$0xff] %v2322
        %2367 = vst [vmem:[%s274 + $0x38] sm:$0xff] %v2325
        %2368 = vst [vmem:[%s274 + $0x40] sm:$0xff] %v2330
        %2369 = vst [vmem:[%s274 + $0x48] sm:$0xff] %v2333
        %2370 = vst [vmem:[%s274 + $0x50] sm:$0xff] %v2338
        %2371 = vst [vmem:[%s274 + $0x58] sm:$0xff] %v2341
        %2372 = vst [vmem:[%s274 + $0x60] sm:$0xff] %v2346
        %2373 = vst [vmem:[%s274 + $0x68] sm:$0xff] %v2349
        %2374 = vst [vmem:[%s274 + $0x70] sm:$0xff] %v2354
        %2375 = vst [vmem:[%s274 + $0x78] sm:$0xff] %v2357
        %s2376 = sadd.s32 %s25, 1
        %s2377 = sld [smem:[#allocation8 + %s2376]]
        %p2378 = scmp.eq.s32.totalorder %s2377, 0
        // Predicated region
        $region68: #{decoder_lstm_forward.1} parent=47 // pred_check
          %p2379 = pneg %p2378
        $region69: #{decoder_lstm_forward.1} parent=47 // pred_check_branch
          %2381 = sbr.rel (%p2379) target = $region71
        $region70: #{decoder_lstm_forward.1} parent=47 // pred_region
          %v2382 = vlaneseq
          %v2383 = vand.u32 %v2382, 127
          %2384 = vmax.xlane.f32.xlu0 %v2298
          %v2385 = vpop.xlane.xlu0 %2384
          %2386 = vmax.xlane.f32.xlu0 %v2301
          %v2387 = vpop.xlane.xlu0 %2386
          %2388 = vmax.xlane.f32.xlu0 %v2306
          %v2389 = vpop.xlane.xlu0 %2388
          %2390 = vmax.xlane.f32.xlu0 %v2309
          %v2391 = vpop.xlane.xlu0 %2390
          %2392 = vmax.xlane.f32.xlu0 %v2314
          %v2393 = vpop.xlane.xlu0 %2392
          %2394 = vmax.xlane.f32.xlu0 %v2317
          %v2395 = vpop.xlane.xlu0 %2394
          %2396 = vmax.xlane.f32.xlu0 %v2322
          %v2397 = vpop.xlane.xlu0 %2396
          %2398 = vmax.xlane.f32.xlu0 %v2325
          %v2399 = vpop.xlane.xlu0 %2398
          %2400 = vmax.xlane.f32.xlu0 %v2330
          %v2401 = vpop.xlane.xlu0 %2400
          %2402 = vmax.xlane.f32.xlu0 %v2333
          %v2403 = vpop.xlane.xlu0 %2402
          %2404 = vmax.xlane.f32.xlu0 %v2338
          %v2405 = vpop.xlane.xlu0 %2404
          %2406 = vmax.xlane.f32.xlu0 %v2341
          %v2407 = vpop.xlane.xlu0 %2406
          %2408 = vmax.xlane.f32.xlu0 %v2346
          %v2409 = vpop.xlane.xlu0 %2408
          %2410 = vmax.xlane.f32.xlu0 %v2349
          %v2411 = vpop.xlane.xlu0 %2410
          %2412 = vmax.xlane.f32.xlu0 %v2354
          %v2413 = vpop.xlane.xlu0 %2412
          %2414 = vmax.xlane.f32.xlu0 %v2357
          %v2415 = vpop.xlane.xlu0 %2414
          %vm2416 = vcmp.ge.f32.partialorder %v2298, %v2385
          %vm2417 = vcmp.ge.f32.partialorder %v2301, %v2387
          %vm2418 = vcmp.ge.f32.partialorder %v2306, %v2389
          %vm2419 = vcmp.ge.f32.partialorder %v2309, %v2391
          %vm2420 = vcmp.ge.f32.partialorder %v2314, %v2393
          %vm2421 = vcmp.ge.f32.partialorder %v2317, %v2395
          %vm2422 = vcmp.ge.f32.partialorder %v2322, %v2397
          %vm2423 = vcmp.ge.f32.partialorder %v2325, %v2399
          %vm2424 = vcmp.ge.f32.partialorder %v2330, %v2401
          %vm2425 = vcmp.ge.f32.partialorder %v2333, %v2403
          %vm2426 = vcmp.ge.f32.partialorder %v2338, %v2405
          %vm2427 = vcmp.ge.f32.partialorder %v2341, %v2407
          %vm2428 = vcmp.ge.f32.partialorder %v2346, %v2409
          %vm2429 = vcmp.ge.f32.partialorder %v2349, %v2411
          %vm2430 = vcmp.ge.f32.partialorder %v2354, %v2413
          %vm2431 = vcmp.ge.f32.partialorder %v2357, %v2415
          %v2432 = vsel %vm2416, %v2383, 128
          %v2433 = vsel %vm2417, %v2383, 128
          %v2434 = vsel %vm2418, %v2383, 128
          %v2435 = vsel %vm2419, %v2383, 128
          %v2436 = vsel %vm2420, %v2383, 128
          %v2437 = vsel %vm2421, %v2383, 128
          %v2438 = vsel %vm2422, %v2383, 128
          %v2439 = vsel %vm2423, %v2383, 128
          %v2440 = vsel %vm2424, %v2383, 128
          %v2441 = vsel %vm2425, %v2383, 128
          %v2442 = vsel %vm2426, %v2383, 128
          %v2443 = vsel %vm2427, %v2383, 128
          %v2444 = vsel %vm2428, %v2383, 128
          %v2445 = vsel %vm2429, %v2383, 128
          %v2446 = vsel %vm2430, %v2383, 128
          %v2447 = vsel %vm2431, %v2383, 128
          %v2448 = vand.u32 %v2432, 65535
          %v2449 = vshra.s32 %v2432, 16
          %v2450 = vcvt.s32.f32 %v2448
          %v2451 = vcvt.s32.f32 %v2449
          %2452 = vmin.xlane.f32.xlu0 %v2451
          %v2453 = vpop.xlane.xlu0 %2452
          %vm2454 = vcmp.eq.f32.partialorder %v2451, %v2453
          %v2455 = vsel %vm2454, %v2450, inf
          %2456 = vmin.xlane.f32.xlu0 %v2455
          %v2457 = vpop.xlane.xlu0 %2456
          %v2458 = vcvt.f32.s32 %v2457
          %v2459 = vcvt.f32.s32 %v2453
          %v2460 = vshll.u32 %v2459, 16
          %v2461 = vadd.s32 %v2460, %v2458
          %v2462 = vand.u32 %v2433, 65535
          %v2463 = vshra.s32 %v2433, 16
          %v2464 = vcvt.s32.f32 %v2462
          %v2465 = vcvt.s32.f32 %v2463
          %2466 = vmin.xlane.f32.xlu0 %v2465
          %v2467 = vpop.xlane.xlu0 %2466
          %vm2468 = vcmp.eq.f32.partialorder %v2465, %v2467
          %v2469 = vsel %vm2468, %v2464, inf
          %2470 = vmin.xlane.f32.xlu0 %v2469
          %v2471 = vpop.xlane.xlu0 %2470
          %v2472 = vcvt.f32.s32 %v2471
          %v2473 = vcvt.f32.s32 %v2467
          %v2474 = vshll.u32 %v2473, 16
          %v2475 = vadd.s32 %v2474, %v2472
          %v2476 = vand.u32 %v2434, 65535
          %v2477 = vshra.s32 %v2434, 16
          %v2478 = vcvt.s32.f32 %v2476
          %v2479 = vcvt.s32.f32 %v2477
          %2480 = vmin.xlane.f32.xlu0 %v2479
          %v2481 = vpop.xlane.xlu0 %2480
          %vm2482 = vcmp.eq.f32.partialorder %v2479, %v2481
          %v2483 = vsel %vm2482, %v2478, inf
          %2484 = vmin.xlane.f32.xlu0 %v2483
          %v2485 = vpop.xlane.xlu0 %2484
          %v2486 = vcvt.f32.s32 %v2485
          %v2487 = vcvt.f32.s32 %v2481
          %v2488 = vshll.u32 %v2487, 16
          %v2489 = vadd.s32 %v2488, %v2486
          %v2490 = vand.u32 %v2435, 65535
          %v2491 = vshra.s32 %v2435, 16
          %v2492 = vcvt.s32.f32 %v2490
          %v2493 = vcvt.s32.f32 %v2491
          %2494 = vmin.xlane.f32.xlu0 %v2493
          %v2495 = vpop.xlane.xlu0 %2494
          %vm2496 = vcmp.eq.f32.partialorder %v2493, %v2495
          %v2497 = vsel %vm2496, %v2492, inf
          %2498 = vmin.xlane.f32.xlu0 %v2497
          %v2499 = vpop.xlane.xlu0 %2498
          %v2500 = vcvt.f32.s32 %v2499
          %v2501 = vcvt.f32.s32 %v2495
          %v2502 = vshll.u32 %v2501, 16
          %v2503 = vadd.s32 %v2502, %v2500
          %v2504 = vand.u32 %v2436, 65535
          %v2505 = vshra.s32 %v2436, 16
          %v2506 = vcvt.s32.f32 %v2504
          %v2507 = vcvt.s32.f32 %v2505
          %2508 = vmin.xlane.f32.xlu0 %v2507
          %v2509 = vpop.xlane.xlu0 %2508
          %vm2510 = vcmp.eq.f32.partialorder %v2507, %v2509
          %v2511 = vsel %vm2510, %v2506, inf
          %2512 = vmin.xlane.f32.xlu0 %v2511
          %v2513 = vpop.xlane.xlu0 %2512
          %v2514 = vcvt.f32.s32 %v2513
          %v2515 = vcvt.f32.s32 %v2509
          %v2516 = vshll.u32 %v2515, 16
          %v2517 = vadd.s32 %v2516, %v2514
          %v2518 = vand.u32 %v2437, 65535
          %v2519 = vshra.s32 %v2437, 16
          %v2520 = vcvt.s32.f32 %v2518
          %v2521 = vcvt.s32.f32 %v2519
          %2522 = vmin.xlane.f32.xlu0 %v2521
          %v2523 = vpop.xlane.xlu0 %2522
          %vm2524 = vcmp.eq.f32.partialorder %v2521, %v2523
          %v2525 = vsel %vm2524, %v2520, inf
          %2526 = vmin.xlane.f32.xlu0 %v2525
          %v2527 = vpop.xlane.xlu0 %2526
          %v2528 = vcvt.f32.s32 %v2527
          %v2529 = vcvt.f32.s32 %v2523
          %v2530 = vshll.u32 %v2529, 16
          %v2531 = vadd.s32 %v2530, %v2528
          %v2532 = vand.u32 %v2438, 65535
          %v2533 = vshra.s32 %v2438, 16
          %v2534 = vcvt.s32.f32 %v2532
          %v2535 = vcvt.s32.f32 %v2533
          %2536 = vmin.xlane.f32.xlu0 %v2535
          %v2537 = vpop.xlane.xlu0 %2536
          %vm2538 = vcmp.eq.f32.partialorder %v2535, %v2537
          %v2539 = vsel %vm2538, %v2534, inf
          %2540 = vmin.xlane.f32.xlu0 %v2539
          %v2541 = vpop.xlane.xlu0 %2540
          %v2542 = vcvt.f32.s32 %v2541
          %v2543 = vcvt.f32.s32 %v2537
          %v2544 = vshll.u32 %v2543, 16
          %v2545 = vadd.s32 %v2544, %v2542
          %v2546 = vand.u32 %v2439, 65535
          %v2547 = vshra.s32 %v2439, 16
          %v2548 = vcvt.s32.f32 %v2546
          %v2549 = vcvt.s32.f32 %v2547
          %2550 = vmin.xlane.f32.xlu0 %v2549
          %v2551 = vpop.xlane.xlu0 %2550
          %vm2552 = vcmp.eq.f32.partialorder %v2549, %v2551
          %v2553 = vsel %vm2552, %v2548, inf
          %2554 = vmin.xlane.f32.xlu0 %v2553
          %v2555 = vpop.xlane.xlu0 %2554
          %v2556 = vcvt.f32.s32 %v2555
          %v2557 = vcvt.f32.s32 %v2551
          %v2558 = vshll.u32 %v2557, 16
          %v2559 = vadd.s32 %v2558, %v2556
          %v2560 = vand.u32 %v2440, 65535
          %v2561 = vshra.s32 %v2440, 16
          %v2562 = vcvt.s32.f32 %v2560
          %v2563 = vcvt.s32.f32 %v2561
          %2564 = vmin.xlane.f32.xlu0 %v2563
          %v2565 = vpop.xlane.xlu0 %2564
          %vm2566 = vcmp.eq.f32.partialorder %v2563, %v2565
          %v2567 = vsel %vm2566, %v2562, inf
          %2568 = vmin.xlane.f32.xlu0 %v2567
          %v2569 = vpop.xlane.xlu0 %2568
          %v2570 = vcvt.f32.s32 %v2569
          %v2571 = vcvt.f32.s32 %v2565
          %v2572 = vshll.u32 %v2571, 16
          %v2573 = vadd.s32 %v2572, %v2570
          %v2574 = vand.u32 %v2441, 65535
          %v2575 = vshra.s32 %v2441, 16
          %v2576 = vcvt.s32.f32 %v2574
          %v2577 = vcvt.s32.f32 %v2575
          %2578 = vmin.xlane.f32.xlu0 %v2577
          %v2579 = vpop.xlane.xlu0 %2578
          %vm2580 = vcmp.eq.f32.partialorder %v2577, %v2579
          %v2581 = vsel %vm2580, %v2576, inf
          %2582 = vmin.xlane.f32.xlu0 %v2581
          %v2583 = vpop.xlane.xlu0 %2582
          %v2584 = vcvt.f32.s32 %v2583
          %v2585 = vcvt.f32.s32 %v2579
          %v2586 = vshll.u32 %v2585, 16
          %v2587 = vadd.s32 %v2586, %v2584
          %v2588 = vand.u32 %v2442, 65535
          %v2589 = vshra.s32 %v2442, 16
          %v2590 = vcvt.s32.f32 %v2588
          %v2591 = vcvt.s32.f32 %v2589
          %2592 = vmin.xlane.f32.xlu0 %v2591
          %v2593 = vpop.xlane.xlu0 %2592
          %vm2594 = vcmp.eq.f32.partialorder %v2591, %v2593
          %v2595 = vsel %vm2594, %v2590, inf
          %2596 = vmin.xlane.f32.xlu0 %v2595
          %v2597 = vpop.xlane.xlu0 %2596
          %v2598 = vcvt.f32.s32 %v2597
          %v2599 = vcvt.f32.s32 %v2593
          %v2600 = vshll.u32 %v2599, 16
          %v2601 = vadd.s32 %v2600, %v2598
          %v2602 = vand.u32 %v2443, 65535
          %v2603 = vshra.s32 %v2443, 16
          %v2604 = vcvt.s32.f32 %v2602
          %v2605 = vcvt.s32.f32 %v2603
          %2606 = vmin.xlane.f32.xlu0 %v2605
          %v2607 = vpop.xlane.xlu0 %2606
          %vm2608 = vcmp.eq.f32.partialorder %v2605, %v2607
          %v2609 = vsel %vm2608, %v2604, inf
          %2610 = vmin.xlane.f32.xlu0 %v2609
          %v2611 = vpop.xlane.xlu0 %2610
          %v2612 = vcvt.f32.s32 %v2611
          %v2613 = vcvt.f32.s32 %v2607
          %v2614 = vshll.u32 %v2613, 16
          %v2615 = vadd.s32 %v2614, %v2612
          %v2616 = vand.u32 %v2444, 65535
          %v2617 = vshra.s32 %v2444, 16
          %v2618 = vcvt.s32.f32 %v2616
          %v2619 = vcvt.s32.f32 %v2617
          %2620 = vmin.xlane.f32.xlu0 %v2619
          %v2621 = vpop.xlane.xlu0 %2620
          %vm2622 = vcmp.eq.f32.partialorder %v2619, %v2621
          %v2623 = vsel %vm2622, %v2618, inf
          %2624 = vmin.xlane.f32.xlu0 %v2623
          %v2625 = vpop.xlane.xlu0 %2624
          %v2626 = vcvt.f32.s32 %v2625
          %v2627 = vcvt.f32.s32 %v2621
          %v2628 = vshll.u32 %v2627, 16
          %v2629 = vadd.s32 %v2628, %v2626
          %v2630 = vand.u32 %v2445, 65535
          %v2631 = vshra.s32 %v2445, 16
          %v2632 = vcvt.s32.f32 %v2630
          %v2633 = vcvt.s32.f32 %v2631
          %2634 = vmin.xlane.f32.xlu0 %v2633
          %v2635 = vpop.xlane.xlu0 %2634
          %vm2636 = vcmp.eq.f32.partialorder %v2633, %v2635
          %v2637 = vsel %vm2636, %v2632, inf
          %2638 = vmin.xlane.f32.xlu0 %v2637
          %v2639 = vpop.xlane.xlu0 %2638
          %v2640 = vcvt.f32.s32 %v2639
          %v2641 = vcvt.f32.s32 %v2635
          %v2642 = vshll.u32 %v2641, 16
          %v2643 = vadd.s32 %v2642, %v2640
          %v2644 = vand.u32 %v2446, 65535
          %v2645 = vshra.s32 %v2446, 16
          %v2646 = vcvt.s32.f32 %v2644
          %v2647 = vcvt.s32.f32 %v2645
          %2648 = vmin.xlane.f32.xlu0 %v2647
          %v2649 = vpop.xlane.xlu0 %2648
          %vm2650 = vcmp.eq.f32.partialorder %v2647, %v2649
          %v2651 = vsel %vm2650, %v2646, inf
          %2652 = vmin.xlane.f32.xlu0 %v2651
          %v2653 = vpop.xlane.xlu0 %2652
          %v2654 = vcvt.f32.s32 %v2653
          %v2655 = vcvt.f32.s32 %v2649
          %v2656 = vshll.u32 %v2655, 16
          %v2657 = vadd.s32 %v2656, %v2654
          %v2658 = vand.u32 %v2447, 65535
          %v2659 = vshra.s32 %v2447, 16
          %v2660 = vcvt.s32.f32 %v2658
          %v2661 = vcvt.s32.f32 %v2659
          %2662 = vmin.xlane.f32.xlu0 %v2661
          %v2663 = vpop.xlane.xlu0 %2662
          %vm2664 = vcmp.eq.f32.partialorder %v2661, %v2663
          %v2665 = vsel %vm2664, %v2660, inf
          %2666 = vmin.xlane.f32.xlu0 %v2665
          %v2667 = vpop.xlane.xlu0 %2666
          %v2668 = vcvt.f32.s32 %v2667
          %v2669 = vcvt.f32.s32 %v2663
          %v2670 = vshll.u32 %v2669, 16
          %v2671 = vadd.s32 %v2670, %v2668
          %vm2672 = vcmp.eq.s32.totalorder %v2383, %v2461
          %vm2673 = vcmp.eq.s32.totalorder %v2383, %v2475
          %vm2674 = vcmp.eq.s32.totalorder %v2383, %v2489
          %vm2675 = vcmp.eq.s32.totalorder %v2383, %v2503
          %vm2676 = vcmp.eq.s32.totalorder %v2383, %v2517
          %vm2677 = vcmp.eq.s32.totalorder %v2383, %v2531
          %vm2678 = vcmp.eq.s32.totalorder %v2383, %v2545
          %vm2679 = vcmp.eq.s32.totalorder %v2383, %v2559
          %vm2680 = vcmp.eq.s32.totalorder %v2383, %v2573
          %vm2681 = vcmp.eq.s32.totalorder %v2383, %v2587
          %vm2682 = vcmp.eq.s32.totalorder %v2383, %v2601
          %vm2683 = vcmp.eq.s32.totalorder %v2383, %v2615
          %vm2684 = vcmp.eq.s32.totalorder %v2383, %v2629
          %vm2685 = vcmp.eq.s32.totalorder %v2383, %v2643
          %vm2686 = vcmp.eq.s32.totalorder %v2383, %v2657
          %vm2687 = vcmp.eq.s32.totalorder %v2383, %v2671
          %v2688 = vsel %vm2672, 1, 0
          %v2689 = vsel %vm2673, 1, 0
          %v2690 = vsel %vm2674, 1, 0
          %v2691 = vsel %vm2675, 1, 0
          %v2692 = vsel %vm2676, 1, 0
          %v2693 = vsel %vm2677, 1, 0
          %v2694 = vsel %vm2678, 1, 0
          %v2695 = vsel %vm2679, 1, 0
          %v2696 = vsel %vm2680, 1, 0
          %v2697 = vsel %vm2681, 1, 0
          %v2698 = vsel %vm2682, 1, 0
          %v2699 = vsel %vm2683, 1, 0
          %v2700 = vsel %vm2684, 1, 0
          %v2701 = vsel %vm2685, 1, 0
          %v2702 = vsel %vm2686, 1, 0
          %v2703 = vsel %vm2687, 1, 0
          %v2704 = vcvt.s32.f32 %v2688
          %v2705 = vcvt.s32.f32 %v2689
          %v2706 = vcvt.s32.f32 %v2690
          %v2707 = vcvt.s32.f32 %v2691
          %v2708 = vcvt.s32.f32 %v2692
          %v2709 = vcvt.s32.f32 %v2693
          %v2710 = vcvt.s32.f32 %v2694
          %v2711 = vcvt.s32.f32 %v2695
          %v2712 = vcvt.s32.f32 %v2696
          %v2713 = vcvt.s32.f32 %v2697
          %v2714 = vcvt.s32.f32 %v2698
          %v2715 = vcvt.s32.f32 %v2699
          %v2716 = vcvt.s32.f32 %v2700
          %v2717 = vcvt.s32.f32 %v2701
          %v2718 = vcvt.s32.f32 %v2702
          %v2719 = vcvt.s32.f32 %v2703
          %v2720 = vpack.c.bf16 %v2705, %v2704
          %v2721 = vpack.c.bf16 %v2707, %v2706
          %v2722 = vpack.c.bf16 %v2709, %v2708
          %v2723 = vpack.c.bf16 %v2711, %v2710
          %v2724 = vpack.c.bf16 %v2713, %v2712
          %v2725 = vpack.c.bf16 %v2715, %v2714
          %v2726 = vpack.c.bf16 %v2717, %v2716
          %v2727 = vpack.c.bf16 %v2719, %v2718
          %v2728 = vld [vmem:[%s3] sm:$0xf]
          %v2729 = vld [vmem:[%s3 + $0x4] sm:$0xf]
          %v2730 = vld [vmem:[%s3 + $0x8] sm:$0xf]
          %v2731 = vld [vmem:[%s3 + $0xc] sm:$0xf]
          %v2732 = vld [vmem:[%s3 + $0x10] sm:$0xf]
          %v2733 = vld [vmem:[%s3 + $0x14] sm:$0xf]
          %v2734 = vld [vmem:[%s3 + $0x18] sm:$0xf]
          %v2735 = vld [vmem:[%s3 + $0x1c] sm:$0xf]
          %v2736 = vld [vmem:[%s3 + $0x20] sm:$0xf]
          %v2737 = vld [vmem:[%s3 + $0x24] sm:$0xf]
          %v2738 = vld [vmem:[%s3 + $0x28] sm:$0xf]
          %v2739 = vld [vmem:[%s3 + $0x2c] sm:$0xf]
          %v2740 = vld [vmem:[%s3 + $0x30] sm:$0xf]
          %v2741 = vld [vmem:[%s3 + $0x34] sm:$0xf]
          %v2742 = vld [vmem:[%s3 + $0x38] sm:$0xf]
          %v2743 = vld [vmem:[%s3 + $0x3c] sm:$0xf]
          %v2760 = vunpack.c.l.b16 %v2728
          %v2761 = vunpack.c.l.b16 %v2729
          %v2762 = vunpack.c.l.b16 %v2730
          %v2763 = vunpack.c.l.b16 %v2731
          %v2764 = vunpack.c.l.b16 %v2732
          %v2765 = vunpack.c.l.b16 %v2733
          %v2766 = vunpack.c.l.b16 %v2734
          %v2767 = vunpack.c.l.b16 %v2735
          %v2768 = vunpack.c.l.b16 %v2736
          %v2769 = vunpack.c.l.b16 %v2737
          %v2770 = vunpack.c.l.b16 %v2738
          %v2771 = vunpack.c.l.b16 %v2739
          %v2772 = vunpack.c.l.b16 %v2740
          %v2773 = vunpack.c.l.b16 %v2741
          %v2774 = vunpack.c.l.b16 %v2742
          %v2775 = vunpack.c.l.b16 %v2743
          %v2776 = vpack.c.b16 %v2761, %v2760
          %v2777 = vpack.c.b16 %v2763, %v2762
          %v2778 = vpack.c.b16 %v2765, %v2764
          %v2779 = vpack.c.b16 %v2767, %v2766
          %v2780 = vpack.c.b16 %v2769, %v2768
          %v2781 = vpack.c.b16 %v2771, %v2770
          %v2782 = vpack.c.b16 %v2773, %v2772
          %v2783 = vpack.c.b16 %v2775, %v2774
          %2792 = vmatprep.subr.bf16.mxu0 0
          %2793 = vmatpush1.bf16.msra.mxu0 %v2776
          %2794 = vmatprep.subr.bf16.mxu0 0
          %2795 = vmatpush1.bf16.msra.mxu0 %v2777
          %2796 = vmatprep.subr.bf16.mxu0 0
          %2797 = vmatpush1.bf16.msra.mxu0 %v2778
          %2798 = vmatprep.subr.bf16.mxu0 0
          %2799 = vmatpush1.bf16.msra.mxu0 %v2779
          %2800 = vmatprep.subr.bf16.mxu0 0
          %2801 = vmatpush1.bf16.msra.mxu0 %v2780
          %2802 = vmatprep.subr.bf16.mxu0 0
          %2803 = vmatpush1.bf16.msra.mxu0 %v2781
          %2804 = vmatprep.subr.bf16.mxu0 0
          %2805 = vmatpush1.bf16.msra.mxu0 %v2782
          %2806 = vmatprep.subr.bf16.mxu0 0
          %2807 = vmatpush1.bf16.msra.mxu0 %v2783
          %2808 = vmatprep.subr.bf16.mxu0 0
          %2809 = vmatpush1.bf16.msra.mxu0 0
          %2810 = vmatprep.subr.bf16.mxu0 0
          %2811 = vmatpush1.bf16.msra.mxu0 0
          %2812 = vmatprep.subr.bf16.mxu0 0
          %2813 = vmatpush1.bf16.msra.mxu0 0
          %2814 = vmatprep.subr.bf16.mxu0 0
          %2815 = vmatpush1.bf16.msra.mxu0 0
          %2816 = vmatprep.subr.bf16.mxu0 0
          %2817 = vmatpush1.bf16.msra.mxu0 0
          %2818 = vmatprep.subr.bf16.mxu0 0
          %2819 = vmatpush1.bf16.msra.mxu0 0
          %2820 = vmatprep.subr.bf16.mxu0 0
          %2821 = vmatpush1.bf16.msra.mxu0 0
          %2822 = vmatprep.subr.bf16.mxu0 0
          %2823 = vmatpush1.bf16.msra.mxu0 0
          %2824 = vmatprep.mubr.bf16.mxu0 0
          %2825 = vmatmul.mubr.bf16.gmra.mrb[0].mxu0 %v2720
          %v2826 = vpop.f32.mrb[0].mxu0
          %v2827 = vadd.f32 0.0, %v2826
          %v2828 = vpop.f32.mrb[0].mxu0
          %v2829 = vpop.f32.mrb[0].mxu0
          %v2830 = vadd.f32 0.0, %v2829
          %v2831 = vpop.f32.mrb[0].mxu0
          %2832 = vmatprep.mubr.bf16.mxu0 0
          %2833 = vmatmul.mubr.bf16.gmra.mrb[0].mxu0 %v2721
          %v2834 = vpop.f32.mrb[0].mxu0
          %v2835 = vadd.f32 0.0, %v2834
          %v2836 = vpop.f32.mrb[0].mxu0
          %v2837 = vpop.f32.mrb[0].mxu0
          %v2838 = vadd.f32 0.0, %v2837
          %v2839 = vpop.f32.mrb[0].mxu0
          %2840 = vmatprep.mubr.bf16.mxu0 0
          %2841 = vmatmul.mubr.bf16.gmra.mrb[0].mxu0 %v2722
          %v2842 = vpop.f32.mrb[0].mxu0
          %v2843 = vadd.f32 0.0, %v2842
          %v2844 = vpop.f32.mrb[0].mxu0
          %v2845 = vpop.f32.mrb[0].mxu0
          %v2846 = vadd.f32 0.0, %v2845
          %v2847 = vpop.f32.mrb[0].mxu0
          %2848 = vmatprep.mubr.bf16.mxu0 0
          %2849 = vmatmul.mubr.bf16.gmra.mrb[0].mxu0 %v2723
          %v2850 = vpop.f32.mrb[0].mxu0
          %v2851 = vadd.f32 0.0, %v2850
          %v2852 = vpop.f32.mrb[0].mxu0
          %v2853 = vpop.f32.mrb[0].mxu0
          %v2854 = vadd.f32 0.0, %v2853
          %v2855 = vpop.f32.mrb[0].mxu0
          %2856 = vmatprep.mubr.bf16.mxu0 0
          %2857 = vmatmul.mubr.bf16.gmra.mrb[0].mxu0 %v2724
          %v2858 = vpop.f32.mrb[0].mxu0
          %v2859 = vadd.f32 0.0, %v2858
          %v2860 = vpop.f32.mrb[0].mxu0
          %v2861 = vpop.f32.mrb[0].mxu0
          %v2862 = vadd.f32 0.0, %v2861
          %v2863 = vpop.f32.mrb[0].mxu0
          %2864 = vmatprep.mubr.bf16.mxu0 0
          %2865 = vmatmul.mubr.bf16.gmra.mrb[0].mxu0 %v2725
          %v2866 = vpop.f32.mrb[0].mxu0
          %v2867 = vadd.f32 0.0, %v2866
          %v2868 = vpop.f32.mrb[0].mxu0
          %v2869 = vpop.f32.mrb[0].mxu0
          %v2870 = vadd.f32 0.0, %v2869
          %v2871 = vpop.f32.mrb[0].mxu0
          %2872 = vmatprep.mubr.bf16.mxu0 0
          %2873 = vmatmul.mubr.bf16.gmra.mrb[0].mxu0 %v2726
          %v2874 = vpop.f32.mrb[0].mxu0
          %v2875 = vadd.f32 0.0, %v2874
          %v2876 = vpop.f32.mrb[0].mxu0
          %v2877 = vpop.f32.mrb[0].mxu0
          %v2878 = vadd.f32 0.0, %v2877
          %v2879 = vpop.f32.mrb[0].mxu0
          %2880 = vmatprep.mubr.bf16.mxu0 0
          %2881 = vmatmul.mubr.bf16.gmra.mrb[0].mxu0 %v2727
          %v2882 = vpop.f32.mrb[0].mxu0
          %v2883 = vadd.f32 0.0, %v2882
          %v2884 = vpop.f32.mrb[0].mxu0
          %v2885 = vpop.f32.mrb[0].mxu0
          %v2886 = vadd.f32 0.0, %v2885
          %v2887 = vpop.f32.mrb[0].mxu0
          %2888 = vdwg.mxu0
          %v2889 = vpack.c.bf16 %v2830, %v2827
          %v2890 = vpack.c.bf16 %v2838, %v2835
          %v2891 = vpack.c.bf16 %v2846, %v2843
          %v2892 = vpack.c.bf16 %v2854, %v2851
          %v2893 = vpack.c.bf16 %v2862, %v2859
          %v2894 = vpack.c.bf16 %v2870, %v2867
          %v2895 = vpack.c.bf16 %v2878, %v2875
          %v2896 = vpack.c.bf16 %v2886, %v2883
          %vm2897 = vcmask 523264
          %2898 = vst.msk [vmem:[#allocation4] sm:$0xff] %vm2897, %v2889
          %2899 = vst.msk [vmem:[#allocation4 + $0x8] sm:$0xff] %vm2897, %v2890
          %2900 = vst.msk [vmem:[#allocation4 + $0x10] sm:$0xff] %vm2897, %v2891
          %2901 = vst.msk [vmem:[#allocation4 + $0x18] sm:$0xff] %vm2897, %v2892
          %2902 = vst.msk [vmem:[#allocation4 + $0x20] sm:$0xff] %vm2897, %v2893
          %2903 = vst.msk [vmem:[#allocation4 + $0x28] sm:$0xff] %vm2897, %v2894
          %2904 = vst.msk [vmem:[#allocation4 + $0x30] sm:$0xff] %vm2897, %v2895
          %2905 = vst.msk [vmem:[#allocation4 + $0x38] sm:$0xff] %vm2897, %v2896
        $region71: #{decoder_lstm_forward.1} parent=47 // pred_fallthru
          _
        %s2906 = sand.u32 %s185, 1
        %s2907 = sand.u32 %s185, 1
        %s2908 = smul.addr %s2907, 128
        %s2909 = scalar_lea.vmem [#allocation9], %s2908
        // Predicated region
        $region72: #{decoder_lstm_forward.1} parent=47 // pred_check
          %p2910 = pneg %p195
        $region73: #{decoder_lstm_forward.1} parent=47 // pred_check_branch
          %2912 = sbr.rel (%p2910) target = $region75
        $region74: #{decoder_lstm_forward.1} parent=47 // pred_region
          %s2913 = smul.addr %s25, 8
          %s2914 = scalar_lea.vmem %s8, %s2913
          // Predicated region
          $region76: #{decoder_lstm_forward.1} parent=74 // pred_check
            _
          $region77: #{decoder_lstm_forward.1} parent=74 // pred_check_branch
            %2916 = sbr.rel (0) target = $region79
          $region78: #{decoder_lstm_forward.1} parent=74 // pred_region
            // Predicated region
            $region80: #{decoder_lstm_forward.1} parent=78 // pred_check
              _
            $region81: #{decoder_lstm_forward.1} parent=78 // pred_check_branch
              %2918 = sbr.rel (0) target = $region83
            $region82: #{decoder_lstm_forward.1} parent=78 // pred_region
              // Predicated region
              $region95: #{decoder_lstm_forward.1} parent=82 // pred_check
                _
              $region96: #{decoder_lstm_forward.1} parent=82 // pred_check_branch
                %2963 = sbr.rel (0) target = $region98
              $region97: #{decoder_lstm_forward.1} parent=82 // pred_region
                loop: start=0, step=1, limit=1
                $region99: #{decoder_lstm_forward.1} parent=97 // loop_pre_header
                  _
                $region100: #{decoder_lstm_forward.1} parent=97 // loop_header
                  %s2965 = sphi 0, %s2969
                  %p2966 = scmp.ge.s32.totalorder %s2965, 1
                  %s2970 = sphi %s2909, %s2909
                  %s2971 = sphi %s2914, %s2914
                $region101: #{decoder_lstm_forward.1} parent=97 // loop_header_branch
                  %2968 = sbr.rel (%p2966) target = $region105
                $region102: #{decoder_lstm_forward.1} parent=97 // loop_body
                  %v2972 = vld [vmem:[%s2970] sm:$0xff]
                  %2973 = vst [vmem:[%s2971] sm:$0xff] %v2972
                  %v2974 = vld [vmem:[%s2970 + $0x8] sm:$0xff]
                  %2975 = vst [vmem:[%s2971 + $0x30] sm:$0xff] %v2974
                  %v2976 = vld [vmem:[%s2970 + $0x10] sm:$0xff]
                  %2977 = vst [vmem:[%s2971 + $0x60] sm:$0xff] %v2976
                  %v2978 = vld [vmem:[%s2970 + $0x18] sm:$0xff]
                  %2979 = vst [vmem:[%s2971 + $0x90] sm:$0xff] %v2978
                  %v2980 = vld [vmem:[%s2970 + $0x20] sm:$0xff]
                  %2981 = vst [vmem:[%s2971 + $0xc0] sm:$0xff] %v2980
                  %v2982 = vld [vmem:[%s2970 + $0x28] sm:$0xff]
                  %2983 = vst [vmem:[%s2971 + $0xf0] sm:$0xff] %v2982
                  %v2984 = vld [vmem:[%s2970 + $0x30] sm:$0xff]
                  %2985 = vst [vmem:[%s2971 + $0x120] sm:$0xff] %v2984
                  %v2986 = vld [vmem:[%s2970 + $0x38] sm:$0xff]
                  %2987 = vst [vmem:[%s2971 + $0x150] sm:$0xff] %v2986
                  %v2988 = vld [vmem:[%s2970 + $0x40] sm:$0xff]
                  %2989 = vst [vmem:[%s2971 + $0x180] sm:$0xff] %v2988
                  %v2990 = vld [vmem:[%s2970 + $0x48] sm:$0xff]
                  %2991 = vst [vmem:[%s2971 + $0x1b0] sm:$0xff] %v2990
                  %v2992 = vld [vmem:[%s2970 + $0x50] sm:$0xff]
                  %2993 = vst [vmem:[%s2971 + $0x1e0] sm:$0xff] %v2992
                  %v2994 = vld [vmem:[%s2970 + $0x58] sm:$0xff]
                  %2995 = vst [vmem:[%s2971 + $0x210] sm:$0xff] %v2994
                  %v2996 = vld [vmem:[%s2970 + $0x60] sm:$0xff]
                  %2997 = vst [vmem:[%s2971 + $0x240] sm:$0xff] %v2996
                  %v2998 = vld [vmem:[%s2970 + $0x68] sm:$0xff]
                  %2999 = vst [vmem:[%s2971 + $0x270] sm:$0xff] %v2998
                  %v3000 = vld [vmem:[%s2970 + $0x70] sm:$0xff]
                  %3001 = vst [vmem:[%s2971 + $0x2a0] sm:$0xff] %v3000
                  %v3002 = vld [vmem:[%s2970 + $0x78] sm:$0xff]
                  %3003 = vst [vmem:[%s2971 + $0x2d0] sm:$0xff] %v3002
                $region103: #{decoder_lstm_forward.1} parent=97 // loop_footer
                  %s2969 = sadd.s32 1, %s2965
                $region104: #{decoder_lstm_forward.1} parent=97 // loop_footer_branch
                  %2964 = sbr.rel target = $region100
                $region105: #{decoder_lstm_forward.1} parent=97 // loop_exit
                  _
              $region98: #{decoder_lstm_forward.1} parent=82 // pred_fallthru
                _
              // Predicated region
              $region106: #{decoder_lstm_forward.1} parent=82 // pred_check
                _
              $region107: #{decoder_lstm_forward.1} parent=82 // pred_check_branch
                %3005 = sbr.rel target = $region109
              $region108: #{decoder_lstm_forward.1} parent=82 // pred_region
                _
              $region109: #{decoder_lstm_forward.1} parent=82 // pred_fallthru
                _
            $region83: #{decoder_lstm_forward.1} parent=78 // pred_fallthru
              _
            // Predicated region
            $region84: #{decoder_lstm_forward.1} parent=78 // pred_check
              _
            $region85: #{decoder_lstm_forward.1} parent=78 // pred_check_branch
              %2920 = sbr.rel target = $region87
            $region86: #{decoder_lstm_forward.1} parent=78 // pred_region
              loop: start=0, step=1, limit=1
              $region88: #{decoder_lstm_forward.1} parent=86 // loop_pre_header
                _
              $region89: #{decoder_lstm_forward.1} parent=86 // loop_header
                %s2923 = sphi 0, %s2927
                %p2924 = scmp.ge.s32.totalorder %s2923, 1
                %s2928 = sphi %s2909, %s2909
                %s2929 = sphi %s2914, %s2914
              $region90: #{decoder_lstm_forward.1} parent=86 // loop_header_branch
                %2926 = sbr.rel (%p2924) target = $region94
              $region91: #{decoder_lstm_forward.1} parent=86 // loop_body
                %v2930 = vld [vmem:[%s2928] sm:$0xff]
                %2931 = vst [vmem:[%s2929] sm:$0xff] %v2930
                %v2932 = vld [vmem:[%s2928 + $0x8] sm:$0xff]
                %2933 = vst [vmem:[%s2929 + $0x30] sm:$0xff] %v2932
                %v2934 = vld [vmem:[%s2928 + $0x10] sm:$0xff]
                %2935 = vst [vmem:[%s2929 + $0x60] sm:$0xff] %v2934
                %v2936 = vld [vmem:[%s2928 + $0x18] sm:$0xff]
                %2937 = vst [vmem:[%s2929 + $0x90] sm:$0xff] %v2936
                %v2938 = vld [vmem:[%s2928 + $0x20] sm:$0xff]
                %2939 = vst [vmem:[%s2929 + $0xc0] sm:$0xff] %v2938
                %v2940 = vld [vmem:[%s2928 + $0x28] sm:$0xff]
                %2941 = vst [vmem:[%s2929 + $0xf0] sm:$0xff] %v2940
                %v2942 = vld [vmem:[%s2928 + $0x30] sm:$0xff]
                %2943 = vst [vmem:[%s2929 + $0x120] sm:$0xff] %v2942
                %v2944 = vld [vmem:[%s2928 + $0x38] sm:$0xff]
                %2945 = vst [vmem:[%s2929 + $0x150] sm:$0xff] %v2944
                %v2946 = vld [vmem:[%s2928 + $0x40] sm:$0xff]
                %2947 = vst [vmem:[%s2929 + $0x180] sm:$0xff] %v2946
                %v2948 = vld [vmem:[%s2928 + $0x48] sm:$0xff]
                %2949 = vst [vmem:[%s2929 + $0x1b0] sm:$0xff] %v2948
                %v2950 = vld [vmem:[%s2928 + $0x50] sm:$0xff]
                %2951 = vst [vmem:[%s2929 + $0x1e0] sm:$0xff] %v2950
                %v2952 = vld [vmem:[%s2928 + $0x58] sm:$0xff]
                %2953 = vst [vmem:[%s2929 + $0x210] sm:$0xff] %v2952
                %v2954 = vld [vmem:[%s2928 + $0x60] sm:$0xff]
                %2955 = vst [vmem:[%s2929 + $0x240] sm:$0xff] %v2954
                %v2956 = vld [vmem:[%s2928 + $0x68] sm:$0xff]
                %2957 = vst [vmem:[%s2929 + $0x270] sm:$0xff] %v2956
                %v2958 = vld [vmem:[%s2928 + $0x70] sm:$0xff]
                %2959 = vst [vmem:[%s2929 + $0x2a0] sm:$0xff] %v2958
                %v2960 = vld [vmem:[%s2928 + $0x78] sm:$0xff]
                %2961 = vst [vmem:[%s2929 + $0x2d0] sm:$0xff] %v2960
              $region92: #{decoder_lstm_forward.1} parent=86 // loop_footer
                %s2927 = sadd.s32 1, %s2923
              $region93: #{decoder_lstm_forward.1} parent=86 // loop_footer_branch
                %2922 = sbr.rel target = $region89
              $region94: #{decoder_lstm_forward.1} parent=86 // loop_exit
                _
            $region87: #{decoder_lstm_forward.1} parent=78 // pred_fallthru
              _
          $region79: #{decoder_lstm_forward.1} parent=74 // pred_fallthru
            _
          %3006 = vnop
        $region75: #{decoder_lstm_forward.1} parent=47 // pred_fallthru
          _
      $region48: #{decoder_lstm_forward.1} parent=5 // pred_fallthru
        _
      %p3007 = scmp.le.s32.totalorder 2, %s20
      // Predicated region
      $region110: #{decoder_lstm_forward.1} parent=5 // pred_check
        %p3008 = pneg %p3007
      $region111: #{decoder_lstm_forward.1} parent=5 // pred_check_branch
        %3010 = sbr.rel (%p3008) target = $region113
      $region112: #{decoder_lstm_forward.1} parent=5 // pred_region
        %s3011 = ssub.s32 %s20, 2
        // Predicated region
        $region114: #{decoder_lstm_forward.1} parent=112 // pred_check
          %p3012 = pneg %p201
        $region115: #{decoder_lstm_forward.1} parent=112 // pred_check_branch
          %3014 = sbr.rel (%p3012) target = $region117
        $region116: #{decoder_lstm_forward.1} parent=112 // pred_region
          %s3015 = sand.u32 %s186, 1
          %s3016 = sand.u32 %s186, 1
          %s3017 = smul.addr %s3016, 128
          %s3018 = scalar_lea.vmem [#allocation9], %s3017
        $region117: #{decoder_lstm_forward.1} parent=112 // pred_fallthru
          _
      $region113: #{decoder_lstm_forward.1} parent=5 // pred_fallthru
        _
    $region6: #{decoder_lstm_forward.1} parent=1 // loop_footer
      %s24 = sadd.s32 1, %s20
    $region7: #{decoder_lstm_forward.1} parent=1 // loop_footer_branch
      %19 = sbr.rel target = $region3
    $region8: #{decoder_lstm_forward.1} parent=1 // loop_exit
      _

</llo_original>
